<compile_context>
chip_gen: v6e
topology: v6e:2x2x1
jax: 0.10.0
libtpu: 0.0.40
codegen_flags: <defaults>
</compile_context>

<pallas_src>
import math
import numpy as np

import jax
import jax.numpy as jnp
from jax.experimental import pallas as pl
from jax.experimental.pallas import tpu as pltpu


# ------------------------------ fused kernel --------------------------------

def make_maia_block_kernel(H, W, Cin, Cout, eps=1e-5):
    HW = H * W
    PADL = W + 1                      # max |tap shift| = W + 1
    inv_hw = 1.0 / float(HW)

    def kernel(x_ref,
               w1_ref, s1_ref, b1_ref,
               w2_ref, s2_ref, b2_ref,
               w3_ref, s3_ref, b3_ref,
               ml_ref, mr_ref,
               sew1_ref, sew2_ref, fw1_ref, fw2_ref, deff_ref,
               rw_ref, rb_ref,
               o_ref,
               tb1, tb2):
        ml = ml_ref[...]                                  # (1, HW) bf16
        mr = mr_ref[...]                                  # (1, HW) bf16

        def conv3x3(tbuf, center16, w_ref):
            # 9 accumulating (Cout, C) @ (C, HW) MXU matmuls; taps are static
            # lane slices of the zero-edged line buffer (no concat, no (H,W)
            # reshape).  dx = +-1 taps mask the wrapped output column.
            acc = jnp.zeros((Cout, HW), jnp.float32)
            t = 0
            for dy in (-1, 0, 1):
                for dx in (-1, 0, 1):
                    sh = dy * W + dx
                    if sh == 0:
                        tap = center16                    # already in vregs
                    else:
                        tap = tbuf[:, PADL + sh:PADL + sh + HW]
                    if dx == -1:
                        tap = tap * ml
                    elif dx == 1:
                        tap = tap * mr
                    acc = acc + jnp.dot(w_ref[t], tap,
                                        preferred_element_type=jnp.float32)
                    t += 1
            return acc

        x = x_ref[0]                                      # (Cin, HW) f32
        x16 = x.astype(jnp.bfloat16)

        # ---- conv1 (3x3, pad=1) + folded BN + ReLU --------------------------
        # Zero only the two border strips every step (interior is always
        # overwritten).  Not program_id-gated: grid axis is megacore-parallel.
        tb1[:, :PADL] = jnp.zeros((Cin, PADL), jnp.bfloat16)
        tb1[:, PADL + HW:] = jnp.zeros((Cin, PADL), jnp.bfloat16)
        tb1[:, PADL:PADL + HW] = x16
        y = conv3x3(tb1, x16, w1_ref)
        y = jnp.maximum(y * s1_ref[...] + b1_ref[...], 0.0)

        # ---- conv2 + folded BN + SiLU ---------------------------------------
        tb2[:, :PADL] = jnp.zeros((Cout, PADL), jnp.bfloat16)
        tb2[:, PADL + HW:] = jnp.zeros((Cout, PADL), jnp.bfloat16)
        y16 = y.astype(jnp.bfloat16)
        tb2[:, PADL:PADL + HW] = y16
        y = conv3x3(tb2, y16, w2_ref)
        y = y * s2_ref[...] + b2_ref[...]
        y = y * jax.nn.sigmoid(y)

        # ---- conv3 + folded BN (no activation) ------------------------------
        # Invariant: tb2's border strips are still zero from the conv2 step.
        y16 = y.astype(jnp.bfloat16)
        tb2[:, PADL:PADL + HW] = y16
        y = conv3x3(tb2, y16, w3_ref)
        y = y * s3_ref[...] + b3_ref[...]

        # ---- SE + FCA fused: one pass over y feeds both channel reductions --
        m = jnp.sum(y, axis=1, keepdims=True) * inv_hw            # (Cout, 1)
        yf0 = jnp.sum(y * deff_ref[...], axis=1, keepdims=True)   # (Cout, 1)
        # SE fc on VPU/XLU (no tiny MXU matvecs): h1 row (1, Cr), s column.
        h1 = jnp.maximum(jnp.sum(m * sew1_ref[...], axis=0, keepdims=True), 0.0)
        s_se = jax.nn.sigmoid(jnp.sum(sew2_ref[...] * h1, axis=1, keepdims=True))
        # FCA acts on the SE-scaled features; its pooled vector is s_se * yf0.
        yf = yf0 * s_se
        g1 = jnp.maximum(jnp.sum(yf * fw1_ref[...], axis=0, keepdims=True), 0.0)
        g = jax.nn.sigmoid(jnp.sum(fw2_ref[...] * g1, axis=1, keepdims=True))
        y = y * (s_se * g)                                # single fused scale

        # ---- residual 1x1 conv (exact f32, VPU) + add + InstanceNorm + ReLU -
        rw = rw_ref[...]                                  # (Cout, Cin) f32
        r = jnp.zeros((Cout, HW), jnp.float32)
        for i in range(Cin):                              # 16 broadcast FMAs
            r = r + rw[:, i:i + 1] * x[i:i + 1, :]
        r = r + rb_ref[...]

        ssum = y + r
        mean = jnp.sum(ssum, axis=1, keepdims=True) * inv_hw
        cen = ssum - mean
        var = jnp.sum(cen * cen, axis=1, keepdims=True) * inv_hw
        out = jnp.maximum(cen * jax.lax.rsqrt(var + eps), 0.0)

        o_ref[0] = out.astype(o_ref.dtype)                # lane-dense (Cout, HW)

    return kernel


def maia_block_forward(x_nchw, p):
    """x_nchw: (N, Cin, H, W) float32 -> (N, Cout, H, W) float32."""
    N, Cin, H, W = x_nchw.shape
    Cout = p["w1"].shape[-1]
    Cr = p["se_w1t"].shape[1]
    HW = H * W
    PADL = W + 1

    # TODO(synk): stride=2 (downsample=True) path not implemented; the demo
    # instantiates MaiaBlock with downsample=False.
    # TODO(synk): for larger H/W/C, tile the H axis (1-row halo), budget
    # double-buffered blocks + line buffers + d_eff against v7x's 64 MiB VMEM
    # and set vmem_limit_bytes explicitly; at this size everything is < 1 MiB.

    x = x_nchw.reshape(N, Cin, HW)                        # free reshape (NCHW kept)

    # conv weights: HWIO -> (tap, Cout, Cin) bf16, tap = (dy+1)*3 + (dx+1)
    def conv_w(w):
        kh, kw, ci, co = w.shape
        return (jnp.transpose(w, (0, 1, 3, 2))
                .reshape(kh * kw, co, ci).astype(jnp.bfloat16))

    w1, w2, w3 = conv_w(p["w1"]), conv_w(p["w2"]), conv_w(p["w3"])

    # column-wrap masks (output-position masks) for the dx = -1 / +1 taps
    col = np.arange(HW) % W
    ml = jnp.asarray((col != 0).astype(np.float32).reshape(1, HW), jnp.bfloat16)
    mr = jnp.asarray((col != W - 1).astype(np.float32).reshape(1, HW), jnp.bfloat16)

    d_eff = p["d_eff"].reshape(Cout, HW)                  # (Cout, HW) f32

    def cvec(c):
        return pl.BlockSpec((c, 1), lambda n: (0, 0))

    def cmat(r, c):
        return pl.BlockSpec((r, c), lambda n: (0, 0))

    kernel = make_maia_block_kernel(H, W, Cin, Cout, eps=1e-5)

    out_flat = pl.pallas_call(
        kernel,
        out_shape=jax.ShapeDtypeStruct((N, Cout, HW), jnp.float32),
        grid=(N,),
        in_specs=[
            pl.BlockSpec((1, Cin, HW), lambda n: (n, 0, 0)),
            pl.BlockSpec((9, Cout, Cin), lambda n: (0, 0, 0)), cvec(Cout), cvec(Cout),
            pl.BlockSpec((9, Cout, Cout), lambda n: (0, 0, 0)), cvec(Cout), cvec(Cout),
            pl.BlockSpec((9, Cout, Cout), lambda n: (0, 0, 0)), cvec(Cout), cvec(Cout),
            cmat(1, HW), cmat(1, HW),                     # column masks
            cmat(Cout, Cr), cmat(Cout, Cr),               # SE fc (W1^T, W2)
            cmat(Cout, Cr), cmat(Cout, Cr),               # FCA fc (W1^T, W2)
            cmat(Cout, HW),                               # d_eff (folded pool+DCT)
            cmat(Cout, Cin), cvec(Cout),                  # residual 1x1
        ],
        out_specs=pl.BlockSpec((1, Cout, HW), lambda n: (n, 0, 0)),
        scratch_shapes=[
            pltpu.VMEM((Cin, HW + 2 * PADL), jnp.bfloat16),   # conv1 line buffer
            pltpu.VMEM((Cout, HW + 2 * PADL), jnp.bfloat16),  # conv2/3 line buffer
        ],
        compiler_params=pltpu.CompilerParams(
            dimension_semantics=("parallel",)),           # N=2 steps -> v7x 2 TCs
    )(x,
      w1, p["scale1"].reshape(Cout, 1), p["bias1"].reshape(Cout, 1),
      w2, p["scale2"].reshape(Cout, 1), p["bias2"].reshape(Cout, 1),
      w3, p["scale3"].reshape(Cout, 1), p["bias3"].reshape(Cout, 1),
      ml, mr,
      p["se_w1t"], p["se_w2t"].T, p["fca_w1t"], p["fca_w2t"].T, d_eff,
      p["res_w"].T, p["res_b"].reshape(Cout, 1))

    return out_flat.reshape(N, Cout, H, W)                # free reshape


# ------------------------ parameter / filter set-up --------------------------

def get_freq_indices_top(num_freq):
    all_top_x = [0, 0, 6, 0, 0, 1, 1, 4, 5, 1, 3, 0, 0, 0, 3, 2,
                 4, 6, 3, 5, 5, 2, 6, 5, 5, 3, 3, 4, 2, 2, 6, 1]
    all_top_y = [0, 1, 0, 5, 2, 0, 2, 0, 0, 6, 0, 4, 6, 3, 5, 2,
                 6, 3, 3, 3, 5, 1, 1, 2, 4, 2, 1, 1, 3, 0, 5, 3]
    return all_top_x[:num_freq], all_top_y[:num_freq]


def build_dct_filter(tile_x, tile_y, mapper_x, mapper_y, channel):
    def bf(pos, freq, POS):
        r = math.cos(math.pi * freq * (pos + 0.5) / POS) / math.sqrt(POS)
        return r if freq == 0 else r * math.sqrt(2)
    filt = np.zeros((channel, tile_x, tile_y), np.float32)
    c_part = channel // len(mapper_x)
    for i, (ux, vy) in enumerate(zip(mapper_x, mapper_y)):
        for tx in range(tile_x):
            for ty in range(tile_y):
                filt[i * c_part:(i + 1) * c_part, tx, ty] = (
                    bf(tx, ux, tile_x) * bf(ty, vy, tile_y))
    return filt


def adaptive_pool_matrix(out_size, in_size):
    # Exact torch adaptive_avg_pool2d binning as a linear operator.
    P = np.zeros((out_size, in_size), np.float32)
    for i in range(out_size):
        start = (i * in_size) // out_size
        end = -(-((i + 1) * in_size) // out_size)
        P[i, start:end] = 1.0 / (end - start)
    return P


class KeyGen:
    def __init__(self, key):
        self.key = key

    def __call__(self):
        self.key, sub = jax.random.split(self.key)
        return sub


def init_params(key, cin, cout, H, W, reduction=16, dct_h=7, dct_w=7,
                bn_eps=1e-5):
    kg = KeyGen(key)

    def nrm(shape, s):
        return s * jax.random.normal(kg(), shape, jnp.float32)

    p = {}
    ci = cin
    for i in (1, 2, 3):
        w = nrm((3, 3, ci, cout), 0.05)          # HWIO
        b = nrm((cout,), 0.05)
        gamma = 1.0 + nrm((cout,), 0.1)
        beta = nrm((cout,), 0.1)
        rmean = nrm((cout,), 0.1)
        rvar = 1.0 + jnp.abs(nrm((cout,), 0.1))
        scale = gamma / jnp.sqrt(rvar + bn_eps)   # eval-mode BN folded
        p[f"w{i}"] = w
        p[f"scale{i}"] = scale
        p[f"bias{i}"] = (b - rmean) * scale + beta
        ci = cout

    cr = cout // reduction
    p["se_w1t"] = nrm((cout, cr), 1.0 / math.sqrt(cout))
    p["se_w2t"] = nrm((cr, cout), 1.0 / math.sqrt(max(cr, 1)))
    p["fca_w1t"] = nrm((cout, cr), 1.0 / math.sqrt(cout))
    p["fca_w2t"] = nrm((cr, cout), 1.0 / math.sqrt(max(cr, 1)))

    mx, my = get_freq_indices_top(16)
    mx = [t * (dct_h // 7) for t in mx]
    my = [t * (dct_w // 7) for t in my]
    dct = jnp.asarray(build_dct_filter(dct_h, dct_w, mx, my, cout))
    P_h = jnp.asarray(adaptive_pool_matrix(dct_h, H))
    P_w = jnp.asarray(adaptive_pool_matrix(dct_w, W))
    p["dct"], p["P_h"], p["P_w"] = dct, P_h, P_w
    # fold adaptive-pool + DCT weighting into one (C, H, W) spatial filter
    p["d_eff"] = jnp.einsum("ph,cpq,qw->chw", P_h, dct, P_w)

    # residual 1x1 conv (present because in_channels != out_channels)
    p["res_w"] = nrm((cin, cout), 0.1)
    p["res_b"] = nrm((cout,), 0.05)
    return p


# ------------------------------- reference -----------------------------------

def reference_forward(x_nchw, p, eps=1e-5):
    hi = jax.lax.Precision.HIGHEST            # clean f32 baseline
    x = jnp.transpose(x_nchw, (0, 2, 3, 1))

    def conv(xx, w, scale, bias, act):
        y = jax.lax.conv_general_dilated(
            xx, w, (1, 1), ((1, 1), (1, 1)),
            dimension_numbers=("NHWC", "HWIO", "NHWC"), precision=hi)
        y = y * scale[None, None, None, :] + bias[None, None, None, :]
        if act == "relu":
            y = jnp.maximum(y, 0.0)
        elif act == "silu":
            y = y * jax.nn.sigmoid(y)
        return y

    out = conv(x, p["w1"], p["scale1"], p["bias1"], "relu")
    out = conv(out, p["w2"], p["scale2"], p["bias2"], "silu")
    out = conv(out, p["w3"], p["scale3"], p["bias3"], "none")
    # SE
    m = jnp.mean(out, axis=(1, 2))
    s = jax.nn.sigmoid(jnp.maximum(m @ p["se_w1t"], 0.0) @ p["se_w2t"])
    out = out * s[:, None, None, :]
    # FCA (the "torch way": adaptive pool then DCT-weighted sum)
    pooled = jnp.einsum("ph,nhwc,qw->npqc", p["P_h"], out, p["P_w"], precision=hi)
    y = jnp.sum(pooled * jnp.transpose(p["dct"], (1, 2, 0))[None], axis=(1, 2))
    g = jax.nn.sigmoid(jnp.maximum(y @ p["fca_w1t"], 0.0) @ p["fca_w2t"])
    out = out * g[:, None, None, :]
    # residual + instance norm + relu
    r = jnp.einsum("nhwi,io->nhwo", x, p["res_w"], precision=hi) + p["res_b"]
    ssum = out + r
    mean = jnp.mean(ssum, axis=(1, 2), keepdims=True)
    var = jnp.mean((ssum - mean) ** 2, axis=(1, 2), keepdims=True)
    yout = jnp.maximum((ssum - mean) * jax.lax.rsqrt(var + eps), 0.0)
    return jnp.transpose(yout, (0, 3, 1, 2))


# --------------------------------- main ---------------------------------------

if __name__ == "__main__":
    N, Cin, H, W = 2, 16, 16, 16
    Cout = 32                      # must be divisible by 16 (top16 DCT split)

    root = jax.random.PRNGKey(0)
    kx, kp = jax.random.split(root)
    x = jax.random.normal(kx, (N, Cin, H, W), jnp.float32)   # NCHW like torch
    params = init_params(kp, Cin, Cout, H, W)

    out = jax.block_until_ready(maia_block_forward(x, params))
    assert out.shape == (N, Cout, H, W)

    ref = jax.block_until_ready(reference_forward(x, params))
    # The 3x3 convs run with bf16 MXU inputs (f32 accumulate); the reference is
    # a HIGHEST-precision f32 baseline, so compare at a bf16-appropriate tol.
    if not jnp.allclose(out, ref, atol=2e-2, rtol=2e-2):
        err = float(jnp.max(jnp.abs(out - ref)))
        raise AssertionError(f"Pallas MaiaBlock mismatch, max|diff|={err}")

    print("KERNEL_OK")
</pallas_src>

<mosaic_0001>
module attributes {stable_mosaic.version = 11 : i64} {
  func.func @kernel(%arg0: i32, %arg1: memref<1x16x256xf32, #tpu.memory_space<vmem>>, %arg2: memref<9x32x16xbf16, #tpu.memory_space<vmem>>, %arg3: memref<32x1xf32, #tpu.memory_space<vmem>>, %arg4: memref<32x1xf32, #tpu.memory_space<vmem>>, %arg5: memref<9x32x32xbf16, #tpu.memory_space<vmem>>, %arg6: memref<32x1xf32, #tpu.memory_space<vmem>>, %arg7: memref<32x1xf32, #tpu.memory_space<vmem>>, %arg8: memref<9x32x32xbf16, #tpu.memory_space<vmem>>, %arg9: memref<32x1xf32, #tpu.memory_space<vmem>>, %arg10: memref<32x1xf32, #tpu.memory_space<vmem>>, %arg11: memref<1x256xbf16, #tpu.memory_space<vmem>>, %arg12: memref<1x256xbf16, #tpu.memory_space<vmem>>, %arg13: memref<32x2xf32, #tpu.memory_space<vmem>>, %arg14: memref<32x2xf32, #tpu.memory_space<vmem>>, %arg15: memref<32x2xf32, #tpu.memory_space<vmem>>, %arg16: memref<32x2xf32, #tpu.memory_space<vmem>>, %arg17: memref<32x256xf32, #tpu.memory_space<vmem>>, %arg18: memref<32x16xf32, #tpu.memory_space<vmem>>, %arg19: memref<32x1xf32, #tpu.memory_space<vmem>>, %arg20: memref<1x32x256xf32, #tpu.memory_space<vmem>>, %arg21: memref<16x290xbf16, #tpu.memory_space<vmem>>, %arg22: memref<32x290xbf16, #tpu.memory_space<vmem>>) attributes {dimension_semantics = [#tpu.dimension_semantics<parallel>], iteration_bounds = array<i64: 2>, scalar_prefetch = 0 : i64, scratch_operands = 2 : i64, tpu.core_type = #tpu.core_type<tc>, window_params = [{transform_indices = @transform_0, window_bounds = array<i64: 1, 16, 256>}, {pipeline_mode = #tpu.pipeline_mode<synchronous>, transform_indices = @transform_1, window_bounds = array<i64: 9, 32, 16>}, {pipeline_mode = #tpu.pipeline_mode<synchronous>, transform_indices = @transform_2, window_bounds = array<i64: 32, 1>}, {pipeline_mode = #tpu.pipeline_mode<synchronous>, transform_indices = @transform_3, window_bounds = array<i64: 32, 1>}, {pipeline_mode = #tpu.pipeline_mode<synchronous>, transform_indices = @transform_4, window_bounds = array<i64: 9, 32, 32>}, {pipeline_mode = #tpu.pipeline_mode<synchronous>, transform_indices = @transform_5, window_bounds = array<i64: 32, 1>}, {pipeline_mode = #tpu.pipeline_mode<synchronous>, transform_indices = @transform_6, window_bounds = array<i64: 32, 1>}, {pipeline_mode = #tpu.pipeline_mode<synchronous>, transform_indices = @transform_7, window_bounds = array<i64: 9, 32, 32>}, {pipeline_mode = #tpu.pipeline_mode<synchronous>, transform_indices = @transform_8, window_bounds = array<i64: 32, 1>}, {pipeline_mode = #tpu.pipeline_mode<synchronous>, transform_indices = @transform_9, window_bounds = array<i64: 32, 1>}, {pipeline_mode = #tpu.pipeline_mode<synchronous>, transform_indices = @transform_10, window_bounds = array<i64: 1, 256>}, {pipeline_mode = #tpu.pipeline_mode<synchronous>, transform_indices = @transform_11, window_bounds = array<i64: 1, 256>}, {pipeline_mode = #tpu.pipeline_mode<synchronous>, transform_indices = @transform_12, window_bounds = array<i64: 32, 2>}, {pipeline_mode = #tpu.pipeline_mode<synchronous>, transform_indices = @transform_13, window_bounds = array<i64: 32, 2>}, {pipeline_mode = #tpu.pipeline_mode<synchronous>, transform_indices = @transform_14, window_bounds = array<i64: 32, 2>}, {pipeline_mode = #tpu.pipeline_mode<synchronous>, transform_indices = @transform_15, window_bounds = array<i64: 32, 2>}, {pipeline_mode = #tpu.pipeline_mode<synchronous>, transform_indices = @transform_16, window_bounds = array<i64: 32, 256>}, {pipeline_mode = #tpu.pipeline_mode<synchronous>, transform_indices = @transform_17, window_bounds = array<i64: 32, 16>}, {pipeline_mode = #tpu.pipeline_mode<synchronous>, transform_indices = @transform_18, window_bounds = array<i64: 32, 1>}, {transform_indices = @transform_19, window_bounds = array<i64: 1, 32, 256>}]} {
    %c0 = arith.constant 0 : index
    %c0_0 = arith.constant 0 : index
    %0 = vector.load %arg11[%c0, %c0_0] : memref<1x256xbf16, #tpu.memory_space<vmem>>, vector<1x256xbf16>
    %c0_1 = arith.constant 0 : index
    %c0_2 = arith.constant 0 : index
    %1 = vector.load %arg12[%c0_1, %c0_2] : memref<1x256xbf16, #tpu.memory_space<vmem>>, vector<1x256xbf16>
    %c0_3 = arith.constant 0 : index
    %c0_4 = arith.constant 0 : index
    %c0_5 = arith.constant 0 : index
    %2 = vector.load %arg1[%c0_3, %c0_4, %c0_5] : memref<1x16x256xf32, #tpu.memory_space<vmem>>, vector<1x16x256xf32>
    %3 = vector.shape_cast %2 : vector<1x16x256xf32> to vector<16x256xf32>
    %4 = arith.truncf %3 : vector<16x256xf32> to vector<16x256xbf16>
    %cst = arith.constant 0.000000e+00 : bf16
    %5 = vector.broadcast %cst : bf16 to vector<16x17xbf16>
    %c0_6 = arith.constant 0 : index
    %c0_7 = arith.constant 0 : index
    %6 = vector.load %arg21[%c0_6, %c0_7] : memref<16x290xbf16, #tpu.memory_space<vmem>>, vector<16x17xbf16>
    tpu.vector_store %arg21[%c0_6, %c0_7], %5 {strides = array<i32>} : memref<16x290xbf16, #tpu.memory_space<vmem>>, vector<16x17xbf16>,
    %cst_8 = arith.constant 0.000000e+00 : bf16
    %7 = vector.broadcast %cst_8 : bf16 to vector<16x17xbf16>
    %c0_9 = arith.constant 0 : index
    %c273 = arith.constant 273 : index
    %8 = vector.load %arg21[%c0_9, %c273] : memref<16x290xbf16, #tpu.memory_space<vmem>>, vector<16x17xbf16>
    tpu.vector_store %arg21[%c0_9, %c273], %7 {strides = array<i32>} : memref<16x290xbf16, #tpu.memory_space<vmem>>, vector<16x17xbf16>,
    %c0_10 = arith.constant 0 : index
    %c17 = arith.constant 17 : index
    %9 = vector.load %arg21[%c0_10, %c17] : memref<16x290xbf16, #tpu.memory_space<vmem>>, vector<16x256xbf16>
    tpu.vector_store %arg21[%c0_10, %c17], %4 {strides = array<i32>} : memref<16x290xbf16, #tpu.memory_space<vmem>>, vector<16x256xbf16>,
    %cst_11 = arith.constant 0.000000e+00 : f32
    %10 = vector.broadcast %cst_11 : f32 to vector<32x256xf32>
    %c0_12 = arith.constant 0 : index
    %c0_13 = arith.constant 0 : index
    %11 = vector.load %arg21[%c0_12, %c0_13] : memref<16x290xbf16, #tpu.memory_space<vmem>>, vector<16x256xbf16>
    %12 = vector.broadcast %0 : vector<1x256xbf16> to vector<16x256xbf16>
    %13 = arith.mulf %11, %12 : vector<16x256xbf16>
    %c0_14 = arith.constant 0 : index
    %c0_15 = arith.constant 0 : index
    %c0_16 = arith.constant 0 : index
    %14 = vector.load %arg2[%c0_14, %c0_15, %c0_16] : memref<9x32x16xbf16, #tpu.memory_space<vmem>>, vector<1x32x16xbf16>
    %15 = vector.shape_cast %14 : vector<1x32x16xbf16> to vector<32x16xbf16>
    %cst_17 = arith.constant dense<0.000000e+00> : vector<32x256xf32>
    %16 = tpu.matmul %15, %13, %cst_17 {dimension_numbers = #tpu.dot_dimension_numbers<[1], [0], [0], [1], [0, 0, 1, 1], [], []>} : vector<32x16xbf16>, vector<16x256xbf16>, vector<32x256xf32> -> vector<32x256xf32>
    %17 = arith.addf %10, %16 : vector<32x256xf32>
    %c0_18 = arith.constant 0 : index
    %c1 = arith.constant 1 : index
    %18 = vector.load %arg21[%c0_18, %c1] : memref<16x290xbf16, #tpu.memory_space<vmem>>, vector<16x256xbf16>
    %c1_19 = arith.constant 1 : index
    %c0_20 = arith.constant 0 : index
    %c0_21 = arith.constant 0 : index
    %19 = vector.load %arg2[%c1_19, %c0_20, %c0_21] : memref<9x32x16xbf16, #tpu.memory_space<vmem>>, vector<1x32x16xbf16>
    %20 = vector.shape_cast %19 : vector<1x32x16xbf16> to vector<32x16xbf16>
    %cst_22 = arith.constant dense<0.000000e+00> : vector<32x256xf32>
    %21 = tpu.matmul %20, %18, %cst_22 {dimension_numbers = #tpu.dot_dimension_numbers<[1], [0], [0], [1], [0, 0, 1, 1], [], []>} : vector<32x16xbf16>, vector<16x256xbf16>, vector<32x256xf32> -> vector<32x256xf32>
    %22 = arith.addf %17, %21 : vector<32x256xf32>
    %c0_23 = arith.constant 0 : index
    %c2 = arith.constant 2 : index
    %23 = vector.load %arg21[%c0_23, %c2] : memref<16x290xbf16, #tpu.memory_space<vmem>>, vector<16x256xbf16>
    %24 = vector.broadcast %1 : vector<1x256xbf16> to vector<16x256xbf16>
    %25 = arith.mulf %23, %24 : vector<16x256xbf16>
    %c2_24 = arith.constant 2 : index
    %c0_25 = arith.constant 0 : index
    %c0_26 = arith.constant 0 : index
    %26 = vector.load %arg2[%c2_24, %c0_25, %c0_26] : memref<9x32x16xbf16, #tpu.memory_space<vmem>>, vector<1x32x16xbf16>
    %27 = vector.shape_cast %26 : vector<1x32x16xbf16> to vector<32x16xbf16>
    %cst_27 = arith.constant dense<0.000000e+00> : vector<32x256xf32>
    %28 = tpu.matmul %27, %25, %cst_27 {dimension_numbers = #tpu.dot_dimension_numbers<[1], [0], [0], [1], [0, 0, 1, 1], [], []>} : vector<32x16xbf16>, vector<16x256xbf16>, vector<32x256xf32> -> vector<32x256xf32>
    %29 = arith.addf %22, %28 : vector<32x256xf32>
    %c0_28 = arith.constant 0 : index
    %c16 = arith.constant 16 : index
    %30 = vector.load %arg21[%c0_28, %c16] : memref<16x290xbf16, #tpu.memory_space<vmem>>, vector<16x256xbf16>
    %31 = vector.broadcast %0 : vector<1x256xbf16> to vector<16x256xbf16>
    %32 = arith.mulf %30, %31 : vector<16x256xbf16>
    %c3 = arith.constant 3 : index
    %c0_29 = arith.constant 0 : index
    %c0_30 = arith.constant 0 : index
    %33 = vector.load %arg2[%c3, %c0_29, %c0_30] : memref<9x32x16xbf16, #tpu.memory_space<vmem>>, vector<1x32x16xbf16>
    %34 = vector.shape_cast %33 : vector<1x32x16xbf16> to vector<32x16xbf16>
    %cst_31 = arith.constant dense<0.000000e+00> : vector<32x256xf32>
    %35 = tpu.matmul %34, %32, %cst_31 {dimension_numbers = #tpu.dot_dimension_numbers<[1], [0], [0], [1], [0, 0, 1, 1], [], []>} : vector<32x16xbf16>, vector<16x256xbf16>, vector<32x256xf32> -> vector<32x256xf32>
    %36 = arith.addf %29, %35 : vector<32x256xf32>
    %c4 = arith.constant 4 : index
    %c0_32 = arith.constant 0 : index
    %c0_33 = arith.constant 0 : index
    %37 = vector.load %arg2[%c4, %c0_32, %c0_33] : memref<9x32x16xbf16, #tpu.memory_space<vmem>>, vector<1x32x16xbf16>
    %38 = vector.shape_cast %37 : vector<1x32x16xbf16> to vector<32x16xbf16>
    %cst_34 = arith.constant dense<0.000000e+00> : vector<32x256xf32>
    %39 = tpu.matmul %38, %4, %cst_34 {dimension_numbers = #tpu.dot_dimension_numbers<[1], [0], [0], [1], [0, 0, 1, 1], [], []>} : vector<32x16xbf16>, vector<16x256xbf16>, vector<32x256xf32> -> vector<32x256xf32>
    %40 = arith.addf %36, %39 : vector<32x256xf32>
    %c0_35 = arith.constant 0 : index
    %c18 = arith.constant 18 : index
    %41 = vector.load %arg21[%c0_35, %c18] : memref<16x290xbf16, #tpu.memory_space<vmem>>, vector<16x256xbf16>
    %42 = vector.broadcast %1 : vector<1x256xbf16> to vector<16x256xbf16>
    %43 = arith.mulf %41, %42 : vector<16x256xbf16>
    %c5 = arith.constant 5 : index
    %c0_36 = arith.constant 0 : index
    %c0_37 = arith.constant 0 : index
    %44 = vector.load %arg2[%c5, %c0_36, %c0_37] : memref<9x32x16xbf16, #tpu.memory_space<vmem>>, vector<1x32x16xbf16>
    %45 = vector.shape_cast %44 : vector<1x32x16xbf16> to vector<32x16xbf16>
    %cst_38 = arith.constant dense<0.000000e+00> : vector<32x256xf32>
    %46 = tpu.matmul %45, %43, %cst_38 {dimension_numbers = #tpu.dot_dimension_numbers<[1], [0], [0], [1], [0, 0, 1, 1], [], []>} : vector<32x16xbf16>, vector<16x256xbf16>, vector<32x256xf32> -> vector<32x256xf32>
    %47 = arith.addf %40, %46 : vector<32x256xf32>
    %c0_39 = arith.constant 0 : index
    %c32 = arith.constant 32 : index
    %48 = vector.load %arg21[%c0_39, %c32] : memref<16x290xbf16, #tpu.memory_space<vmem>>, vector<16x256xbf16>
    %49 = vector.broadcast %0 : vector<1x256xbf16> to vector<16x256xbf16>
    %50 = arith.mulf %48, %49 : vector<16x256xbf16>
    %c6 = arith.constant 6 : index
    %c0_40 = arith.constant 0 : index
    %c0_41 = arith.constant 0 : index
    %51 = vector.load %arg2[%c6, %c0_40, %c0_41] : memref<9x32x16xbf16, #tpu.memory_space<vmem>>, vector<1x32x16xbf16>
    %52 = vector.shape_cast %51 : vector<1x32x16xbf16> to vector<32x16xbf16>
    %cst_42 = arith.constant dense<0.000000e+00> : vector<32x256xf32>
    %53 = tpu.matmul %52, %50, %cst_42 {dimension_numbers = #tpu.dot_dimension_numbers<[1], [0], [0], [1], [0, 0, 1, 1], [], []>} : vector<32x16xbf16>, vector<16x256xbf16>, vector<32x256xf32> -> vector<32x256xf32>
    %54 = arith.addf %47, %53 : vector<32x256xf32>
    %c0_43 = arith.constant 0 : index
    %c33 = arith.constant 33 : index
    %55 = vector.load %arg21[%c0_43, %c33] : memref<16x290xbf16, #tpu.memory_space<vmem>>, vector<16x256xbf16>
    %c7 = arith.constant 7 : index
    %c0_44 = arith.constant 0 : index
    %c0_45 = arith.constant 0 : index
    %56 = vector.load %arg2[%c7, %c0_44, %c0_45] : memref<9x32x16xbf16, #tpu.memory_space<vmem>>, vector<1x32x16xbf16>
    %57 = vector.shape_cast %56 : vector<1x32x16xbf16> to vector<32x16xbf16>
    %cst_46 = arith.constant dense<0.000000e+00> : vector<32x256xf32>
    %58 = tpu.matmul %57, %55, %cst_46 {dimension_numbers = #tpu.dot_dimension_numbers<[1], [0], [0], [1], [0, 0, 1, 1], [], []>} : vector<32x16xbf16>, vector<16x256xbf16>, vector<32x256xf32> -> vector<32x256xf32>
    %59 = arith.addf %54, %58 : vector<32x256xf32>
    %c0_47 = arith.constant 0 : index
    %c34 = arith.constant 34 : index
    %60 = vector.load %arg21[%c0_47, %c34] : memref<16x290xbf16, #tpu.memory_space<vmem>>, vector<16x256xbf16>
    %61 = vector.broadcast %1 : vector<1x256xbf16> to vector<16x256xbf16>
    %62 = arith.mulf %60, %61 : vector<16x256xbf16>
    %c8 = arith.constant 8 : index
    %c0_48 = arith.constant 0 : index
    %c0_49 = arith.constant 0 : index
    %63 = vector.load %arg2[%c8, %c0_48, %c0_49] : memref<9x32x16xbf16, #tpu.memory_space<vmem>>, vector<1x32x16xbf16>
    %64 = vector.shape_cast %63 : vector<1x32x16xbf16> to vector<32x16xbf16>
    %cst_50 = arith.constant dense<0.000000e+00> : vector<32x256xf32>
    %65 = tpu.matmul %64, %62, %cst_50 {dimension_numbers = #tpu.dot_dimension_numbers<[1], [0], [0], [1], [0, 0, 1, 1], [], []>} : vector<32x16xbf16>, vector<16x256xbf16>, vector<32x256xf32> -> vector<32x256xf32>
    %66 = arith.addf %59, %65 : vector<32x256xf32>
    %c0_51 = arith.constant 0 : index
    %c0_52 = arith.constant 0 : index
    %67 = vector.load %arg3[%c0_51, %c0_52] : memref<32x1xf32, #tpu.memory_space<vmem>>, vector<32x1xf32>
    %68 = vector.broadcast %67 : vector<32x1xf32> to vector<32x256xf32>
    %69 = arith.mulf %66, %68 : vector<32x256xf32>
    %c0_53 = arith.constant 0 : index
    %c0_54 = arith.constant 0 : index
    %70 = vector.load %arg4[%c0_53, %c0_54] : memref<32x1xf32, #tpu.memory_space<vmem>>, vector<32x1xf32>
    %71 = vector.broadcast %70 : vector<32x1xf32> to vector<32x256xf32>
    %72 = arith.addf %69, %71 : vector<32x256xf32>
    %cst_55 = arith.constant 0.000000e+00 : f32
    %73 = vector.broadcast %cst_55 : f32 to vector<32x256xf32>
    %74 = arith.maximumf %72, %73 : vector<32x256xf32>
    %cst_56 = arith.constant 0.000000e+00 : bf16
    %75 = vector.broadcast %cst_56 : bf16 to vector<32x17xbf16>
    %c0_57 = arith.constant 0 : index
    %c0_58 = arith.constant 0 : index
    %76 = vector.load %arg22[%c0_57, %c0_58] : memref<32x290xbf16, #tpu.memory_space<vmem>>, vector<32x17xbf16>
    tpu.vector_store %arg22[%c0_57, %c0_58], %75 {strides = array<i32>} : memref<32x290xbf16, #tpu.memory_space<vmem>>, vector<32x17xbf16>,
    %cst_59 = arith.constant 0.000000e+00 : bf16
    %77 = vector.broadcast %cst_59 : bf16 to vector<32x17xbf16>
    %c0_60 = arith.constant 0 : index
    %c273_61 = arith.constant 273 : index
    %78 = vector.load %arg22[%c0_60, %c273_61] : memref<32x290xbf16, #tpu.memory_space<vmem>>, vector<32x17xbf16>
    tpu.vector_store %arg22[%c0_60, %c273_61], %77 {strides = array<i32>} : memref<32x290xbf16, #tpu.memory_space<vmem>>, vector<32x17xbf16>,
    %79 = arith.truncf %74 : vector<32x256xf32> to vector<32x256xbf16>
    %c0_62 = arith.constant 0 : index
    %c17_63 = arith.constant 17 : index
    %80 = vector.load %arg22[%c0_62, %c17_63] : memref<32x290xbf16, #tpu.memory_space<vmem>>, vector<32x256xbf16>
    tpu.vector_store %arg22[%c0_62, %c17_63], %79 {strides = array<i32>} : memref<32x290xbf16, #tpu.memory_space<vmem>>, vector<32x256xbf16>,
    %cst_64 = arith.constant 0.000000e+00 : f32
    %81 = vector.broadcast %cst_64 : f32 to vector<32x256xf32>
    %c0_65 = arith.constant 0 : index
    %c0_66 = arith.constant 0 : index
    %82 = vector.load %arg22[%c0_65, %c0_66] : memref<32x290xbf16, #tpu.memory_space<vmem>>, vector<32x256xbf16>
    %83 = vector.broadcast %0 : vector<1x256xbf16> to vector<32x256xbf16>
    %84 = arith.mulf %82, %83 : vector<32x256xbf16>
    %c0_67 = arith.constant 0 : index
    %c0_68 = arith.constant 0 : index
    %c0_69 = arith.constant 0 : index
    %85 = vector.load %arg5[%c0_67, %c0_68, %c0_69] : memref<9x32x32xbf16, #tpu.memory_space<vmem>>, vector<1x32x32xbf16>
    %86 = vector.shape_cast %85 : vector<1x32x32xbf16> to vector<32x32xbf16>
    %cst_70 = arith.constant dense<0.000000e+00> : vector<32x256xf32>
    %87 = tpu.matmul %86, %84, %cst_70 {dimension_numbers = #tpu.dot_dimension_numbers<[1], [0], [0], [1], [0, 0, 1, 1], [], []>} : vector<32x32xbf16>, vector<32x256xbf16>, vector<32x256xf32> -> vector<32x256xf32>
    %88 = arith.addf %81, %87 : vector<32x256xf32>
    %c0_71 = arith.constant 0 : index
    %c1_72 = arith.constant 1 : index
    %89 = vector.load %arg22[%c0_71, %c1_72] : memref<32x290xbf16, #tpu.memory_space<vmem>>, vector<32x256xbf16>
    %c1_73 = arith.constant 1 : index
    %c0_74 = arith.constant 0 : index
    %c0_75 = arith.constant 0 : index
    %90 = vector.load %arg5[%c1_73, %c0_74, %c0_75] : memref<9x32x32xbf16, #tpu.memory_space<vmem>>, vector<1x32x32xbf16>
    %91 = vector.shape_cast %90 : vector<1x32x32xbf16> to vector<32x32xbf16>
    %cst_76 = arith.constant dense<0.000000e+00> : vector<32x256xf32>
    %92 = tpu.matmul %91, %89, %cst_76 {dimension_numbers = #tpu.dot_dimension_numbers<[1], [0], [0], [1], [0, 0, 1, 1], [], []>} : vector<32x32xbf16>, vector<32x256xbf16>, vector<32x256xf32> -> vector<32x256xf32>
    %93 = arith.addf %88, %92 : vector<32x256xf32>
    %c0_77 = arith.constant 0 : index
    %c2_78 = arith.constant 2 : index
    %94 = vector.load %arg22[%c0_77, %c2_78] : memref<32x290xbf16, #tpu.memory_space<vmem>>, vector<32x256xbf16>
    %95 = vector.broadcast %1 : vector<1x256xbf16> to vector<32x256xbf16>
    %96 = arith.mulf %94, %95 : vector<32x256xbf16>
    %c2_79 = arith.constant 2 : index
    %c0_80 = arith.constant 0 : index
    %c0_81 = arith.constant 0 : index
    %97 = vector.load %arg5[%c2_79, %c0_80, %c0_81] : memref<9x32x32xbf16, #tpu.memory_space<vmem>>, vector<1x32x32xbf16>
    %98 = vector.shape_cast %97 : vector<1x32x32xbf16> to vector<32x32xbf16>
    %cst_82 = arith.constant dense<0.000000e+00> : vector<32x256xf32>
    %99 = tpu.matmul %98, %96, %cst_82 {dimension_numbers = #tpu.dot_dimension_numbers<[1], [0], [0], [1], [0, 0, 1, 1], [], []>} : vector<32x32xbf16>, vector<32x256xbf16>, vector<32x256xf32> -> vector<32x256xf32>
    %100 = arith.addf %93, %99 : vector<32x256xf32>
    %c0_83 = arith.constant 0 : index
    %c16_84 = arith.constant 16 : index
    %101 = vector.load %arg22[%c0_83, %c16_84] : memref<32x290xbf16, #tpu.memory_space<vmem>>, vector<32x256xbf16>
    %102 = vector.broadcast %0 : vector<1x256xbf16> to vector<32x256xbf16>
    %103 = arith.mulf %101, %102 : vector<32x256xbf16>
    %c3_85 = arith.constant 3 : index
    %c0_86 = arith.constant 0 : index
    %c0_87 = arith.constant 0 : index
    %104 = vector.load %arg5[%c3_85, %c0_86, %c0_87] : memref<9x32x32xbf16, #tpu.memory_space<vmem>>, vector<1x32x32xbf16>
    %105 = vector.shape_cast %104 : vector<1x32x32xbf16> to vector<32x32xbf16>
    %cst_88 = arith.constant dense<0.000000e+00> : vector<32x256xf32>
    %106 = tpu.matmul %105, %103, %cst_88 {dimension_numbers = #tpu.dot_dimension_numbers<[1], [0], [0], [1], [0, 0, 1, 1], [], []>} : vector<32x32xbf16>, vector<32x256xbf16>, vector<32x256xf32> -> vector<32x256xf32>
    %107 = arith.addf %100, %106 : vector<32x256xf32>
    %c4_89 = arith.constant 4 : index
    %c0_90 = arith.constant 0 : index
    %c0_91 = arith.constant 0 : index
    %108 = vector.load %arg5[%c4_89, %c0_90, %c0_91] : memref<9x32x32xbf16, #tpu.memory_space<vmem>>, vector<1x32x32xbf16>
    %109 = vector.shape_cast %108 : vector<1x32x32xbf16> to vector<32x32xbf16>
    %cst_92 = arith.constant dense<0.000000e+00> : vector<32x256xf32>
    %110 = tpu.matmul %109, %79, %cst_92 {dimension_numbers = #tpu.dot_dimension_numbers<[1], [0], [0], [1], [0, 0, 1, 1], [], []>} : vector<32x32xbf16>, vector<32x256xbf16>, vector<32x256xf32> -> vector<32x256xf32>
    %111 = arith.addf %107, %110 : vector<32x256xf32>
    %c0_93 = arith.constant 0 : index
    %c18_94 = arith.constant 18 : index
    %112 = vector.load %arg22[%c0_93, %c18_94] : memref<32x290xbf16, #tpu.memory_space<vmem>>, vector<32x256xbf16>
    %113 = vector.broadcast %1 : vector<1x256xbf16> to vector<32x256xbf16>
    %114 = arith.mulf %112, %113 : vector<32x256xbf16>
    %c5_95 = arith.constant 5 : index
    %c0_96 = arith.constant 0 : index
    %c0_97 = arith.constant 0 : index
    %115 = vector.load %arg5[%c5_95, %c0_96, %c0_97] : memref<9x32x32xbf16, #tpu.memory_space<vmem>>, vector<1x32x32xbf16>
    %116 = vector.shape_cast %115 : vector<1x32x32xbf16> to vector<32x32xbf16>
    %cst_98 = arith.constant dense<0.000000e+00> : vector<32x256xf32>
    %117 = tpu.matmul %116, %114, %cst_98 {dimension_numbers = #tpu.dot_dimension_numbers<[1], [0], [0], [1], [0, 0, 1, 1], [], []>} : vector<32x32xbf16>, vector<32x256xbf16>, vector<32x256xf32> -> vector<32x256xf32>
    %118 = arith.addf %111, %117 : vector<32x256xf32>
    %c0_99 = arith.constant 0 : index
    %c32_100 = arith.constant 32 : index
    %119 = vector.load %arg22[%c0_99, %c32_100] : memref<32x290xbf16, #tpu.memory_space<vmem>>, vector<32x256xbf16>
    %120 = vector.broadcast %0 : vector<1x256xbf16> to vector<32x256xbf16>
    %121 = arith.mulf %119, %120 : vector<32x256xbf16>
    %c6_101 = arith.constant 6 : index
    %c0_102 = arith.constant 0 : index
    %c0_103 = arith.constant 0 : index
    %122 = vector.load %arg5[%c6_101, %c0_102, %c0_103] : memref<9x32x32xbf16, #tpu.memory_space<vmem>>, vector<1x32x32xbf16>
    %123 = vector.shape_cast %122 : vector<1x32x32xbf16> to vector<32x32xbf16>
    %cst_104 = arith.constant dense<0.000000e+00> : vector<32x256xf32>
    %124 = tpu.matmul %123, %121, %cst_104 {dimension_numbers = #tpu.dot_dimension_numbers<[1], [0], [0], [1], [0, 0, 1, 1], [], []>} : vector<32x32xbf16>, vector<32x256xbf16>, vector<32x256xf32> -> vector<32x256xf32>
    %125 = arith.addf %118, %124 : vector<32x256xf32>
    %c0_105 = arith.constant 0 : index
    %c33_106 = arith.constant 33 : index
    %126 = vector.load %arg22[%c0_105, %c33_106] : memref<32x290xbf16, #tpu.memory_space<vmem>>, vector<32x256xbf16>
    %c7_107 = arith.constant 7 : index
    %c0_108 = arith.constant 0 : index
    %c0_109 = arith.constant 0 : index
    %127 = vector.load %arg5[%c7_107, %c0_108, %c0_109] : memref<9x32x32xbf16, #tpu.memory_space<vmem>>, vector<1x32x32xbf16>
    %128 = vector.shape_cast %127 : vector<1x32x32xbf16> to vector<32x32xbf16>
    %cst_110 = arith.constant dense<0.000000e+00> : vector<32x256xf32>
    %129 = tpu.matmul %128, %126, %cst_110 {dimension_numbers = #tpu.dot_dimension_numbers<[1], [0], [0], [1], [0, 0, 1, 1], [], []>} : vector<32x32xbf16>, vector<32x256xbf16>, vector<32x256xf32> -> vector<32x256xf32>
    %130 = arith.addf %125, %129 : vector<32x256xf32>
    %c0_111 = arith.constant 0 : index
    %c34_112 = arith.constant 34 : index
    %131 = vector.load %arg22[%c0_111, %c34_112] : memref<32x290xbf16, #tpu.memory_space<vmem>>, vector<32x256xbf16>
    %132 = vector.broadcast %1 : vector<1x256xbf16> to vector<32x256xbf16>
    %133 = arith.mulf %131, %132 : vector<32x256xbf16>
    %c8_113 = arith.constant 8 : index
    %c0_114 = arith.constant 0 : index
    %c0_115 = arith.constant 0 : index
    %134 = vector.load %arg5[%c8_113, %c0_114, %c0_115] : memref<9x32x32xbf16, #tpu.memory_space<vmem>>, vector<1x32x32xbf16>
    %135 = vector.shape_cast %134 : vector<1x32x32xbf16> to vector<32x32xbf16>
    %cst_116 = arith.constant dense<0.000000e+00> : vector<32x256xf32>
    %136 = tpu.matmul %135, %133, %cst_116 {dimension_numbers = #tpu.dot_dimension_numbers<[1], [0], [0], [1], [0, 0, 1, 1], [], []>} : vector<32x32xbf16>, vector<32x256xbf16>, vector<32x256xf32> -> vector<32x256xf32>
    %137 = arith.addf %130, %136 : vector<32x256xf32>
    %c0_117 = arith.constant 0 : index
    %c0_118 = arith.constant 0 : index
    %138 = vector.load %arg6[%c0_117, %c0_118] : memref<32x1xf32, #tpu.memory_space<vmem>>, vector<32x1xf32>
    %139 = vector.broadcast %138 : vector<32x1xf32> to vector<32x256xf32>
    %140 = arith.mulf %137, %139 : vector<32x256xf32>
    %c0_119 = arith.constant 0 : index
    %c0_120 = arith.constant 0 : index
    %141 = vector.load %arg7[%c0_119, %c0_120] : memref<32x1xf32, #tpu.memory_space<vmem>>, vector<32x1xf32>
    %142 = vector.broadcast %141 : vector<32x1xf32> to vector<32x256xf32>
    %143 = arith.addf %140, %142 : vector<32x256xf32>
    %144 = arith.negf %143 : vector<32x256xf32>
    %145 = math.exp %144 : vector<32x256xf32>
    %cst_121 = arith.constant 1.000000e+00 : f32
    %146 = vector.broadcast %cst_121 : f32 to vector<32x256xf32>
    %147 = arith.addf %146, %145 : vector<32x256xf32>
    %148 = arith.divf %146, %147 : vector<32x256xf32>
    %149 = arith.mulf %143, %148 : vector<32x256xf32>
    %150 = arith.truncf %149 : vector<32x256xf32> to vector<32x256xbf16>
    %c0_122 = arith.constant 0 : index
    %c17_123 = arith.constant 17 : index
    %151 = vector.load %arg22[%c0_122, %c17_123] : memref<32x290xbf16, #tpu.memory_space<vmem>>, vector<32x256xbf16>
    tpu.vector_store %arg22[%c0_122, %c17_123], %150 {strides = array<i32>} : memref<32x290xbf16, #tpu.memory_space<vmem>>, vector<32x256xbf16>,
    %cst_124 = arith.constant 0.000000e+00 : f32
    %152 = vector.broadcast %cst_124 : f32 to vector<32x256xf32>
    %c0_125 = arith.constant 0 : index
    %c0_126 = arith.constant 0 : index
    %153 = vector.load %arg22[%c0_125, %c0_126] : memref<32x290xbf16, #tpu.memory_space<vmem>>, vector<32x256xbf16>
    %154 = vector.broadcast %0 : vector<1x256xbf16> to vector<32x256xbf16>
    %155 = arith.mulf %153, %154 : vector<32x256xbf16>
    %c0_127 = arith.constant 0 : index
    %c0_128 = arith.constant 0 : index
    %c0_129 = arith.constant 0 : index
    %156 = vector.load %arg8[%c0_127, %c0_128, %c0_129] : memref<9x32x32xbf16, #tpu.memory_space<vmem>>, vector<1x32x32xbf16>
    %157 = vector.shape_cast %156 : vector<1x32x32xbf16> to vector<32x32xbf16>
    %cst_130 = arith.constant dense<0.000000e+00> : vector<32x256xf32>
    %158 = tpu.matmul %157, %155, %cst_130 {dimension_numbers = #tpu.dot_dimension_numbers<[1], [0], [0], [1], [0, 0, 1, 1], [], []>} : vector<32x32xbf16>, vector<32x256xbf16>, vector<32x256xf32> -> vector<32x256xf32>
    %159 = arith.addf %152, %158 : vector<32x256xf32>
    %c0_131 = arith.constant 0 : index
    %c1_132 = arith.constant 1 : index
    %160 = vector.load %arg22[%c0_131, %c1_132] : memref<32x290xbf16, #tpu.memory_space<vmem>>, vector<32x256xbf16>
    %c1_133 = arith.constant 1 : index
    %c0_134 = arith.constant 0 : index
    %c0_135 = arith.constant 0 : index
    %161 = vector.load %arg8[%c1_133, %c0_134, %c0_135] : memref<9x32x32xbf16, #tpu.memory_space<vmem>>, vector<1x32x32xbf16>
    %162 = vector.shape_cast %161 : vector<1x32x32xbf16> to vector<32x32xbf16>
    %cst_136 = arith.constant dense<0.000000e+00> : vector<32x256xf32>
    %163 = tpu.matmul %162, %160, %cst_136 {dimension_numbers = #tpu.dot_dimension_numbers<[1], [0], [0], [1], [0, 0, 1, 1], [], []>} : vector<32x32xbf16>, vector<32x256xbf16>, vector<32x256xf32> -> vector<32x256xf32>
    %164 = arith.addf %159, %163 : vector<32x256xf32>
    %c0_137 = arith.constant 0 : index
    %c2_138 = arith.constant 2 : index
    %165 = vector.load %arg22[%c0_137, %c2_138] : memref<32x290xbf16, #tpu.memory_space<vmem>>, vector<32x256xbf16>
    %166 = vector.broadcast %1 : vector<1x256xbf16> to vector<32x256xbf16>
    %167 = arith.mulf %165, %166 : vector<32x256xbf16>
    %c2_139 = arith.constant 2 : index
    %c0_140 = arith.constant 0 : index
    %c0_141 = arith.constant 0 : index
    %168 = vector.load %arg8[%c2_139, %c0_140, %c0_141] : memref<9x32x32xbf16, #tpu.memory_space<vmem>>, vector<1x32x32xbf16>
    %169 = vector.shape_cast %168 : vector<1x32x32xbf16> to vector<32x32xbf16>
    %cst_142 = arith.constant dense<0.000000e+00> : vector<32x256xf32>
    %170 = tpu.matmul %169, %167, %cst_142 {dimension_numbers = #tpu.dot_dimension_numbers<[1], [0], [0], [1], [0, 0, 1, 1], [], []>} : vector<32x32xbf16>, vector<32x256xbf16>, vector<32x256xf32> -> vector<32x256xf32>
    %171 = arith.addf %164, %170 : vector<32x256xf32>
    %c0_143 = arith.constant 0 : index
    %c16_144 = arith.constant 16 : index
    %172 = vector.load %arg22[%c0_143, %c16_144] : memref<32x290xbf16, #tpu.memory_space<vmem>>, vector<32x256xbf16>
    %173 = vector.broadcast %0 : vector<1x256xbf16> to vector<32x256xbf16>
    %174 = arith.mulf %172, %173 : vector<32x256xbf16>
    %c3_145 = arith.constant 3 : index
    %c0_146 = arith.constant 0 : index
    %c0_147 = arith.constant 0 : index
    %175 = vector.load %arg8[%c3_145, %c0_146, %c0_147] : memref<9x32x32xbf16, #tpu.memory_space<vmem>>, vector<1x32x32xbf16>
    %176 = vector.shape_cast %175 : vector<1x32x32xbf16> to vector<32x32xbf16>
    %cst_148 = arith.constant dense<0.000000e+00> : vector<32x256xf32>
    %177 = tpu.matmul %176, %174, %cst_148 {dimension_numbers = #tpu.dot_dimension_numbers<[1], [0], [0], [1], [0, 0, 1, 1], [], []>} : vector<32x32xbf16>, vector<32x256xbf16>, vector<32x256xf32> -> vector<32x256xf32>
    %178 = arith.addf %171, %177 : vector<32x256xf32>
    %c4_149 = arith.constant 4 : index
    %c0_150 = arith.constant 0 : index
    %c0_151 = arith.constant 0 : index
    %179 = vector.load %arg8[%c4_149, %c0_150, %c0_151] : memref<9x32x32xbf16, #tpu.memory_space<vmem>>, vector<1x32x32xbf16>
    %180 = vector.shape_cast %179 : vector<1x32x32xbf16> to vector<32x32xbf16>
    %cst_152 = arith.constant dense<0.000000e+00> : vector<32x256xf32>
    %181 = tpu.matmul %180, %150, %cst_152 {dimension_numbers = #tpu.dot_dimension_numbers<[1], [0], [0], [1], [0, 0, 1, 1], [], []>} : vector<32x32xbf16>, vector<32x256xbf16>, vector<32x256xf32> -> vector<32x256xf32>
    %182 = arith.addf %178, %181 : vector<32x256xf32>
    %c0_153 = arith.constant 0 : index
    %c18_154 = arith.constant 18 : index
    %183 = vector.load %arg22[%c0_153, %c18_154] : memref<32x290xbf16, #tpu.memory_space<vmem>>, vector<32x256xbf16>
    %184 = vector.broadcast %1 : vector<1x256xbf16> to vector<32x256xbf16>
    %185 = arith.mulf %183, %184 : vector<32x256xbf16>
    %c5_155 = arith.constant 5 : index
    %c0_156 = arith.constant 0 : index
    %c0_157 = arith.constant 0 : index
    %186 = vector.load %arg8[%c5_155, %c0_156, %c0_157] : memref<9x32x32xbf16, #tpu.memory_space<vmem>>, vector<1x32x32xbf16>
    %187 = vector.shape_cast %186 : vector<1x32x32xbf16> to vector<32x32xbf16>
    %cst_158 = arith.constant dense<0.000000e+00> : vector<32x256xf32>
    %188 = tpu.matmul %187, %185, %cst_158 {dimension_numbers = #tpu.dot_dimension_numbers<[1], [0], [0], [1], [0, 0, 1, 1], [], []>} : vector<32x32xbf16>, vector<32x256xbf16>, vector<32x256xf32> -> vector<32x256xf32>
    %189 = arith.addf %182, %188 : vector<32x256xf32>
    %c0_159 = arith.constant 0 : index
    %c32_160 = arith.constant 32 : index
    %190 = vector.load %arg22[%c0_159, %c32_160] : memref<32x290xbf16, #tpu.memory_space<vmem>>, vector<32x256xbf16>
    %191 = vector.broadcast %0 : vector<1x256xbf16> to vector<32x256xbf16>
    %192 = arith.mulf %190, %191 : vector<32x256xbf16>
    %c6_161 = arith.constant 6 : index
    %c0_162 = arith.constant 0 : index
    %c0_163 = arith.constant 0 : index
    %193 = vector.load %arg8[%c6_161, %c0_162, %c0_163] : memref<9x32x32xbf16, #tpu.memory_space<vmem>>, vector<1x32x32xbf16>
    %194 = vector.shape_cast %193 : vector<1x32x32xbf16> to vector<32x32xbf16>
    %cst_164 = arith.constant dense<0.000000e+00> : vector<32x256xf32>
    %195 = tpu.matmul %194, %192, %cst_164 {dimension_numbers = #tpu.dot_dimension_numbers<[1], [0], [0], [1], [0, 0, 1, 1], [], []>} : vector<32x32xbf16>, vector<32x256xbf16>, vector<32x256xf32> -> vector<32x256xf32>
    %196 = arith.addf %189, %195 : vector<32x256xf32>
    %c0_165 = arith.constant 0 : index
    %c33_166 = arith.constant 33 : index
    %197 = vector.load %arg22[%c0_165, %c33_166] : memref<32x290xbf16, #tpu.memory_space<vmem>>, vector<32x256xbf16>
    %c7_167 = arith.constant 7 : index
    %c0_168 = arith.constant 0 : index
    %c0_169 = arith.constant 0 : index
    %198 = vector.load %arg8[%c7_167, %c0_168, %c0_169] : memref<9x32x32xbf16, #tpu.memory_space<vmem>>, vector<1x32x32xbf16>
    %199 = vector.shape_cast %198 : vector<1x32x32xbf16> to vector<32x32xbf16>
    %cst_170 = arith.constant dense<0.000000e+00> : vector<32x256xf32>
    %200 = tpu.matmul %199, %197, %cst_170 {dimension_numbers = #tpu.dot_dimension_numbers<[1], [0], [0], [1], [0, 0, 1, 1], [], []>} : vector<32x32xbf16>, vector<32x256xbf16>, vector<32x256xf32> -> vector<32x256xf32>
    %201 = arith.addf %196, %200 : vector<32x256xf32>
    %c0_171 = arith.constant 0 : index
    %c34_172 = arith.constant 34 : index
    %202 = vector.load %arg22[%c0_171, %c34_172] : memref<32x290xbf16, #tpu.memory_space<vmem>>, vector<32x256xbf16>
    %203 = vector.broadcast %1 : vector<1x256xbf16> to vector<32x256xbf16>
    %204 = arith.mulf %202, %203 : vector<32x256xbf16>
    %c8_173 = arith.constant 8 : index
    %c0_174 = arith.constant 0 : index
    %c0_175 = arith.constant 0 : index
    %205 = vector.load %arg8[%c8_173, %c0_174, %c0_175] : memref<9x32x32xbf16, #tpu.memory_space<vmem>>, vector<1x32x32xbf16>
    %206 = vector.shape_cast %205 : vector<1x32x32xbf16> to vector<32x32xbf16>
    %cst_176 = arith.constant dense<0.000000e+00> : vector<32x256xf32>
    %207 = tpu.matmul %206, %204, %cst_176 {dimension_numbers = #tpu.dot_dimension_numbers<[1], [0], [0], [1], [0, 0, 1, 1], [], []>} : vector<32x32xbf16>, vector<32x256xbf16>, vector<32x256xf32> -> vector<32x256xf32>
    %208 = arith.addf %201, %207 : vector<32x256xf32>
    %c0_177 = arith.constant 0 : index
    %c0_178 = arith.constant 0 : index
    %209 = vector.load %arg9[%c0_177, %c0_178] : memref<32x1xf32, #tpu.memory_space<vmem>>, vector<32x1xf32>
    %210 = vector.broadcast %209 : vector<32x1xf32> to vector<32x256xf32>
    %211 = arith.mulf %208, %210 : vector<32x256xf32>
    %c0_179 = arith.constant 0 : index
    %c0_180 = arith.constant 0 : index
    %212 = vector.load %arg10[%c0_179, %c0_180] : memref<32x1xf32, #tpu.memory_space<vmem>>, vector<32x1xf32>
    %213 = vector.broadcast %212 : vector<32x1xf32> to vector<32x256xf32>
    %214 = arith.addf %211, %213 : vector<32x256xf32>
    %cst_181 = arith.constant dense<0.000000e+00> : vector<32xf32>
    %215 = vector.multi_reduction <add>, %214, %cst_181 [1] : vector<32x256xf32> to vector<32xf32>
    %216 = vector.shape_cast %215 : vector<32xf32> to vector<32x1xf32>
    %cst_182 = arith.constant 3.906250e-03 : f32
    %217 = vector.broadcast %cst_182 : f32 to vector<32x1xf32>
    %218 = arith.mulf %216, %217 : vector<32x1xf32>
    %c0_183 = arith.constant 0 : index
    %c0_184 = arith.constant 0 : index
    %219 = vector.load %arg17[%c0_183, %c0_184] : memref<32x256xf32, #tpu.memory_space<vmem>>, vector<32x256xf32>
    %220 = arith.mulf %214, %219 : vector<32x256xf32>
    %cst_185 = arith.constant dense<0.000000e+00> : vector<32xf32>
    %221 = vector.multi_reduction <add>, %220, %cst_185 [1] : vector<32x256xf32> to vector<32xf32>
    %222 = vector.shape_cast %221 : vector<32xf32> to vector<32x1xf32>
    %c0_186 = arith.constant 0 : index
    %c0_187 = arith.constant 0 : index
    %223 = vector.load %arg13[%c0_186, %c0_187] : memref<32x2xf32, #tpu.memory_space<vmem>>, vector<32x2xf32>
    %224 = vector.broadcast %218 : vector<32x1xf32> to vector<32x2xf32>
    %225 = arith.mulf %224, %223 : vector<32x2xf32>
    %cst_188 = arith.constant dense<0.000000e+00> : vector<2xf32>
    %226 = vector.multi_reduction <add>, %225, %cst_188 [0] : vector<32x2xf32> to vector<2xf32>
    %227 = vector.shape_cast %226 : vector<2xf32> to vector<1x2xf32>
    %cst_189 = arith.constant 0.000000e+00 : f32
    %228 = vector.broadcast %cst_189 : f32 to vector<1x2xf32>
    %229 = arith.maximumf %227, %228 : vector<1x2xf32>
    %c0_190 = arith.constant 0 : index
    %c0_191 = arith.constant 0 : index
    %230 = vector.load %arg14[%c0_190, %c0_191] : memref<32x2xf32, #tpu.memory_space<vmem>>, vector<32x2xf32>
    %231 = vector.broadcast %229 : vector<1x2xf32> to vector<32x2xf32>
    %232 = arith.mulf %230, %231 : vector<32x2xf32>
    %cst_192 = arith.constant dense<0.000000e+00> : vector<32xf32>
    %233 = vector.multi_reduction <add>, %232, %cst_192 [1] : vector<32x2xf32> to vector<32xf32>
    %234 = vector.shape_cast %233 : vector<32xf32> to vector<32x1xf32>
    %235 = arith.negf %234 : vector<32x1xf32>
    %236 = math.exp %235 : vector<32x1xf32>
    %cst_193 = arith.constant 1.000000e+00 : f32
    %237 = vector.broadcast %cst_193 : f32 to vector<32x1xf32>
    %238 = arith.addf %237, %236 : vector<32x1xf32>
    %239 = arith.divf %237, %238 : vector<32x1xf32>
    %240 = arith.mulf %222, %239 : vector<32x1xf32>
    %c0_194 = arith.constant 0 : index
    %c0_195 = arith.constant 0 : index
    %241 = vector.load %arg15[%c0_194, %c0_195] : memref<32x2xf32, #tpu.memory_space<vmem>>, vector<32x2xf32>
    %242 = vector.broadcast %240 : vector<32x1xf32> to vector<32x2xf32>
    %243 = arith.mulf %242, %241 : vector<32x2xf32>
    %cst_196 = arith.constant dense<0.000000e+00> : vector<2xf32>
    %244 = vector.multi_reduction <add>, %243, %cst_196 [0] : vector<32x2xf32> to vector<2xf32>
    %245 = vector.shape_cast %244 : vector<2xf32> to vector<1x2xf32>
    %cst_197 = arith.constant 0.000000e+00 : f32
    %246 = vector.broadcast %cst_197 : f32 to vector<1x2xf32>
    %247 = arith.maximumf %245, %246 : vector<1x2xf32>
    %c0_198 = arith.constant 0 : index
    %c0_199 = arith.constant 0 : index
    %248 = vector.load %arg16[%c0_198, %c0_199] : memref<32x2xf32, #tpu.memory_space<vmem>>, vector<32x2xf32>
    %249 = vector.broadcast %247 : vector<1x2xf32> to vector<32x2xf32>
    %250 = arith.mulf %248, %249 : vector<32x2xf32>
    %cst_200 = arith.constant dense<0.000000e+00> : vector<32xf32>
    %251 = vector.multi_reduction <add>, %250, %cst_200 [1] : vector<32x2xf32> to vector<32xf32>
    %252 = vector.shape_cast %251 : vector<32xf32> to vector<32x1xf32>
    %253 = arith.negf %252 : vector<32x1xf32>
    %254 = math.exp %253 : vector<32x1xf32>
    %cst_201 = arith.constant 1.000000e+00 : f32
    %255 = vector.broadcast %cst_201 : f32 to vector<32x1xf32>
    %256 = arith.addf %255, %254 : vector<32x1xf32>
    %257 = arith.divf %255, %256 : vector<32x1xf32>
    %258 = arith.mulf %239, %257 : vector<32x1xf32>
    %259 = vector.broadcast %258 : vector<32x1xf32> to vector<32x256xf32>
    %260 = arith.mulf %214, %259 : vector<32x256xf32>
    %c0_202 = arith.constant 0 : index
    %c0_203 = arith.constant 0 : index
    %261 = vector.load %arg18[%c0_202, %c0_203] : memref<32x16xf32, #tpu.memory_space<vmem>>, vector<32x16xf32>
    %cst_204 = arith.constant 0.000000e+00 : f32
    %262 = vector.broadcast %cst_204 : f32 to vector<32x256xf32>
    %263 = vector.extract_strided_slice %261 {offsets = [0, 0], sizes = [32, 1], strides = [1, 1]} : vector<32x16xf32> to vector<32x1xf32>
    %264 = vector.extract_strided_slice %3 {offsets = [0, 0], sizes = [1, 256], strides = [1, 1]} : vector<16x256xf32> to vector<1x256xf32>
    %265 = vector.broadcast %263 : vector<32x1xf32> to vector<32x256xf32>
    %266 = vector.broadcast %264 : vector<1x256xf32> to vector<32x256xf32>
    %267 = arith.mulf %265, %266 : vector<32x256xf32>
    %268 = arith.addf %262, %267 : vector<32x256xf32>
    %269 = vector.extract_strided_slice %261 {offsets = [0, 1], sizes = [32, 1], strides = [1, 1]} : vector<32x16xf32> to vector<32x1xf32>
    %270 = vector.extract_strided_slice %3 {offsets = [1, 0], sizes = [1, 256], strides = [1, 1]} : vector<16x256xf32> to vector<1x256xf32>
    %271 = vector.broadcast %269 : vector<32x1xf32> to vector<32x256xf32>
    %272 = vector.broadcast %270 : vector<1x256xf32> to vector<32x256xf32>
    %273 = arith.mulf %271, %272 : vector<32x256xf32>
    %274 = arith.addf %268, %273 : vector<32x256xf32>
    %275 = vector.extract_strided_slice %261 {offsets = [0, 2], sizes = [32, 1], strides = [1, 1]} : vector<32x16xf32> to vector<32x1xf32>
    %276 = vector.extract_strided_slice %3 {offsets = [2, 0], sizes = [1, 256], strides = [1, 1]} : vector<16x256xf32> to vector<1x256xf32>
    %277 = vector.broadcast %275 : vector<32x1xf32> to vector<32x256xf32>
    %278 = vector.broadcast %276 : vector<1x256xf32> to vector<32x256xf32>
    %279 = arith.mulf %277, %278 : vector<32x256xf32>
    %280 = arith.addf %274, %279 : vector<32x256xf32>
    %281 = vector.extract_strided_slice %261 {offsets = [0, 3], sizes = [32, 1], strides = [1, 1]} : vector<32x16xf32> to vector<32x1xf32>
    %282 = vector.extract_strided_slice %3 {offsets = [3, 0], sizes = [1, 256], strides = [1, 1]} : vector<16x256xf32> to vector<1x256xf32>
    %283 = vector.broadcast %281 : vector<32x1xf32> to vector<32x256xf32>
    %284 = vector.broadcast %282 : vector<1x256xf32> to vector<32x256xf32>
    %285 = arith.mulf %283, %284 : vector<32x256xf32>
    %286 = arith.addf %280, %285 : vector<32x256xf32>
    %287 = vector.extract_strided_slice %261 {offsets = [0, 4], sizes = [32, 1], strides = [1, 1]} : vector<32x16xf32> to vector<32x1xf32>
    %288 = vector.extract_strided_slice %3 {offsets = [4, 0], sizes = [1, 256], strides = [1, 1]} : vector<16x256xf32> to vector<1x256xf32>
    %289 = vector.broadcast %287 : vector<32x1xf32> to vector<32x256xf32>
    %290 = vector.broadcast %288 : vector<1x256xf32> to vector<32x256xf32>
    %291 = arith.mulf %289, %290 : vector<32x256xf32>
    %292 = arith.addf %286, %291 : vector<32x256xf32>
    %293 = vector.extract_strided_slice %261 {offsets = [0, 5], sizes = [32, 1], strides = [1, 1]} : vector<32x16xf32> to vector<32x1xf32>
    %294 = vector.extract_strided_slice %3 {offsets = [5, 0], sizes = [1, 256], strides = [1, 1]} : vector<16x256xf32> to vector<1x256xf32>
    %295 = vector.broadcast %293 : vector<32x1xf32> to vector<32x256xf32>
    %296 = vector.broadcast %294 : vector<1x256xf32> to vector<32x256xf32>
    %297 = arith.mulf %295, %296 : vector<32x256xf32>
    %298 = arith.addf %292, %297 : vector<32x256xf32>
    %299 = vector.extract_strided_slice %261 {offsets = [0, 6], sizes = [32, 1], strides = [1, 1]} : vector<32x16xf32> to vector<32x1xf32>
    %300 = vector.extract_strided_slice %3 {offsets = [6, 0], sizes = [1, 256], strides = [1, 1]} : vector<16x256xf32> to vector<1x256xf32>
    %301 = vector.broadcast %299 : vector<32x1xf32> to vector<32x256xf32>
    %302 = vector.broadcast %300 : vector<1x256xf32> to vector<32x256xf32>
    %303 = arith.mulf %301, %302 : vector<32x256xf32>
    %304 = arith.addf %298, %303 : vector<32x256xf32>
    %305 = vector.extract_strided_slice %261 {offsets = [0, 7], sizes = [32, 1], strides = [1, 1]} : vector<32x16xf32> to vector<32x1xf32>
    %306 = vector.extract_strided_slice %3 {offsets = [7, 0], sizes = [1, 256], strides = [1, 1]} : vector<16x256xf32> to vector<1x256xf32>
    %307 = vector.broadcast %305 : vector<32x1xf32> to vector<32x256xf32>
    %308 = vector.broadcast %306 : vector<1x256xf32> to vector<32x256xf32>
    %309 = arith.mulf %307, %308 : vector<32x256xf32>
    %310 = arith.addf %304, %309 : vector<32x256xf32>
    %311 = vector.extract_strided_slice %261 {offsets = [0, 8], sizes = [32, 1], strides = [1, 1]} : vector<32x16xf32> to vector<32x1xf32>
    %312 = vector.extract_strided_slice %3 {offsets = [8, 0], sizes = [1, 256], strides = [1, 1]} : vector<16x256xf32> to vector<1x256xf32>
    %313 = vector.broadcast %311 : vector<32x1xf32> to vector<32x256xf32>
    %314 = vector.broadcast %312 : vector<1x256xf32> to vector<32x256xf32>
    %315 = arith.mulf %313, %314 : vector<32x256xf32>
    %316 = arith.addf %310, %315 : vector<32x256xf32>
    %317 = vector.extract_strided_slice %261 {offsets = [0, 9], sizes = [32, 1], strides = [1, 1]} : vector<32x16xf32> to vector<32x1xf32>
    %318 = vector.extract_strided_slice %3 {offsets = [9, 0], sizes = [1, 256], strides = [1, 1]} : vector<16x256xf32> to vector<1x256xf32>
    %319 = vector.broadcast %317 : vector<32x1xf32> to vector<32x256xf32>
    %320 = vector.broadcast %318 : vector<1x256xf32> to vector<32x256xf32>
    %321 = arith.mulf %319, %320 : vector<32x256xf32>
    %322 = arith.addf %316, %321 : vector<32x256xf32>
    %323 = vector.extract_strided_slice %261 {offsets = [0, 10], sizes = [32, 1], strides = [1, 1]} : vector<32x16xf32> to vector<32x1xf32>
    %324 = vector.extract_strided_slice %3 {offsets = [10, 0], sizes = [1, 256], strides = [1, 1]} : vector<16x256xf32> to vector<1x256xf32>
    %325 = vector.broadcast %323 : vector<32x1xf32> to vector<32x256xf32>
    %326 = vector.broadcast %324 : vector<1x256xf32> to vector<32x256xf32>
    %327 = arith.mulf %325, %326 : vector<32x256xf32>
    %328 = arith.addf %322, %327 : vector<32x256xf32>
    %329 = vector.extract_strided_slice %261 {offsets = [0, 11], sizes = [32, 1], strides = [1, 1]} : vector<32x16xf32> to vector<32x1xf32>
    %330 = vector.extract_strided_slice %3 {offsets = [11, 0], sizes = [1, 256], strides = [1, 1]} : vector<16x256xf32> to vector<1x256xf32>
    %331 = vector.broadcast %329 : vector<32x1xf32> to vector<32x256xf32>
    %332 = vector.broadcast %330 : vector<1x256xf32> to vector<32x256xf32>
    %333 = arith.mulf %331, %332 : vector<32x256xf32>
    %334 = arith.addf %328, %333 : vector<32x256xf32>
    %335 = vector.extract_strided_slice %261 {offsets = [0, 12], sizes = [32, 1], strides = [1, 1]} : vector<32x16xf32> to vector<32x1xf32>
    %336 = vector.extract_strided_slice %3 {offsets = [12, 0], sizes = [1, 256], strides = [1, 1]} : vector<16x256xf32> to vector<1x256xf32>
    %337 = vector.broadcast %335 : vector<32x1xf32> to vector<32x256xf32>
    %338 = vector.broadcast %336 : vector<1x256xf32> to vector<32x256xf32>
    %339 = arith.mulf %337, %338 : vector<32x256xf32>
    %340 = arith.addf %334, %339 : vector<32x256xf32>
    %341 = vector.extract_strided_slice %261 {offsets = [0, 13], sizes = [32, 1], strides = [1, 1]} : vector<32x16xf32> to vector<32x1xf32>
    %342 = vector.extract_strided_slice %3 {offsets = [13, 0], sizes = [1, 256], strides = [1, 1]} : vector<16x256xf32> to vector<1x256xf32>
    %343 = vector.broadcast %341 : vector<32x1xf32> to vector<32x256xf32>
    %344 = vector.broadcast %342 : vector<1x256xf32> to vector<32x256xf32>
    %345 = arith.mulf %343, %344 : vector<32x256xf32>
    %346 = arith.addf %340, %345 : vector<32x256xf32>
    %347 = vector.extract_strided_slice %261 {offsets = [0, 14], sizes = [32, 1], strides = [1, 1]} : vector<32x16xf32> to vector<32x1xf32>
    %348 = vector.extract_strided_slice %3 {offsets = [14, 0], sizes = [1, 256], strides = [1, 1]} : vector<16x256xf32> to vector<1x256xf32>
    %349 = vector.broadcast %347 : vector<32x1xf32> to vector<32x256xf32>
    %350 = vector.broadcast %348 : vector<1x256xf32> to vector<32x256xf32>
    %351 = arith.mulf %349, %350 : vector<32x256xf32>
    %352 = arith.addf %346, %351 : vector<32x256xf32>
    %353 = vector.extract_strided_slice %261 {offsets = [0, 15], sizes = [32, 1], strides = [1, 1]} : vector<32x16xf32> to vector<32x1xf32>
    %354 = vector.extract_strided_slice %3 {offsets = [15, 0], sizes = [1, 256], strides = [1, 1]} : vector<16x256xf32> to vector<1x256xf32>
    %355 = vector.broadcast %353 : vector<32x1xf32> to vector<32x256xf32>
    %356 = vector.broadcast %354 : vector<1x256xf32> to vector<32x256xf32>
    %357 = arith.mulf %355, %356 : vector<32x256xf32>
    %358 = arith.addf %352, %357 : vector<32x256xf32>
    %c0_205 = arith.constant 0 : index
    %c0_206 = arith.constant 0 : index
    %359 = vector.load %arg19[%c0_205, %c0_206] : memref<32x1xf32, #tpu.memory_space<vmem>>, vector<32x1xf32>
    %360 = vector.broadcast %359 : vector<32x1xf32> to vector<32x256xf32>
    %361 = arith.addf %358, %360 : vector<32x256xf32>
    %362 = arith.addf %260, %361 : vector<32x256xf32>
    %cst_207 = arith.constant dense<0.000000e+00> : vector<32xf32>
    %363 = vector.multi_reduction <add>, %362, %cst_207 [1] : vector<32x256xf32> to vector<32xf32>
    %364 = vector.shape_cast %363 : vector<32xf32> to vector<32x1xf32>
    %cst_208 = arith.constant 3.906250e-03 : f32
    %365 = vector.broadcast %cst_208 : f32 to vector<32x1xf32>
    %366 = arith.mulf %364, %365 : vector<32x1xf32>
    %367 = vector.broadcast %366 : vector<32x1xf32> to vector<32x256xf32>
    %368 = arith.subf %362, %367 : vector<32x256xf32>
    %369 = arith.mulf %368, %368 : vector<32x256xf32>
    %cst_209 = arith.constant dense<0.000000e+00> : vector<32xf32>
    %370 = vector.multi_reduction <add>, %369, %cst_209 [1] : vector<32x256xf32> to vector<32xf32>
    %371 = vector.shape_cast %370 : vector<32xf32> to vector<32x1xf32>
    %cst_210 = arith.constant 3.906250e-03 : f32
    %372 = vector.broadcast %cst_210 : f32 to vector<32x1xf32>
    %373 = arith.mulf %371, %372 : vector<32x1xf32>
    %cst_211 = arith.constant 9.99999974E-6 : f32
    %374 = vector.broadcast %cst_211 : f32 to vector<32x1xf32>
    %375 = arith.addf %373, %374 : vector<32x1xf32>
    %376 = math.rsqrt %375 : vector<32x1xf32>
    %377 = vector.broadcast %376 : vector<32x1xf32> to vector<32x256xf32>
    %378 = arith.mulf %368, %377 : vector<32x256xf32>
    %cst_212 = arith.constant 0.000000e+00 : f32
    %379 = vector.broadcast %cst_212 : f32 to vector<32x256xf32>
    %380 = arith.maximumf %378, %379 : vector<32x256xf32>
    %c0_213 = arith.constant 0 : index
    %c0_214 = arith.constant 0 : index
    %c0_215 = arith.constant 0 : index
    %381 = vector.load %arg20[%c0_213, %c0_214, %c0_215] : memref<1x32x256xf32, #tpu.memory_space<vmem>>, vector<1x32x256xf32>
    %382 = vector.shape_cast %381 : vector<1x32x256xf32> to vector<32x256xf32>
    %383 = vector.shape_cast %380 : vector<32x256xf32> to vector<1x32x256xf32>
    tpu.vector_store %arg20[%c0_213, %c0_214, %c0_215], %383 {strides = array<i32>} : memref<1x32x256xf32, #tpu.memory_space<vmem>>, vector<1x32x256xf32>,
    return
  }
  func.func @transform_0(%arg0: i32) -> (i32, i32, i32) {
    %c0_i32 = arith.constant 0 : i32
    %c0_i32_0 = arith.constant 0 : i32
    %c0_i32_1 = arith.constant 0 : i32
    return %arg0, %c0_i32, %c0_i32_0 : i32, i32, i32
  }
  func.func @transform_1(%arg0: i32) -> (i32, i32, i32) {
    %c0_i32 = arith.constant 0 : i32
    %c0_i32_0 = arith.constant 0 : i32
    %c0_i32_1 = arith.constant 0 : i32
    %c0_i32_2 = arith.constant 0 : i32
    return %c0_i32, %c0_i32_0, %c0_i32_1 : i32, i32, i32
  }
  func.func @transform_2(%arg0: i32) -> (i32, i32) {
    %c0_i32 = arith.constant 0 : i32
    %c0_i32_0 = arith.constant 0 : i32
    %c0_i32_1 = arith.constant 0 : i32
    return %c0_i32, %c0_i32_0 : i32, i32
  }
  func.func @transform_3(%arg0: i32) -> (i32, i32) {
    %c0_i32 = arith.constant 0 : i32
    %c0_i32_0 = arith.constant 0 : i32
    %c0_i32_1 = arith.constant 0 : i32
    return %c0_i32, %c0_i32_0 : i32, i32
  }
  func.func @transform_4(%arg0: i32) -> (i32, i32, i32) {
    %c0_i32 = arith.constant 0 : i32
    %c0_i32_0 = arith.constant 0 : i32
    %c0_i32_1 = arith.constant 0 : i32
    %c0_i32_2 = arith.constant 0 : i32
    return %c0_i32, %c0_i32_0, %c0_i32_1 : i32, i32, i32
  }
  func.func @transform_5(%arg0: i32) -> (i32, i32) {
    %c0_i32 = arith.constant 0 : i32
    %c0_i32_0 = arith.constant 0 : i32
    %c0_i32_1 = arith.constant 0 : i32
    return %c0_i32, %c0_i32_0 : i32, i32
  }
  func.func @transform_6(%arg0: i32) -> (i32, i32) {
    %c0_i32 = arith.constant 0 : i32
    %c0_i32_0 = arith.constant 0 : i32
    %c0_i32_1 = arith.constant 0 : i32
    return %c0_i32, %c0_i32_0 : i32, i32
  }
  func.func @transform_7(%arg0: i32) -> (i32, i32, i32) {
    %c0_i32 = arith.constant 0 : i32
    %c0_i32_0 = arith.constant 0 : i32
    %c0_i32_1 = arith.constant 0 : i32
    %c0_i32_2 = arith.constant 0 : i32
    return %c0_i32, %c0_i32_0, %c0_i32_1 : i32, i32, i32
  }
  func.func @transform_8(%arg0: i32) -> (i32, i32) {
    %c0_i32 = arith.constant 0 : i32
    %c0_i32_0 = arith.constant 0 : i32
    %c0_i32_1 = arith.constant 0 : i32
    return %c0_i32, %c0_i32_0 : i32, i32
  }
  func.func @transform_9(%arg0: i32) -> (i32, i32) {
    %c0_i32 = arith.constant 0 : i32
    %c0_i32_0 = arith.constant 0 : i32
    %c0_i32_1 = arith.constant 0 : i32
    return %c0_i32, %c0_i32_0 : i32, i32
  }
  func.func @transform_10(%arg0: i32) -> (i32, i32) {
    %c0_i32 = arith.constant 0 : i32
    %c0_i32_0 = arith.constant 0 : i32
    %c0_i32_1 = arith.constant 0 : i32
    return %c0_i32, %c0_i32_0 : i32, i32
  }
  func.func @transform_11(%arg0: i32) -> (i32, i32) {
    %c0_i32 = arith.constant 0 : i32
    %c0_i32_0 = arith.constant 0 : i32
    %c0_i32_1 = arith.constant 0 : i32
    return %c0_i32, %c0_i32_0 : i32, i32
  }
  func.func @transform_12(%arg0: i32) -> (i32, i32) {
    %c0_i32 = arith.constant 0 : i32
    %c0_i32_0 = arith.constant 0 : i32
    %c0_i32_1 = arith.constant 0 : i32
    return %c0_i32, %c0_i32_0 : i32, i32
  }
  func.func @transform_13(%arg0: i32) -> (i32, i32) {
    %c0_i32 = arith.constant 0 : i32
    %c0_i32_0 = arith.constant 0 : i32
    %c0_i32_1 = arith.constant 0 : i32
    return %c0_i32, %c0_i32_0 : i32, i32
  }
  func.func @transform_14(%arg0: i32) -> (i32, i32) {
    %c0_i32 = arith.constant 0 : i32
    %c0_i32_0 = arith.constant 0 : i32
    %c0_i32_1 = arith.constant 0 : i32
    return %c0_i32, %c0_i32_0 : i32, i32
  }
  func.func @transform_15(%arg0: i32) -> (i32, i32) {
    %c0_i32 = arith.constant 0 : i32
    %c0_i32_0 = arith.constant 0 : i32
    %c0_i32_1 = arith.constant 0 : i32
    return %c0_i32, %c0_i32_0 : i32, i32
  }
  func.func @transform_16(%arg0: i32) -> (i32, i32) {
    %c0_i32 = arith.constant 0 : i32
    %c0_i32_0 = arith.constant 0 : i32
    %c0_i32_1 = arith.constant 0 : i32
    return %c0_i32, %c0_i32_0 : i32, i32
  }
  func.func @transform_17(%arg0: i32) -> (i32, i32) {
    %c0_i32 = arith.constant 0 : i32
    %c0_i32_0 = arith.constant 0 : i32
    %c0_i32_1 = arith.constant 0 : i32
    return %c0_i32, %c0_i32_0 : i32, i32
  }
  func.func @transform_18(%arg0: i32) -> (i32, i32) {
    %c0_i32 = arith.constant 0 : i32
    %c0_i32_0 = arith.constant 0 : i32
    %c0_i32_1 = arith.constant 0 : i32
    return %c0_i32, %c0_i32_0 : i32, i32
  }
  func.func @transform_19(%arg0: i32) -> (i32, i32, i32) {
    %c0_i32 = arith.constant 0 : i32
    %c0_i32_0 = arith.constant 0 : i32
    %c0_i32_1 = arith.constant 0 : i32
    return %arg0, %c0_i32, %c0_i32_0 : i32, i32, i32
  }
}

</mosaic_0001>

<llo_original>
// kernel: tpu_custom_call.1
$region0: #{tpu_custom_call.1}
  #allocation0 [shape = 'u32[]', space=smem, size = 0x4, offset = 0x4, fixed_abs, tag = 'smem constant byte address 0x4 - core index']
  #allocation1 [shape = 'u32[144,128]{1,0:T(1,128)}', space=vmem, size = 0x12000, scoped, tag = 'internal scratch']
  #allocation2 [shape = 'bf16[16,290]{1,0:T(8,128)(2,1)}', space=vmem, size = 0x3000, scoped, tag = 'scratch operand']
  #allocation3 [shape = 'bf16[32,290]{1,0:T(8,128)(2,1)}', space=vmem, size = 0x6000, scoped, tag = 'scratch operand']
  %s0 = inlined_call_operand.vmem [shape: f32[2,16,256], index: 0, kind: input, shape index: {}]
  %s1 = inlined_call_operand.vmem [shape: bf16[9,32,16], index: 1, kind: input, shape index: {}]
  %s2 = inlined_call_operand.vmem [shape: f32[32,1], index: 2, kind: input, shape index: {}]
  %s3 = inlined_call_operand.vmem [shape: f32[32,1], index: 3, kind: input, shape index: {}]
  %s4 = inlined_call_operand.vmem [shape: bf16[9,32,32], index: 4, kind: input, shape index: {}]
  %s5 = inlined_call_operand.vmem [shape: f32[32,1], index: 5, kind: input, shape index: {}]
  %s6 = inlined_call_operand.vmem [shape: f32[32,1], index: 6, kind: input, shape index: {}]
  %s7 = inlined_call_operand.vmem [shape: bf16[9,32,32], index: 7, kind: input, shape index: {}]
  %s8 = inlined_call_operand.vmem [shape: f32[32,1], index: 8, kind: input, shape index: {}]
  %s9 = inlined_call_operand.vmem [shape: f32[32,1], index: 9, kind: input, shape index: {}]
  %s10 = inlined_call_operand.vmem [shape: bf16[1,256], index: 10, kind: input, shape index: {}]
  %s11 = inlined_call_operand.vmem [shape: bf16[1,256], index: 11, kind: input, shape index: {}]
  %s12 = inlined_call_operand.vmem [shape: f32[32,2], index: 12, kind: input, shape index: {}]
  %s13 = inlined_call_operand.vmem [shape: f32[32,2], index: 13, kind: input, shape index: {}]
  %s14 = inlined_call_operand.vmem [shape: f32[32,2], index: 14, kind: input, shape index: {}]
  %s15 = inlined_call_operand.vmem [shape: f32[32,2], index: 15, kind: input, shape index: {}]
  %s16 = inlined_call_operand.vmem [shape: f32[32,256], index: 16, kind: input, shape index: {}]
  %s17 = inlined_call_operand.vmem [shape: f32[32,16], index: 17, kind: input, shape index: {}]
  %s18 = inlined_call_operand.vmem [shape: f32[32,1], index: 18, kind: input, shape index: {}]
  %s19 = inlined_call_operand.hbm [shape: f32[2,32,256], index: 19, kind: output, shape index: {}]
  %s20 = sld [smem:[#allocation0]]
  $region109: #{tpu_custom_call.1} parent=0
    _
  %s22 = ssub.s32 1, %s20
  %s23 = scalar_select 0, %s22, %s20
  $region1: #{tpu_custom_call.1} parent=0
    #allocation4 [shape = 'u8[65536]{0}', space=vmem, size = 0x10000, scoped, tag = 'output window, operand 0']
    #allocation5 [shape = 's32[2]{0}', space=sflag, size = 0x8, scoped, tag = 'scoped memory for tpu_custom_call.1']
    %24 = vsyncpa [#allocation5], 0
    %s25 = scalar_lea.sflag [#allocation5], 1
    %26 = vsyncpa %s25, 0
    loop: start=0, step=1, limit=4
    $region2: #{tpu_custom_call.1} parent=1 // loop_pre_header
      _
    $region3: #{tpu_custom_call.1} parent=1 // loop_header
      %s28 = sphi 0, %s32
      %p29 = scmp.ge.s32.totalorder %s28, 4
      %s38 = sphi 0, %s40
      %s41 = sphi 0, %s38
      %s42 = sphi 0, %s41
      %s58 = sphi 0, %s42
      %s62 = sphi 0, %s62
      %s64 = sphi 0, %s62
      %s65 = sphi 0, %s64
      %s79 = sphi 0, %s65
      %s83 = sphi 0, %s83
      %s85 = sphi 0, %s83
      %s86 = sphi 0, %s85
      %s100 = sphi 0, %s86
      %s104 = sphi 0, %s104
      %s106 = sphi 0, %s104
      %s107 = sphi 0, %s106
      %s121 = sphi 0, %s107
      %s125 = sphi 0, %s125
      %s127 = sphi 0, %s125
      %s128 = sphi 0, %s127
      %s142 = sphi 0, %s128
      %s146 = sphi 0, %s146
      %s148 = sphi 0, %s146
      %s149 = sphi 0, %s148
      %s163 = sphi 0, %s149
      %s167 = sphi 0, %s167
      %s169 = sphi 0, %s167
      %s170 = sphi 0, %s169
      %s184 = sphi 0, %s170
      %s188 = sphi 0, %s188
      %s190 = sphi 0, %s188
      %s191 = sphi 0, %s190
      %s205 = sphi 0, %s191
      %s209 = sphi 0, %s209
      %s211 = sphi 0, %s209
      %s212 = sphi 0, %s211
      %s226 = sphi 0, %s212
      %s230 = sphi 0, %s230
      %s232 = sphi 0, %s230
      %s233 = sphi 0, %s232
      %s247 = sphi 0, %s233
      %s251 = sphi 0, %s251
      %s253 = sphi 0, %s251
      %s254 = sphi 0, %s253
      %s268 = sphi 0, %s254
      %s272 = sphi 0, %s272
      %s274 = sphi 0, %s272
      %s275 = sphi 0, %s274
      %s289 = sphi 0, %s275
      %s293 = sphi 0, %s293
      %s295 = sphi 0, %s293
      %s296 = sphi 0, %s295
      %s310 = sphi 0, %s296
      %s314 = sphi 0, %s314
      %s316 = sphi 0, %s314
      %s317 = sphi 0, %s316
      %s331 = sphi 0, %s317
      %s335 = sphi 0, %s335
      %s337 = sphi 0, %s335
      %s338 = sphi 0, %s337
      %s352 = sphi 0, %s338
      %s356 = sphi 0, %s356
      %s358 = sphi 0, %s356
      %s359 = sphi 0, %s358
      %s373 = sphi 0, %s359
      %s377 = sphi 0, %s377
      %s379 = sphi 0, %s377
      %s380 = sphi 0, %s379
      %s394 = sphi 0, %s380
      %s398 = sphi 0, %s398
      %s400 = sphi 0, %s398
      %s401 = sphi 0, %s400
      %s415 = sphi 0, %s401
      %s419 = sphi 0, %s419
      %s421 = sphi 0, %s419
      %s422 = sphi 0, %s421
      %s436 = sphi 0, %s422
      %s442 = sphi 0, %s444
      %s445 = sphi 0, %s442
      %s446 = sphi 0, %s445
      %s462 = sphi 0, %s446
    $region4: #{tpu_custom_call.1} parent=1 // loop_header_branch
      %31 = sbr.rel (%p29) target = $region8
    $region5: #{tpu_custom_call.1} parent=1 // loop_body
      %s33 = ssub.s32 %s28, 1
      %s34 = ssub.s32 %s28, 2
      %s35 = sadd.s32 %s28, 1
      %s36 = ssub.s32 %s28, %s35
      %p37 = scmp.eq.s32.totalorder %s36, 0
      %s39 = sadd.s32 %s38, 1
      %s40 = scalar_select %p37, %s38, %s39
      %p43 = pneg %p37
      %p44 = scmp.eq.s32.totalorder %s28, 1
      %p45 = por %p43, %p44
      %p46 = scmp.ne.s32.totalorder %s38, %s41
      %p47 = scmp.eq.s32.totalorder %s28, 0
      %p48 = por %p46, %p47
      %p49 = scmp.ne.s32.totalorder %s38, %s41
      %p50 = scmp.eq.s32.totalorder %s33, 1
      %p51 = por %p49, %p50
      %p52 = scmp.ne.s32.totalorder %s41, %s42
      %p53 = scmp.eq.s32.totalorder %s33, 0
      %p54 = por %p52, %p53
      %p55 = scmp.ne.s32.totalorder %s41, %s42
      %p56 = scmp.eq.s32.totalorder %s34, 1
      %p57 = por %p55, %p56
      %p59 = scmp.ne.s32.totalorder %s42, %s58
      %p60 = scmp.eq.s32.totalorder %s34, 0
      %p61 = por %p59, %p60
      %s63 = sadd.s32 %s62, 1
      %p66 = scmp.eq.s32.totalorder %s28, 1
      %p67 = scmp.ne.s32.totalorder %s62, %s64
      %p68 = scmp.eq.s32.totalorder %s28, 0
      %p69 = por %p67, %p68
      %p70 = scmp.ne.s32.totalorder %s62, %s64
      %p71 = scmp.eq.s32.totalorder %s33, 1
      %p72 = por %p70, %p71
      %p73 = scmp.ne.s32.totalorder %s64, %s65
      %p74 = scmp.eq.s32.totalorder %s33, 0
      %p75 = por %p73, %p74
      %p76 = scmp.ne.s32.totalorder %s64, %s65
      %p77 = scmp.eq.s32.totalorder %s34, 1
      %p78 = por %p76, %p77
      %p80 = scmp.ne.s32.totalorder %s65, %s79
      %p81 = scmp.eq.s32.totalorder %s34, 0
      %p82 = por %p80, %p81
      %s84 = sadd.s32 %s83, 1
      %p87 = scmp.eq.s32.totalorder %s28, 1
      %p88 = scmp.ne.s32.totalorder %s83, %s85
      %p89 = scmp.eq.s32.totalorder %s28, 0
      %p90 = por %p88, %p89
      %p91 = scmp.ne.s32.totalorder %s83, %s85
      %p92 = scmp.eq.s32.totalorder %s33, 1
      %p93 = por %p91, %p92
      %p94 = scmp.ne.s32.totalorder %s85, %s86
      %p95 = scmp.eq.s32.totalorder %s33, 0
      %p96 = por %p94, %p95
      %p97 = scmp.ne.s32.totalorder %s85, %s86
      %p98 = scmp.eq.s32.totalorder %s34, 1
      %p99 = por %p97, %p98
      %p101 = scmp.ne.s32.totalorder %s86, %s100
      %p102 = scmp.eq.s32.totalorder %s34, 0
      %p103 = por %p101, %p102
      %s105 = sadd.s32 %s104, 1
      %p108 = scmp.eq.s32.totalorder %s28, 1
      %p109 = scmp.ne.s32.totalorder %s104, %s106
      %p110 = scmp.eq.s32.totalorder %s28, 0
      %p111 = por %p109, %p110
      %p112 = scmp.ne.s32.totalorder %s104, %s106
      %p113 = scmp.eq.s32.totalorder %s33, 1
      %p114 = por %p112, %p113
      %p115 = scmp.ne.s32.totalorder %s106, %s107
      %p116 = scmp.eq.s32.totalorder %s33, 0
      %p117 = por %p115, %p116
      %p118 = scmp.ne.s32.totalorder %s106, %s107
      %p119 = scmp.eq.s32.totalorder %s34, 1
      %p120 = por %p118, %p119
      %p122 = scmp.ne.s32.totalorder %s107, %s121
      %p123 = scmp.eq.s32.totalorder %s34, 0
      %p124 = por %p122, %p123
      %s126 = sadd.s32 %s125, 1
      %p129 = scmp.eq.s32.totalorder %s28, 1
      %p130 = scmp.ne.s32.totalorder %s125, %s127
      %p131 = scmp.eq.s32.totalorder %s28, 0
      %p132 = por %p130, %p131
      %p133 = scmp.ne.s32.totalorder %s125, %s127
      %p134 = scmp.eq.s32.totalorder %s33, 1
      %p135 = por %p133, %p134
      %p136 = scmp.ne.s32.totalorder %s127, %s128
      %p137 = scmp.eq.s32.totalorder %s33, 0
      %p138 = por %p136, %p137
      %p139 = scmp.ne.s32.totalorder %s127, %s128
      %p140 = scmp.eq.s32.totalorder %s34, 1
      %p141 = por %p139, %p140
      %p143 = scmp.ne.s32.totalorder %s128, %s142
      %p144 = scmp.eq.s32.totalorder %s34, 0
      %p145 = por %p143, %p144
      %s147 = sadd.s32 %s146, 1
      %p150 = scmp.eq.s32.totalorder %s28, 1
      %p151 = scmp.ne.s32.totalorder %s146, %s148
      %p152 = scmp.eq.s32.totalorder %s28, 0
      %p153 = por %p151, %p152
      %p154 = scmp.ne.s32.totalorder %s146, %s148
      %p155 = scmp.eq.s32.totalorder %s33, 1
      %p156 = por %p154, %p155
      %p157 = scmp.ne.s32.totalorder %s148, %s149
      %p158 = scmp.eq.s32.totalorder %s33, 0
      %p159 = por %p157, %p158
      %p160 = scmp.ne.s32.totalorder %s148, %s149
      %p161 = scmp.eq.s32.totalorder %s34, 1
      %p162 = por %p160, %p161
      %p164 = scmp.ne.s32.totalorder %s149, %s163
      %p165 = scmp.eq.s32.totalorder %s34, 0
      %p166 = por %p164, %p165
      %s168 = sadd.s32 %s167, 1
      %p171 = scmp.eq.s32.totalorder %s28, 1
      %p172 = scmp.ne.s32.totalorder %s167, %s169
      %p173 = scmp.eq.s32.totalorder %s28, 0
      %p174 = por %p172, %p173
      %p175 = scmp.ne.s32.totalorder %s167, %s169
      %p176 = scmp.eq.s32.totalorder %s33, 1
      %p177 = por %p175, %p176
      %p178 = scmp.ne.s32.totalorder %s169, %s170
      %p179 = scmp.eq.s32.totalorder %s33, 0
      %p180 = por %p178, %p179
      %p181 = scmp.ne.s32.totalorder %s169, %s170
      %p182 = scmp.eq.s32.totalorder %s34, 1
      %p183 = por %p181, %p182
      %p185 = scmp.ne.s32.totalorder %s170, %s184
      %p186 = scmp.eq.s32.totalorder %s34, 0
      %p187 = por %p185, %p186
      %s189 = sadd.s32 %s188, 1
      %p192 = scmp.eq.s32.totalorder %s28, 1
      %p193 = scmp.ne.s32.totalorder %s188, %s190
      %p194 = scmp.eq.s32.totalorder %s28, 0
      %p195 = por %p193, %p194
      %p196 = scmp.ne.s32.totalorder %s188, %s190
      %p197 = scmp.eq.s32.totalorder %s33, 1
      %p198 = por %p196, %p197
      %p199 = scmp.ne.s32.totalorder %s190, %s191
      %p200 = scmp.eq.s32.totalorder %s33, 0
      %p201 = por %p199, %p200
      %p202 = scmp.ne.s32.totalorder %s190, %s191
      %p203 = scmp.eq.s32.totalorder %s34, 1
      %p204 = por %p202, %p203
      %p206 = scmp.ne.s32.totalorder %s191, %s205
      %p207 = scmp.eq.s32.totalorder %s34, 0
      %p208 = por %p206, %p207
      %s210 = sadd.s32 %s209, 1
      %p213 = scmp.eq.s32.totalorder %s28, 1
      %p214 = scmp.ne.s32.totalorder %s209, %s211
      %p215 = scmp.eq.s32.totalorder %s28, 0
      %p216 = por %p214, %p215
      %p217 = scmp.ne.s32.totalorder %s209, %s211
      %p218 = scmp.eq.s32.totalorder %s33, 1
      %p219 = por %p217, %p218
      %p220 = scmp.ne.s32.totalorder %s211, %s212
      %p221 = scmp.eq.s32.totalorder %s33, 0
      %p222 = por %p220, %p221
      %p223 = scmp.ne.s32.totalorder %s211, %s212
      %p224 = scmp.eq.s32.totalorder %s34, 1
      %p225 = por %p223, %p224
      %p227 = scmp.ne.s32.totalorder %s212, %s226
      %p228 = scmp.eq.s32.totalorder %s34, 0
      %p229 = por %p227, %p228
      %s231 = sadd.s32 %s230, 1
      %p234 = scmp.eq.s32.totalorder %s28, 1
      %p235 = scmp.ne.s32.totalorder %s230, %s232
      %p236 = scmp.eq.s32.totalorder %s28, 0
      %p237 = por %p235, %p236
      %p238 = scmp.ne.s32.totalorder %s230, %s232
      %p239 = scmp.eq.s32.totalorder %s33, 1
      %p240 = por %p238, %p239
      %p241 = scmp.ne.s32.totalorder %s232, %s233
      %p242 = scmp.eq.s32.totalorder %s33, 0
      %p243 = por %p241, %p242
      %p244 = scmp.ne.s32.totalorder %s232, %s233
      %p245 = scmp.eq.s32.totalorder %s34, 1
      %p246 = por %p244, %p245
      %p248 = scmp.ne.s32.totalorder %s233, %s247
      %p249 = scmp.eq.s32.totalorder %s34, 0
      %p250 = por %p248, %p249
      %s252 = sadd.s32 %s251, 1
      %p255 = scmp.eq.s32.totalorder %s28, 1
      %p256 = scmp.ne.s32.totalorder %s251, %s253
      %p257 = scmp.eq.s32.totalorder %s28, 0
      %p258 = por %p256, %p257
      %p259 = scmp.ne.s32.totalorder %s251, %s253
      %p260 = scmp.eq.s32.totalorder %s33, 1
      %p261 = por %p259, %p260
      %p262 = scmp.ne.s32.totalorder %s253, %s254
      %p263 = scmp.eq.s32.totalorder %s33, 0
      %p264 = por %p262, %p263
      %p265 = scmp.ne.s32.totalorder %s253, %s254
      %p266 = scmp.eq.s32.totalorder %s34, 1
      %p267 = por %p265, %p266
      %p269 = scmp.ne.s32.totalorder %s254, %s268
      %p270 = scmp.eq.s32.totalorder %s34, 0
      %p271 = por %p269, %p270
      %s273 = sadd.s32 %s272, 1
      %p276 = scmp.eq.s32.totalorder %s28, 1
      %p277 = scmp.ne.s32.totalorder %s272, %s274
      %p278 = scmp.eq.s32.totalorder %s28, 0
      %p279 = por %p277, %p278
      %p280 = scmp.ne.s32.totalorder %s272, %s274
      %p281 = scmp.eq.s32.totalorder %s33, 1
      %p282 = por %p280, %p281
      %p283 = scmp.ne.s32.totalorder %s274, %s275
      %p284 = scmp.eq.s32.totalorder %s33, 0
      %p285 = por %p283, %p284
      %p286 = scmp.ne.s32.totalorder %s274, %s275
      %p287 = scmp.eq.s32.totalorder %s34, 1
      %p288 = por %p286, %p287
      %p290 = scmp.ne.s32.totalorder %s275, %s289
      %p291 = scmp.eq.s32.totalorder %s34, 0
      %p292 = por %p290, %p291
      %s294 = sadd.s32 %s293, 1
      %p297 = scmp.eq.s32.totalorder %s28, 1
      %p298 = scmp.ne.s32.totalorder %s293, %s295
      %p299 = scmp.eq.s32.totalorder %s28, 0
      %p300 = por %p298, %p299
      %p301 = scmp.ne.s32.totalorder %s293, %s295
      %p302 = scmp.eq.s32.totalorder %s33, 1
      %p303 = por %p301, %p302
      %p304 = scmp.ne.s32.totalorder %s295, %s296
      %p305 = scmp.eq.s32.totalorder %s33, 0
      %p306 = por %p304, %p305
      %p307 = scmp.ne.s32.totalorder %s295, %s296
      %p308 = scmp.eq.s32.totalorder %s34, 1
      %p309 = por %p307, %p308
      %p311 = scmp.ne.s32.totalorder %s296, %s310
      %p312 = scmp.eq.s32.totalorder %s34, 0
      %p313 = por %p311, %p312
      %s315 = sadd.s32 %s314, 1
      %p318 = scmp.eq.s32.totalorder %s28, 1
      %p319 = scmp.ne.s32.totalorder %s314, %s316
      %p320 = scmp.eq.s32.totalorder %s28, 0
      %p321 = por %p319, %p320
      %p322 = scmp.ne.s32.totalorder %s314, %s316
      %p323 = scmp.eq.s32.totalorder %s33, 1
      %p324 = por %p322, %p323
      %p325 = scmp.ne.s32.totalorder %s316, %s317
      %p326 = scmp.eq.s32.totalorder %s33, 0
      %p327 = por %p325, %p326
      %p328 = scmp.ne.s32.totalorder %s316, %s317
      %p329 = scmp.eq.s32.totalorder %s34, 1
      %p330 = por %p328, %p329
      %p332 = scmp.ne.s32.totalorder %s317, %s331
      %p333 = scmp.eq.s32.totalorder %s34, 0
      %p334 = por %p332, %p333
      %s336 = sadd.s32 %s335, 1
      %p339 = scmp.eq.s32.totalorder %s28, 1
      %p340 = scmp.ne.s32.totalorder %s335, %s337
      %p341 = scmp.eq.s32.totalorder %s28, 0
      %p342 = por %p340, %p341
      %p343 = scmp.ne.s32.totalorder %s335, %s337
      %p344 = scmp.eq.s32.totalorder %s33, 1
      %p345 = por %p343, %p344
      %p346 = scmp.ne.s32.totalorder %s337, %s338
      %p347 = scmp.eq.s32.totalorder %s33, 0
      %p348 = por %p346, %p347
      %p349 = scmp.ne.s32.totalorder %s337, %s338
      %p350 = scmp.eq.s32.totalorder %s34, 1
      %p351 = por %p349, %p350
      %p353 = scmp.ne.s32.totalorder %s338, %s352
      %p354 = scmp.eq.s32.totalorder %s34, 0
      %p355 = por %p353, %p354
      %s357 = sadd.s32 %s356, 1
      %p360 = scmp.eq.s32.totalorder %s28, 1
      %p361 = scmp.ne.s32.totalorder %s356, %s358
      %p362 = scmp.eq.s32.totalorder %s28, 0
      %p363 = por %p361, %p362
      %p364 = scmp.ne.s32.totalorder %s356, %s358
      %p365 = scmp.eq.s32.totalorder %s33, 1
      %p366 = por %p364, %p365
      %p367 = scmp.ne.s32.totalorder %s358, %s359
      %p368 = scmp.eq.s32.totalorder %s33, 0
      %p369 = por %p367, %p368
      %p370 = scmp.ne.s32.totalorder %s358, %s359
      %p371 = scmp.eq.s32.totalorder %s34, 1
      %p372 = por %p370, %p371
      %p374 = scmp.ne.s32.totalorder %s359, %s373
      %p375 = scmp.eq.s32.totalorder %s34, 0
      %p376 = por %p374, %p375
      %s378 = sadd.s32 %s377, 1
      %p381 = scmp.eq.s32.totalorder %s28, 1
      %p382 = scmp.ne.s32.totalorder %s377, %s379
      %p383 = scmp.eq.s32.totalorder %s28, 0
      %p384 = por %p382, %p383
      %p385 = scmp.ne.s32.totalorder %s377, %s379
      %p386 = scmp.eq.s32.totalorder %s33, 1
      %p387 = por %p385, %p386
      %p388 = scmp.ne.s32.totalorder %s379, %s380
      %p389 = scmp.eq.s32.totalorder %s33, 0
      %p390 = por %p388, %p389
      %p391 = scmp.ne.s32.totalorder %s379, %s380
      %p392 = scmp.eq.s32.totalorder %s34, 1
      %p393 = por %p391, %p392
      %p395 = scmp.ne.s32.totalorder %s380, %s394
      %p396 = scmp.eq.s32.totalorder %s34, 0
      %p397 = por %p395, %p396
      %s399 = sadd.s32 %s398, 1
      %p402 = scmp.eq.s32.totalorder %s28, 1
      %p403 = scmp.ne.s32.totalorder %s398, %s400
      %p404 = scmp.eq.s32.totalorder %s28, 0
      %p405 = por %p403, %p404
      %p406 = scmp.ne.s32.totalorder %s398, %s400
      %p407 = scmp.eq.s32.totalorder %s33, 1
      %p408 = por %p406, %p407
      %p409 = scmp.ne.s32.totalorder %s400, %s401
      %p410 = scmp.eq.s32.totalorder %s33, 0
      %p411 = por %p409, %p410
      %p412 = scmp.ne.s32.totalorder %s400, %s401
      %p413 = scmp.eq.s32.totalorder %s34, 1
      %p414 = por %p412, %p413
      %p416 = scmp.ne.s32.totalorder %s401, %s415
      %p417 = scmp.eq.s32.totalorder %s34, 0
      %p418 = por %p416, %p417
      %s420 = sadd.s32 %s419, 1
      %p423 = scmp.eq.s32.totalorder %s28, 1
      %p424 = scmp.ne.s32.totalorder %s419, %s421
      %p425 = scmp.eq.s32.totalorder %s28, 0
      %p426 = por %p424, %p425
      %p427 = scmp.ne.s32.totalorder %s419, %s421
      %p428 = scmp.eq.s32.totalorder %s33, 1
      %p429 = por %p427, %p428
      %p430 = scmp.ne.s32.totalorder %s421, %s422
      %p431 = scmp.eq.s32.totalorder %s33, 0
      %p432 = por %p430, %p431
      %p433 = scmp.ne.s32.totalorder %s421, %s422
      %p434 = scmp.eq.s32.totalorder %s34, 1
      %p435 = por %p433, %p434
      %p437 = scmp.ne.s32.totalorder %s422, %s436
      %p438 = scmp.eq.s32.totalorder %s34, 0
      %p439 = por %p437, %p438
      %s440 = ssub.s32 %s28, %s35
      %p441 = scmp.eq.s32.totalorder %s440, 0
      %s443 = sadd.s32 %s442, 1
      %s444 = scalar_select %p441, %s442, %s443
      %p447 = pneg %p441
      %p448 = scmp.eq.s32.totalorder %s28, 1
      %p449 = por %p447, %p448
      %p450 = scmp.ne.s32.totalorder %s442, %s445
      %p451 = scmp.eq.s32.totalorder %s28, 0
      %p452 = por %p450, %p451
      %p453 = scmp.ne.s32.totalorder %s442, %s445
      %p454 = scmp.eq.s32.totalorder %s33, 1
      %p455 = por %p453, %p454
      %p456 = scmp.ne.s32.totalorder %s445, %s446
      %p457 = scmp.eq.s32.totalorder %s33, 0
      %p458 = por %p456, %p457
      %p459 = scmp.ne.s32.totalorder %s445, %s446
      %p460 = scmp.eq.s32.totalorder %s34, 1
      %p461 = por %p459, %p460
      %p463 = scmp.ne.s32.totalorder %s446, %s462
      %p464 = scmp.eq.s32.totalorder %s34, 0
      %p465 = por %p463, %p464
      %p466 = scmp.le.s32.totalorder 1, %s28
      %p467 = scmp.lt.s32.totalorder %s28, 3
      %p468 = pnand %p466, %p467
      %p469 = pneg %p468
      // Predicated region
      $region9: #{tpu_custom_call.1} parent=5 // pred_check
        _
      $region10: #{tpu_custom_call.1} parent=5 // pred_check_branch
        %471 = sbr.rel (%p468) target = $region12
      $region11: #{tpu_custom_call.1} parent=5 // pred_region
        %s472 = ssub.s32 %s28, 1
        // Predicated region
        $region13: #{tpu_custom_call.1} parent=11 // pred_check
          %p473 = pneg %p75
        $region14: #{tpu_custom_call.1} parent=11 // pred_check_branch
          %475 = sbr.rel (%p473) target = $region16
        $region15: #{tpu_custom_call.1} parent=11 // pred_region
          _
        $region16: #{tpu_custom_call.1} parent=11 // pred_fallthru
          _
        // Predicated region
        $region17: #{tpu_custom_call.1} parent=11 // pred_check
          %p476 = pneg %p96
        $region18: #{tpu_custom_call.1} parent=11 // pred_check_branch
          %478 = sbr.rel (%p476) target = $region20
        $region19: #{tpu_custom_call.1} parent=11 // pred_region
          _
        $region20: #{tpu_custom_call.1} parent=11 // pred_fallthru
          _
        // Predicated region
        $region21: #{tpu_custom_call.1} parent=11 // pred_check
          %p479 = pneg %p117
        $region22: #{tpu_custom_call.1} parent=11 // pred_check_branch
          %481 = sbr.rel (%p479) target = $region24
        $region23: #{tpu_custom_call.1} parent=11 // pred_region
          _
        $region24: #{tpu_custom_call.1} parent=11 // pred_fallthru
          _
        // Predicated region
        $region25: #{tpu_custom_call.1} parent=11 // pred_check
          %p482 = pneg %p138
        $region26: #{tpu_custom_call.1} parent=11 // pred_check_branch
          %484 = sbr.rel (%p482) target = $region28
        $region27: #{tpu_custom_call.1} parent=11 // pred_region
          _
        $region28: #{tpu_custom_call.1} parent=11 // pred_fallthru
          _
        // Predicated region
        $region29: #{tpu_custom_call.1} parent=11 // pred_check
          %p485 = pneg %p159
        $region30: #{tpu_custom_call.1} parent=11 // pred_check_branch
          %487 = sbr.rel (%p485) target = $region32
        $region31: #{tpu_custom_call.1} parent=11 // pred_region
          _
        $region32: #{tpu_custom_call.1} parent=11 // pred_fallthru
          _
        // Predicated region
        $region33: #{tpu_custom_call.1} parent=11 // pred_check
          %p488 = pneg %p180
        $region34: #{tpu_custom_call.1} parent=11 // pred_check_branch
          %490 = sbr.rel (%p488) target = $region36
        $region35: #{tpu_custom_call.1} parent=11 // pred_region
          _
        $region36: #{tpu_custom_call.1} parent=11 // pred_fallthru
          _
        // Predicated region
        $region37: #{tpu_custom_call.1} parent=11 // pred_check
          %p491 = pneg %p201
        $region38: #{tpu_custom_call.1} parent=11 // pred_check_branch
          %493 = sbr.rel (%p491) target = $region40
        $region39: #{tpu_custom_call.1} parent=11 // pred_region
          _
        $region40: #{tpu_custom_call.1} parent=11 // pred_fallthru
          _
        // Predicated region
        $region41: #{tpu_custom_call.1} parent=11 // pred_check
          %p494 = pneg %p222
        $region42: #{tpu_custom_call.1} parent=11 // pred_check_branch
          %496 = sbr.rel (%p494) target = $region44
        $region43: #{tpu_custom_call.1} parent=11 // pred_region
          _
        $region44: #{tpu_custom_call.1} parent=11 // pred_fallthru
          _
        // Predicated region
        $region45: #{tpu_custom_call.1} parent=11 // pred_check
          %p497 = pneg %p243
        $region46: #{tpu_custom_call.1} parent=11 // pred_check_branch
          %499 = sbr.rel (%p497) target = $region48
        $region47: #{tpu_custom_call.1} parent=11 // pred_region
          _
        $region48: #{tpu_custom_call.1} parent=11 // pred_fallthru
          _
        // Predicated region
        $region49: #{tpu_custom_call.1} parent=11 // pred_check
          %p500 = pneg %p264
        $region50: #{tpu_custom_call.1} parent=11 // pred_check_branch
          %502 = sbr.rel (%p500) target = $region52
        $region51: #{tpu_custom_call.1} parent=11 // pred_region
          _
        $region52: #{tpu_custom_call.1} parent=11 // pred_fallthru
          _
        // Predicated region
        $region53: #{tpu_custom_call.1} parent=11 // pred_check
          %p503 = pneg %p285
        $region54: #{tpu_custom_call.1} parent=11 // pred_check_branch
          %505 = sbr.rel (%p503) target = $region56
        $region55: #{tpu_custom_call.1} parent=11 // pred_region
          _
        $region56: #{tpu_custom_call.1} parent=11 // pred_fallthru
          _
        // Predicated region
        $region57: #{tpu_custom_call.1} parent=11 // pred_check
          %p506 = pneg %p306
        $region58: #{tpu_custom_call.1} parent=11 // pred_check_branch
          %508 = sbr.rel (%p506) target = $region60
        $region59: #{tpu_custom_call.1} parent=11 // pred_region
          _
        $region60: #{tpu_custom_call.1} parent=11 // pred_fallthru
          _
        // Predicated region
        $region61: #{tpu_custom_call.1} parent=11 // pred_check
          %p509 = pneg %p327
        $region62: #{tpu_custom_call.1} parent=11 // pred_check_branch
          %511 = sbr.rel (%p509) target = $region64
        $region63: #{tpu_custom_call.1} parent=11 // pred_region
          _
        $region64: #{tpu_custom_call.1} parent=11 // pred_fallthru
          _
        // Predicated region
        $region65: #{tpu_custom_call.1} parent=11 // pred_check
          %p512 = pneg %p348
        $region66: #{tpu_custom_call.1} parent=11 // pred_check_branch
          %514 = sbr.rel (%p512) target = $region68
        $region67: #{tpu_custom_call.1} parent=11 // pred_region
          _
        $region68: #{tpu_custom_call.1} parent=11 // pred_fallthru
          _
        // Predicated region
        $region69: #{tpu_custom_call.1} parent=11 // pred_check
          %p515 = pneg %p369
        $region70: #{tpu_custom_call.1} parent=11 // pred_check_branch
          %517 = sbr.rel (%p515) target = $region72
        $region71: #{tpu_custom_call.1} parent=11 // pred_region
          _
        $region72: #{tpu_custom_call.1} parent=11 // pred_fallthru
          _
        // Predicated region
        $region73: #{tpu_custom_call.1} parent=11 // pred_check
          %p518 = pneg %p390
        $region74: #{tpu_custom_call.1} parent=11 // pred_check_branch
          %520 = sbr.rel (%p518) target = $region76
        $region75: #{tpu_custom_call.1} parent=11 // pred_region
          _
        $region76: #{tpu_custom_call.1} parent=11 // pred_fallthru
          _
        // Predicated region
        $region77: #{tpu_custom_call.1} parent=11 // pred_check
          %p521 = pneg %p411
        $region78: #{tpu_custom_call.1} parent=11 // pred_check_branch
          %523 = sbr.rel (%p521) target = $region80
        $region79: #{tpu_custom_call.1} parent=11 // pred_region
          _
        $region80: #{tpu_custom_call.1} parent=11 // pred_fallthru
          _
        // Predicated region
        $region81: #{tpu_custom_call.1} parent=11 // pred_check
          %p524 = pneg %p432
        $region82: #{tpu_custom_call.1} parent=11 // pred_check_branch
          %526 = sbr.rel (%p524) target = $region84
        $region83: #{tpu_custom_call.1} parent=11 // pred_region
          _
        $region84: #{tpu_custom_call.1} parent=11 // pred_fallthru
          _
      $region12: #{tpu_custom_call.1} parent=5 // pred_fallthru
        _
      %p527 = scmp.lt.s32.totalorder %s28, 2
      // Predicated region
      $region85: #{tpu_custom_call.1} parent=5 // pred_check
        %p528 = pneg %p527
      $region86: #{tpu_custom_call.1} parent=5 // pred_check_branch
        %530 = sbr.rel (%p528) target = $region88
      $region87: #{tpu_custom_call.1} parent=5 // pred_region
        // Predicated region
        $region89: #{tpu_custom_call.1} parent=87 // pred_check
          %p531 = pneg %p48
        $region90: #{tpu_custom_call.1} parent=87 // pred_check_branch
          %533 = sbr.rel (%p531) target = $region92
        $region91: #{tpu_custom_call.1} parent=87 // pred_region
          %p534 = scmp.lt.s32.totalorder %s28, 1
          %s535 = scalar_select %p534, %s28, 1
          %s536 = smul.addr %s535, 4
          %s537 = smul.addr %s536, 8
          %s538 = scalar_lea.vmem %s0, %s537
        $region92: #{tpu_custom_call.1} parent=87 // pred_fallthru
          _
      $region88: #{tpu_custom_call.1} parent=5 // pred_fallthru
        _
      %p539 = scmp.le.s32.totalorder 1, %s28
      %p540 = scmp.lt.s32.totalorder %s28, 3
      %p541 = pnand %p539, %p540
      %p542 = pneg %p541
      // Predicated region
      $region93: #{tpu_custom_call.1} parent=5 // pred_check
        _
      $region94: #{tpu_custom_call.1} parent=5 // pred_check_branch
        %544 = sbr.rel (%p541) target = $region96
      $region95: #{tpu_custom_call.1} parent=5 // pred_region
        %s545 = ssub.s32 %s28, 1
        %p546 = scmp.lt.s32.totalorder %s33, 1
        %s547 = scalar_select %p546, %s33, 1
        %s548 = smul.addr %s547, 4
        %s549 = smul.addr %s548, 8
        %s550 = scalar_lea.vmem %s0, %s549
        %p551 = pneg %p54
        %p552 = pneg %p51
        %p553 = pneg %p75
        %p554 = pneg %p72
        %p555 = pneg %p96
        %p556 = pneg %p93
        %p557 = pneg %p117
        %p558 = pneg %p114
        %p559 = pneg %p138
        %p560 = pneg %p135
        %p561 = pneg %p159
        %p562 = pneg %p156
        %p563 = pneg %p180
        %p564 = pneg %p177
        %p565 = pneg %p201
        %p566 = pneg %p198
        %p567 = pneg %p222
        %p568 = pneg %p219
        %p569 = pneg %p243
        %p570 = pneg %p240
        %p571 = pneg %p264
        %p572 = pneg %p261
        %p573 = pneg %p285
        %p574 = pneg %p282
        %p575 = pneg %p306
        %p576 = pneg %p303
        %p577 = pneg %p327
        %p578 = pneg %p324
        %p579 = pneg %p348
        %p580 = pneg %p345
        %p581 = pneg %p369
        %p582 = pneg %p366
        %p583 = pneg %p390
        %p584 = pneg %p387
        %p585 = pneg %p411
        %p586 = pneg %p408
        %p587 = pneg %p432
        %p588 = pneg %p429
        %p589 = pneg %p458
        %p590 = pneg %p455
        %s591 = sand.u32 %s445, 1
        %s592 = scalar_lea.sflag [#allocation5], %s591
        %s593 = sand.u32 %s445, 1
        %s594 = smul.addr %s593, 64
        %s595 = scalar_lea.vmem [#allocation4], %s594
        %p596 = scmp.lt.s32.totalorder %s33, 1
        %s597 = scalar_select %p596, %s33, 1
        %s598 = smul.addr %s597, 4
        %s599 = smul.addr %s598, 8
        %s600 = scalar_lea.vmem %s0, %s599
        %v602 = vld [vmem:[%s10] sm:$0x3]
        %v603 = vld [vmem:[%s11] sm:$0x3]
        %v604 = vld [vmem:[%s600] sm:$0xff]
        %v605 = vld [vmem:[%s600 + $0x8] sm:$0xff]
        %v606 = vld [vmem:[%s600 + $0x10] sm:$0xff]
        %v607 = vld [vmem:[%s600 + $0x18] sm:$0xff]
        %v608 = vpack.c.bf16 %v606, %v604
        %v609 = vpack.c.bf16 %v607, %v605
        %vm610 = vcmask 134144
        %611 = vst.msk [vmem:[#allocation2] sm:$0xf] %vm610, 0
        %612 = vst.msk [vmem:[#allocation2 + $0xc] sm:$0xf] %vm610, 0
        %vm613 = vcmask 273544
        %614 = vst.msk [vmem:[#allocation2 + $0x8] sm:$0xf] %vm613, 0
        %615 = vst.msk [vmem:[#allocation2 + $0x14] sm:$0xf] %vm613, 0
        %v618 = vunpack.c.l.b16 %v608
        %v619 = vunpack.c.l.b16 %v609
        %v620 = vunpack.c.h.b16 %v608
        %v621 = vunpack.c.h.b16 %v609
        %v622 = vpack.c.b16 %v619, %v618
        %v623 = vpack.c.b16 %v621, %v620
        %624 = vrot.lane.b32.xlu0 %v622, 17
        %v625 = vpop.permute.xlu0 %624
        %626 = vrot.lane.b32.xlu0 %v623, 17
        %v627 = vpop.permute.xlu0 %626
        %v628 = vrot.slane %v625, 4
        %v629 = vrot.slane %v627, 4
        %vm630 = vcmask 138240
        %v631 = vsel %vm630, %v628, %v625
        %v632 = vsel %vm630, %v629, %v627
        %vm637 = vcmask 1043592
        %vm638 = vcmask 1047556
        %vm639 = vmor %vm638, %vm637
        %640 = vst.msk [vmem:[#allocation2] sm:$0xff] %vm639, %v631
        %641 = vst.msk [vmem:[#allocation2 + $0x8] sm:$0xf] %vm610, %v628
        %642 = vst.msk [vmem:[#allocation2 + $0xc] sm:$0xff] %vm639, %v632
        %643 = vst.msk [vmem:[#allocation2 + $0x14] sm:$0xf] %vm610, %v629
        %v644 = vld [vmem:[#allocation2] sm:$0xff]
        %v645 = vld [vmem:[#allocation2 + $0xc] sm:$0xff]
        %v648 = vunpack.c.l.s4 1966171168
        %v649 = vunpack.c.0.s8 %v648
        %v650 = vlaneseq
        %v651 = vshrl.u32 %v650, 7
        %v652 = vsub.s32 %v649, %v651
        %v653 = vrot.slane %v602, %v652
        %v654 = vcombine.high %v653, %v653
        %v656 = vunpack.c.l.s4 1966171168
        %v657 = vunpack.c.0.s8 %v656
        %v658 = vlaneseq
        %v659 = vshrl.u32 %v658, 7
        %v660 = vsub.s32 %v657, %v659
        %v661 = vrot.slane %v653, %v660
        %v663 = vunpack.c.l.s4 1966171168
        %v664 = vunpack.c.0.s8 %v663
        %v665 = vlaneseq
        %v666 = vshrl.u32 %v665, 7
        %v667 = vsub.s32 %v664, %v666
        %v668 = vrot.slane %v654, %v667
        %v670 = vpack.i.b16 %v661, %v661
        %v672 = vlaneseq
        %v673 = vshrl.u32 %v672, 7
        %v674 = vsub.s32 0, %v673
        %v675 = vrot.slane %v670, %v674
        %v677 = vpack.i.b16 %v668, %v668
        %v679 = vlaneseq
        %v680 = vshrl.u32 %v679, 7
        %v681 = vsub.s32 0, %v680
        %v682 = vrot.slane %v677, %v681
        %v685 = vunpack.c.l.b16 %v675
        %v686 = vunpack.c.l.b16 %v682
        %v687 = vpack.c.b16 %v686, %v685
        %v689 = vmul.bf16 %v644, %v687
        %v690 = vmul.bf16 %v645, %v687
        %v691 = vld [vmem:[%s1] sm:$0xf]
        %v692 = vld [vmem:[%s1 + $0x4] sm:$0xf]
        %v693 = vld [vmem:[%s1 + $0x8] sm:$0xf]
        %v694 = vld [vmem:[%s1 + $0xc] sm:$0xf]
        %v695 = vld [vmem:[#allocation2 + $0x8] sm:$0xf]
        %v696 = vld [vmem:[#allocation2 + $0x14] sm:$0xf]
        %s697 = scalar_lea.vmem %s1, 16
        %v698 = vld [vmem:[%s697] sm:$0xf]
        %v699 = vld [vmem:[%s697 + $0x4] sm:$0xf]
        %v700 = vld [vmem:[%s697 + $0x8] sm:$0xf]
        %v701 = vld [vmem:[%s697 + $0xc] sm:$0xf]
        %v706 = vunpack.c.l.b16 %v698
        %v707 = vunpack.c.l.b16 %v699
        %v708 = vunpack.c.l.b16 %v700
        %v709 = vunpack.c.l.b16 %v701
        %v710 = vpack.c.b16 %v707, %v706
        %v711 = vpack.c.b16 %v709, %v708
        %v716 = vunpack.c.l.b16 %v644
        %v717 = vunpack.c.h.b16 %v644
        %v718 = vunpack.c.l.b16 %v695
        %v719 = vunpack.c.l.b16 %v645
        %v720 = vunpack.c.h.b16 %v645
        %v721 = vunpack.c.l.b16 %v696
        %v722 = vpack.c.b16 %v719, %v716
        %v723 = vpack.c.b16 %v720, %v717
        %v724 = vpack.c.b16 %v721, %v718
        %725 = vrot.lane.b32.xlu0 %v722, 127
        %v726 = vpop.permute.xlu0 %725
        %727 = vrot.lane.b32.xlu0 %v723, 127
        %v728 = vpop.permute.xlu0 %727
        %729 = vrot.lane.b32.xlu0 %v724, 127
        %v730 = vpop.permute.xlu0 %729
        %vm731 = vcmask 1039360
        %v732 = vsel %vm731, %v726, %v728
        %v733 = vsel %vm731, %v728, %v730
        %vm736 = vcmask 130048
        %v738 = vsel %vm736, %v710, 0
        %v741 = vsel %vm736, %v711, 0
        %743 = vmatprep.subr.bf16.mxu0 0
        %744 = vmatpush1.bf16.msra.mxu0 0
        %745 = vmatprep.subr.bf16.mxu0 0
        %746 = vmatpush1.bf16.msra.mxu0 0
        %747 = vmatprep.subr.bf16.mxu0 0
        %748 = vmatpush1.bf16.msra.mxu0 0
        %749 = vmatprep.subr.bf16.mxu0 0
        %750 = vmatpush1.bf16.msra.mxu0 0
        %751 = vmatprep.subr.bf16.mxu0 0
        %752 = vmatpush1.bf16.msra.mxu0 0
        %753 = vmatprep.subr.bf16.mxu0 0
        %754 = vmatpush1.bf16.msra.mxu0 0
        %755 = vmatprep.subr.bf16.mxu0 0
        %756 = vmatpush1.bf16.msra.mxu0 0
        %757 = vmatprep.subr.bf16.mxu0 %v733
        %758 = vmatpush1.bf16.msra.mxu0 %v732
        %759 = vmatprep.subr.bf16.mxu0 0
        %760 = vmatpush2.bf16.msra.mxu0 0
        %761 = vmatprep.subr.bf16.mxu0 0
        %762 = vmatpush2.bf16.msra.mxu0 0
        %763 = vmatprep.subr.bf16.mxu0 0
        %764 = vmatpush2.bf16.msra.mxu0 0
        %765 = vmatprep.subr.bf16.mxu0 0
        %766 = vmatpush2.bf16.msra.mxu0 0
        %767 = vmatprep.subr.bf16.mxu0 0
        %768 = vmatpush2.bf16.msra.mxu0 0
        %769 = vmatprep.subr.bf16.mxu0 0
        %770 = vmatpush2.bf16.msra.mxu0 0
        %771 = vmatprep.subr.bf16.mxu0 0
        %772 = vmatpush2.bf16.msra.mxu0 0
        %773 = vmatprep.subr.bf16.mxu0 0
        %774 = vmatpush2.bf16.msra.mxu0 0
        %775 = vmatprep.mubr.bf16.mxu0 0
        %776 = vmatmul.mubr.bf16.gmra.mxu0 %v738
        %v777 = vpop.f32.mrf.mxu0
        %v778 = vadd.f32 0.0, %v777
        %v779 = vpop.f32.mrf.mxu0
        %v780 = vadd.f32 0.0, %v779
        %v781 = vpop.f32.mrf.mxu0
        %v782 = vadd.f32 0.0, %v781
        %v783 = vpop.f32.mrf.mxu0
        %v784 = vadd.f32 0.0, %v783
        %785 = vmatprep.mubr.bf16.mxu0 0
        %786 = vmatmul.mubr.bf16.gmra.mxu0 %v741
        %v787 = vpop.f32.mrf.mxu0
        %v788 = vadd.f32 0.0, %v787
        %v789 = vpop.f32.mrf.mxu0
        %v790 = vadd.f32 0.0, %v789
        %v791 = vpop.f32.mrf.mxu0
        %v792 = vadd.f32 0.0, %v791
        %v793 = vpop.f32.mrf.mxu0
        %v794 = vadd.f32 0.0, %v793
        %795 = vdwg.mxu0
        %v800 = vunpack.c.l.b16 %v691
        %v801 = vunpack.c.l.b16 %v692
        %v802 = vunpack.c.l.b16 %v693
        %v803 = vunpack.c.l.b16 %v694
        %v804 = vpack.c.b16 %v801, %v800
        %v805 = vpack.c.b16 %v803, %v802
        %v808 = vunpack.c.l.b16 %v689
        %v809 = vunpack.c.h.b16 %v689
        %v810 = vunpack.c.l.b16 %v690
        %v811 = vunpack.c.h.b16 %v690
        %v812 = vpack.c.b16 %v810, %v808
        %v813 = vpack.c.b16 %v811, %v809
        %v817 = vsel %vm736, %v804, 0
        %v820 = vsel %vm736, %v805, 0
        %822 = vmatprep.subr.bf16.mxu0 0
        %823 = vmatpush1.bf16.msra.mxu0 0
        %824 = vmatprep.subr.bf16.mxu0 0
        %825 = vmatpush1.bf16.msra.mxu0 0
        %826 = vmatprep.subr.bf16.mxu0 0
        %827 = vmatpush1.bf16.msra.mxu0 0
        %828 = vmatprep.subr.bf16.mxu0 0
        %829 = vmatpush1.bf16.msra.mxu0 0
        %830 = vmatprep.subr.bf16.mxu0 0
        %831 = vmatpush1.bf16.msra.mxu0 0
        %832 = vmatprep.subr.bf16.mxu0 0
        %833 = vmatpush1.bf16.msra.mxu0 0
        %834 = vmatprep.subr.bf16.mxu0 0
        %835 = vmatpush1.bf16.msra.mxu0 0
        %836 = vmatprep.subr.bf16.mxu0 %v813
        %837 = vmatpush1.bf16.msra.mxu0 %v812
        %838 = vmatprep.subr.bf16.mxu0 0
        %839 = vmatpush2.bf16.msra.mxu0 0
        %840 = vmatprep.subr.bf16.mxu0 0
        %841 = vmatpush2.bf16.msra.mxu0 0
        %842 = vmatprep.subr.bf16.mxu0 0
        %843 = vmatpush2.bf16.msra.mxu0 0
        %844 = vmatprep.subr.bf16.mxu0 0
        %845 = vmatpush2.bf16.msra.mxu0 0
        %846 = vmatprep.subr.bf16.mxu0 0
        %847 = vmatpush2.bf16.msra.mxu0 0
        %848 = vmatprep.subr.bf16.mxu0 0
        %849 = vmatpush2.bf16.msra.mxu0 0
        %850 = vmatprep.subr.bf16.mxu0 0
        %851 = vmatpush2.bf16.msra.mxu0 0
        %852 = vmatprep.subr.bf16.mxu0 0
        %853 = vmatpush2.bf16.msra.mxu0 0
        %854 = vmatprep.mubr.bf16.mxu0 0
        %855 = vmatmul.mubr.bf16.gmra.mxu0 %v817
        %v856 = vpop.f32.mrf.mxu0
        %v857 = vadd.f32 %v778, %v856
        %v858 = vpop.f32.mrf.mxu0
        %v859 = vadd.f32 %v780, %v858
        %v860 = vpop.f32.mrf.mxu0
        %v861 = vadd.f32 %v782, %v860
        %v862 = vpop.f32.mrf.mxu0
        %v863 = vadd.f32 %v784, %v862
        %864 = vmatprep.mubr.bf16.mxu0 0
        %865 = vmatmul.mubr.bf16.gmra.mxu0 %v820
        %v866 = vpop.f32.mrf.mxu0
        %v867 = vadd.f32 %v788, %v866
        %v868 = vpop.f32.mrf.mxu0
        %v869 = vadd.f32 %v790, %v868
        %v870 = vpop.f32.mrf.mxu0
        %v871 = vadd.f32 %v792, %v870
        %v872 = vpop.f32.mrf.mxu0
        %v873 = vadd.f32 %v794, %v872
        %874 = vdwg.mxu0
        %v877 = vunpack.c.l.s4 1966171168
        %v878 = vunpack.c.0.s8 %v877
        %v879 = vlaneseq
        %v880 = vshrl.u32 %v879, 7
        %v881 = vsub.s32 %v878, %v880
        %v882 = vrot.slane %v603, %v881
        %v883 = vcombine.high %v882, %v882
        %v885 = vunpack.c.l.s4 1966171168
        %v886 = vunpack.c.0.s8 %v885
        %v887 = vlaneseq
        %v888 = vshrl.u32 %v887, 7
        %v889 = vsub.s32 %v886, %v888
        %v890 = vrot.slane %v882, %v889
        %v892 = vunpack.c.l.s4 1966171168
        %v893 = vunpack.c.0.s8 %v892
        %v894 = vlaneseq
        %v895 = vshrl.u32 %v894, 7
        %v896 = vsub.s32 %v893, %v895
        %v897 = vrot.slane %v883, %v896
        %v899 = vpack.i.b16 %v890, %v890
        %v901 = vlaneseq
        %v902 = vshrl.u32 %v901, 7
        %v903 = vsub.s32 0, %v902
        %v904 = vrot.slane %v899, %v903
        %v906 = vpack.i.b16 %v897, %v897
        %v908 = vlaneseq
        %v909 = vshrl.u32 %v908, 7
        %v910 = vsub.s32 0, %v909
        %v911 = vrot.slane %v906, %v910
        %v914 = vunpack.c.l.b16 %v904
        %v915 = vunpack.c.l.b16 %v911
        %v916 = vpack.c.b16 %v915, %v914
        %917 = vrot.lane.b32.xlu0 %v916, 2
        %v918 = vpop.permute.xlu0 %917
        %v919 = vrot.slane %v918, 4
        %vm920 = vcmask 15360
        %v921 = vsel %vm920, %v919, %v918
        %v924 = vmul.bf16 %v644, %v921
        %v925 = vmul.bf16 %v695, %v919
        %v926 = vmul.bf16 %v645, %v921
        %v927 = vmul.bf16 %v696, %v919
        %s928 = scalar_lea.vmem %s1, 32
        %v929 = vld [vmem:[%s928] sm:$0xf]
        %v930 = vld [vmem:[%s928 + $0x4] sm:$0xf]
        %v931 = vld [vmem:[%s928 + $0x8] sm:$0xf]
        %v932 = vld [vmem:[%s928 + $0xc] sm:$0xf]
        %v937 = vunpack.c.l.b16 %v929
        %v938 = vunpack.c.l.b16 %v930
        %v939 = vunpack.c.l.b16 %v931
        %v940 = vunpack.c.l.b16 %v932
        %v941 = vpack.c.b16 %v938, %v937
        %v942 = vpack.c.b16 %v940, %v939
        %v947 = vunpack.c.l.b16 %v924
        %v948 = vunpack.c.h.b16 %v924
        %v949 = vunpack.c.l.b16 %v925
        %v950 = vunpack.c.l.b16 %v926
        %v951 = vunpack.c.h.b16 %v926
        %v952 = vunpack.c.l.b16 %v927
        %v953 = vpack.c.b16 %v950, %v947
        %v954 = vpack.c.b16 %v951, %v948
        %v955 = vpack.c.b16 %v952, %v949
        %956 = vrot.lane.b32.xlu0 %v953, 126
        %v957 = vpop.permute.xlu0 %956
        %958 = vrot.lane.b32.xlu0 %v954, 126
        %v959 = vpop.permute.xlu0 %958
        %960 = vrot.lane.b32.xlu0 %v955, 126
        %v961 = vpop.permute.xlu0 %960
        %vm962 = vcmask 1031168
        %v963 = vsel %vm962, %v957, %v959
        %v964 = vsel %vm962, %v959, %v961
        %v968 = vsel %vm736, %v941, 0
        %v971 = vsel %vm736, %v942, 0
        %973 = vmatprep.subr.bf16.mxu0 0
        %974 = vmatpush1.bf16.msra.mxu0 0
        %975 = vmatprep.subr.bf16.mxu0 0
        %976 = vmatpush1.bf16.msra.mxu0 0
        %977 = vmatprep.subr.bf16.mxu0 0
        %978 = vmatpush1.bf16.msra.mxu0 0
        %979 = vmatprep.subr.bf16.mxu0 0
        %980 = vmatpush1.bf16.msra.mxu0 0
        %981 = vmatprep.subr.bf16.mxu0 0
        %982 = vmatpush1.bf16.msra.mxu0 0
        %983 = vmatprep.subr.bf16.mxu0 0
        %984 = vmatpush1.bf16.msra.mxu0 0
        %985 = vmatprep.subr.bf16.mxu0 0
        %986 = vmatpush1.bf16.msra.mxu0 0
        %987 = vmatprep.subr.bf16.mxu0 %v964
        %988 = vmatpush1.bf16.msra.mxu0 %v963
        %989 = vmatprep.subr.bf16.mxu0 0
        %990 = vmatpush2.bf16.msra.mxu0 0
        %991 = vmatprep.subr.bf16.mxu0 0
        %992 = vmatpush2.bf16.msra.mxu0 0
        %993 = vmatprep.subr.bf16.mxu0 0
        %994 = vmatpush2.bf16.msra.mxu0 0
        %995 = vmatprep.subr.bf16.mxu0 0
        %996 = vmatpush2.bf16.msra.mxu0 0
        %997 = vmatprep.subr.bf16.mxu0 0
        %998 = vmatpush2.bf16.msra.mxu0 0
        %999 = vmatprep.subr.bf16.mxu0 0
        %1000 = vmatpush2.bf16.msra.mxu0 0
        %1001 = vmatprep.subr.bf16.mxu0 0
        %1002 = vmatpush2.bf16.msra.mxu0 0
        %1003 = vmatprep.subr.bf16.mxu0 0
        %1004 = vmatpush2.bf16.msra.mxu0 0
        %1005 = vmatprep.mubr.bf16.mxu0 0
        %1006 = vmatmul.mubr.bf16.gmra.mxu0 %v968
        %v1007 = vpop.f32.mrf.mxu0
        %v1008 = vadd.f32 0.0, %v1007
        %v1009 = vpop.f32.mrf.mxu0
        %v1010 = vadd.f32 0.0, %v1009
        %v1011 = vpop.f32.mrf.mxu0
        %v1012 = vadd.f32 0.0, %v1011
        %v1013 = vpop.f32.mrf.mxu0
        %v1014 = vadd.f32 0.0, %v1013
        %1015 = vmatprep.mubr.bf16.mxu0 0
        %1016 = vmatmul.mubr.bf16.gmra.mxu0 %v971
        %v1017 = vpop.f32.mrf.mxu0
        %v1018 = vadd.f32 0.0, %v1017
        %v1019 = vpop.f32.mrf.mxu0
        %v1020 = vadd.f32 0.0, %v1019
        %v1021 = vpop.f32.mrf.mxu0
        %v1022 = vadd.f32 0.0, %v1021
        %v1023 = vpop.f32.mrf.mxu0
        %v1024 = vadd.f32 0.0, %v1023
        %1025 = vdwg.mxu0
        %v1026 = vadd.f32 %v857, %v1008
        %v1027 = vadd.f32 %v859, %v1010
        %v1028 = vadd.f32 %v861, %v1012
        %v1029 = vadd.f32 %v863, %v1014
        %v1030 = vadd.f32 %v867, %v1018
        %v1031 = vadd.f32 %v869, %v1020
        %v1032 = vadd.f32 %v871, %v1022
        %v1033 = vadd.f32 %v873, %v1024
        %v1034 = vld [vmem:[#allocation2] sm:$0xff]
        %v1035 = vld [vmem:[#allocation2 + $0x8] sm:$0xf]
        %v1036 = vld [vmem:[#allocation2 + $0xc] sm:$0xff]
        %v1037 = vld [vmem:[#allocation2 + $0x14] sm:$0xf]
        %1038 = vrot.lane.b32.xlu0 %v687, 16
        %v1039 = vpop.permute.xlu0 %1038
        %v1040 = vrot.slane %v1039, 4
        %vm1041 = vcmask 130048
        %v1042 = vsel %vm1041, %v1040, %v1039
        %v1045 = vmul.bf16 %v1034, %v1042
        %v1046 = vmul.bf16 %v1035, %v1040
        %v1047 = vmul.bf16 %v1036, %v1042
        %v1048 = vmul.bf16 %v1037, %v1040
        %s1049 = scalar_lea.vmem %s1, 48
        %v1050 = vld [vmem:[%s1049] sm:$0xf]
        %v1051 = vld [vmem:[%s1049 + $0x4] sm:$0xf]
        %v1052 = vld [vmem:[%s1049 + $0x8] sm:$0xf]
        %v1053 = vld [vmem:[%s1049 + $0xc] sm:$0xf]
        %v1058 = vunpack.c.l.b16 %v1050
        %v1059 = vunpack.c.l.b16 %v1051
        %v1060 = vunpack.c.l.b16 %v1052
        %v1061 = vunpack.c.l.b16 %v1053
        %v1062 = vpack.c.b16 %v1059, %v1058
        %v1063 = vpack.c.b16 %v1061, %v1060
        %v1068 = vunpack.c.l.b16 %v1045
        %v1069 = vunpack.c.h.b16 %v1045
        %v1070 = vunpack.c.l.b16 %v1046
        %v1071 = vunpack.c.l.b16 %v1047
        %v1072 = vunpack.c.h.b16 %v1047
        %v1073 = vunpack.c.l.b16 %v1048
        %v1074 = vpack.c.b16 %v1071, %v1068
        %v1075 = vpack.c.b16 %v1072, %v1069
        %v1076 = vpack.c.b16 %v1073, %v1070
        %1077 = vrot.lane.b32.xlu0 %v1074, 112
        %v1078 = vpop.permute.xlu0 %1077
        %1079 = vrot.lane.b32.xlu0 %v1075, 112
        %v1080 = vpop.permute.xlu0 %1079
        %1081 = vrot.lane.b32.xlu0 %v1076, 112
        %v1082 = vpop.permute.xlu0 %1081
        %vm1083 = vcmask 916480
        %v1084 = vsel %vm1083, %v1078, %v1080
        %v1085 = vsel %vm1083, %v1080, %v1082
        %v1089 = vsel %vm736, %v1062, 0
        %v1092 = vsel %vm736, %v1063, 0
        %1094 = vmatprep.subr.bf16.mxu0 0
        %1095 = vmatpush1.bf16.msra.mxu0 0
        %1096 = vmatprep.subr.bf16.mxu0 0
        %1097 = vmatpush1.bf16.msra.mxu0 0
        %1098 = vmatprep.subr.bf16.mxu0 0
        %1099 = vmatpush1.bf16.msra.mxu0 0
        %1100 = vmatprep.subr.bf16.mxu0 0
        %1101 = vmatpush1.bf16.msra.mxu0 0
        %1102 = vmatprep.subr.bf16.mxu0 0
        %1103 = vmatpush1.bf16.msra.mxu0 0
        %1104 = vmatprep.subr.bf16.mxu0 0
        %1105 = vmatpush1.bf16.msra.mxu0 0
        %1106 = vmatprep.subr.bf16.mxu0 0
        %1107 = vmatpush1.bf16.msra.mxu0 0
        %1108 = vmatprep.subr.bf16.mxu0 %v1085
        %1109 = vmatpush1.bf16.msra.mxu0 %v1084
        %1110 = vmatprep.subr.bf16.mxu0 0
        %1111 = vmatpush2.bf16.msra.mxu0 0
        %1112 = vmatprep.subr.bf16.mxu0 0
        %1113 = vmatpush2.bf16.msra.mxu0 0
        %1114 = vmatprep.subr.bf16.mxu0 0
        %1115 = vmatpush2.bf16.msra.mxu0 0
        %1116 = vmatprep.subr.bf16.mxu0 0
        %1117 = vmatpush2.bf16.msra.mxu0 0
        %1118 = vmatprep.subr.bf16.mxu0 0
        %1119 = vmatpush2.bf16.msra.mxu0 0
        %1120 = vmatprep.subr.bf16.mxu0 0
        %1121 = vmatpush2.bf16.msra.mxu0 0
        %1122 = vmatprep.subr.bf16.mxu0 0
        %1123 = vmatpush2.bf16.msra.mxu0 0
        %1124 = vmatprep.subr.bf16.mxu0 0
        %1125 = vmatpush2.bf16.msra.mxu0 0
        %1126 = vmatprep.mubr.bf16.mxu0 0
        %1127 = vmatmul.mubr.bf16.gmra.mxu0 %v1089
        %v1128 = vpop.f32.mrf.mxu0
        %v1129 = vadd.f32 0.0, %v1128
        %v1130 = vpop.f32.mrf.mxu0
        %v1131 = vadd.f32 0.0, %v1130
        %v1132 = vpop.f32.mrf.mxu0
        %v1133 = vadd.f32 0.0, %v1132
        %v1134 = vpop.f32.mrf.mxu0
        %v1135 = vadd.f32 0.0, %v1134
        %1136 = vmatprep.mubr.bf16.mxu0 0
        %1137 = vmatmul.mubr.bf16.gmra.mxu0 %v1092
        %v1138 = vpop.f32.mrf.mxu0
        %v1139 = vadd.f32 0.0, %v1138
        %v1140 = vpop.f32.mrf.mxu0
        %v1141 = vadd.f32 0.0, %v1140
        %v1142 = vpop.f32.mrf.mxu0
        %v1143 = vadd.f32 0.0, %v1142
        %v1144 = vpop.f32.mrf.mxu0
        %v1145 = vadd.f32 0.0, %v1144
        %1146 = vdwg.mxu0
        %v1147 = vadd.f32 %v1026, %v1129
        %v1148 = vadd.f32 %v1027, %v1131
        %v1149 = vadd.f32 %v1028, %v1133
        %v1150 = vadd.f32 %v1029, %v1135
        %v1151 = vadd.f32 %v1030, %v1139
        %v1152 = vadd.f32 %v1031, %v1141
        %v1153 = vadd.f32 %v1032, %v1143
        %v1154 = vadd.f32 %v1033, %v1145
        %s1155 = scalar_lea.vmem %s1, 64
        %v1156 = vld [vmem:[%s1155] sm:$0xf]
        %v1157 = vld [vmem:[%s1155 + $0x4] sm:$0xf]
        %v1158 = vld [vmem:[%s1155 + $0x8] sm:$0xf]
        %v1159 = vld [vmem:[%s1155 + $0xc] sm:$0xf]
        %v1164 = vunpack.c.l.b16 %v1156
        %v1165 = vunpack.c.l.b16 %v1157
        %v1166 = vunpack.c.l.b16 %v1158
        %v1167 = vunpack.c.l.b16 %v1159
        %v1168 = vpack.c.b16 %v1165, %v1164
        %v1169 = vpack.c.b16 %v1167, %v1166
        %v1171 = vsel %vm736, %v1168, 0
        %v1174 = vsel %vm736, %v1169, 0
        %1176 = vmatprep.subr.bf16.mxu0 0
        %1177 = vmatpush1.bf16.msra.mxu0 0
        %1178 = vmatprep.subr.bf16.mxu0 0
        %1179 = vmatpush1.bf16.msra.mxu0 0
        %1180 = vmatprep.subr.bf16.mxu0 0
        %1181 = vmatpush1.bf16.msra.mxu0 0
        %1182 = vmatprep.subr.bf16.mxu0 0
        %1183 = vmatpush1.bf16.msra.mxu0 0
        %1184 = vmatprep.subr.bf16.mxu0 0
        %1185 = vmatpush1.bf16.msra.mxu0 0
        %1186 = vmatprep.subr.bf16.mxu0 0
        %1187 = vmatpush1.bf16.msra.mxu0 0
        %1188 = vmatprep.subr.bf16.mxu0 0
        %1189 = vmatpush1.bf16.msra.mxu0 0
        %1190 = vmatprep.subr.bf16.mxu0 %v609
        %1191 = vmatpush1.bf16.msra.mxu0 %v608
        %1192 = vmatprep.subr.bf16.mxu0 0
        %1193 = vmatpush2.bf16.msra.mxu0 0
        %1194 = vmatprep.subr.bf16.mxu0 0
        %1195 = vmatpush2.bf16.msra.mxu0 0
        %1196 = vmatprep.subr.bf16.mxu0 0
        %1197 = vmatpush2.bf16.msra.mxu0 0
        %1198 = vmatprep.subr.bf16.mxu0 0
        %1199 = vmatpush2.bf16.msra.mxu0 0
        %1200 = vmatprep.subr.bf16.mxu0 0
        %1201 = vmatpush2.bf16.msra.mxu0 0
        %1202 = vmatprep.subr.bf16.mxu0 0
        %1203 = vmatpush2.bf16.msra.mxu0 0
        %1204 = vmatprep.subr.bf16.mxu0 0
        %1205 = vmatpush2.bf16.msra.mxu0 0
        %1206 = vmatprep.subr.bf16.mxu0 0
        %1207 = vmatpush2.bf16.msra.mxu0 0
        %1208 = vmatprep.mubr.bf16.mxu0 0
        %1209 = vmatmul.mubr.bf16.gmra.mxu0 %v1171
        %v1210 = vpop.f32.mrf.mxu0
        %v1211 = vadd.f32 0.0, %v1210
        %v1212 = vpop.f32.mrf.mxu0
        %v1213 = vadd.f32 0.0, %v1212
        %v1214 = vpop.f32.mrf.mxu0
        %v1215 = vadd.f32 0.0, %v1214
        %v1216 = vpop.f32.mrf.mxu0
        %v1217 = vadd.f32 0.0, %v1216
        %1218 = vmatprep.mubr.bf16.mxu0 0
        %1219 = vmatmul.mubr.bf16.gmra.mxu0 %v1174
        %v1220 = vpop.f32.mrf.mxu0
        %v1221 = vadd.f32 0.0, %v1220
        %v1222 = vpop.f32.mrf.mxu0
        %v1223 = vadd.f32 0.0, %v1222
        %v1224 = vpop.f32.mrf.mxu0
        %v1225 = vadd.f32 0.0, %v1224
        %v1226 = vpop.f32.mrf.mxu0
        %v1227 = vadd.f32 0.0, %v1226
        %1228 = vdwg.mxu0
        %v1229 = vadd.f32 %v1147, %v1211
        %v1230 = vadd.f32 %v1148, %v1213
        %v1231 = vadd.f32 %v1149, %v1215
        %v1232 = vadd.f32 %v1150, %v1217
        %v1233 = vadd.f32 %v1151, %v1221
        %v1234 = vadd.f32 %v1152, %v1223
        %v1235 = vadd.f32 %v1153, %v1225
        %v1236 = vadd.f32 %v1154, %v1227
        %1237 = vrot.lane.b32.xlu0 %v916, 18
        %v1238 = vpop.permute.xlu0 %1237
        %v1239 = vrot.slane %v1238, 4
        %vm1240 = vcmask 146432
        %v1241 = vsel %vm1240, %v1239, %v1238
        %v1244 = vmul.bf16 %v1034, %v1241
        %v1245 = vmul.bf16 %v1035, %v1239
        %v1246 = vmul.bf16 %v1036, %v1241
        %v1247 = vmul.bf16 %v1037, %v1239
        %s1248 = scalar_lea.vmem %s1, 80
        %v1249 = vld [vmem:[%s1248] sm:$0xf]
        %v1250 = vld [vmem:[%s1248 + $0x4] sm:$0xf]
        %v1251 = vld [vmem:[%s1248 + $0x8] sm:$0xf]
        %v1252 = vld [vmem:[%s1248 + $0xc] sm:$0xf]
        %v1257 = vunpack.c.l.b16 %v1249
        %v1258 = vunpack.c.l.b16 %v1250
        %v1259 = vunpack.c.l.b16 %v1251
        %v1260 = vunpack.c.l.b16 %v1252
        %v1261 = vpack.c.b16 %v1258, %v1257
        %v1262 = vpack.c.b16 %v1260, %v1259
        %v1267 = vunpack.c.l.b16 %v1244
        %v1268 = vunpack.c.h.b16 %v1244
        %v1269 = vunpack.c.l.b16 %v1245
        %v1270 = vunpack.c.l.b16 %v1246
        %v1271 = vunpack.c.h.b16 %v1246
        %v1272 = vunpack.c.l.b16 %v1247
        %v1273 = vpack.c.b16 %v1270, %v1267
        %v1274 = vpack.c.b16 %v1271, %v1268
        %v1275 = vpack.c.b16 %v1272, %v1269
        %1276 = vrot.lane.b32.xlu0 %v1273, 110
        %v1277 = vpop.permute.xlu0 %1276
        %1278 = vrot.lane.b32.xlu0 %v1274, 110
        %v1279 = vpop.permute.xlu0 %1278
        %1280 = vrot.lane.b32.xlu0 %v1275, 110
        %v1281 = vpop.permute.xlu0 %1280
        %vm1282 = vcmask 900096
        %v1283 = vsel %vm1282, %v1277, %v1279
        %v1284 = vsel %vm1282, %v1279, %v1281
        %v1288 = vsel %vm736, %v1261, 0
        %v1291 = vsel %vm736, %v1262, 0
        %1293 = vmatprep.subr.bf16.mxu0 0
        %1294 = vmatpush1.bf16.msra.mxu0 0
        %1295 = vmatprep.subr.bf16.mxu0 0
        %1296 = vmatpush1.bf16.msra.mxu0 0
        %1297 = vmatprep.subr.bf16.mxu0 0
        %1298 = vmatpush1.bf16.msra.mxu0 0
        %1299 = vmatprep.subr.bf16.mxu0 0
        %1300 = vmatpush1.bf16.msra.mxu0 0
        %1301 = vmatprep.subr.bf16.mxu0 0
        %1302 = vmatpush1.bf16.msra.mxu0 0
        %1303 = vmatprep.subr.bf16.mxu0 0
        %1304 = vmatpush1.bf16.msra.mxu0 0
        %1305 = vmatprep.subr.bf16.mxu0 0
        %1306 = vmatpush1.bf16.msra.mxu0 0
        %1307 = vmatprep.subr.bf16.mxu0 %v1284
        %1308 = vmatpush1.bf16.msra.mxu0 %v1283
        %1309 = vmatprep.subr.bf16.mxu0 0
        %1310 = vmatpush2.bf16.msra.mxu0 0
        %1311 = vmatprep.subr.bf16.mxu0 0
        %1312 = vmatpush2.bf16.msra.mxu0 0
        %1313 = vmatprep.subr.bf16.mxu0 0
        %1314 = vmatpush2.bf16.msra.mxu0 0
        %1315 = vmatprep.subr.bf16.mxu0 0
        %1316 = vmatpush2.bf16.msra.mxu0 0
        %1317 = vmatprep.subr.bf16.mxu0 0
        %1318 = vmatpush2.bf16.msra.mxu0 0
        %1319 = vmatprep.subr.bf16.mxu0 0
        %1320 = vmatpush2.bf16.msra.mxu0 0
        %1321 = vmatprep.subr.bf16.mxu0 0
        %1322 = vmatpush2.bf16.msra.mxu0 0
        %1323 = vmatprep.subr.bf16.mxu0 0
        %1324 = vmatpush2.bf16.msra.mxu0 0
        %1325 = vmatprep.mubr.bf16.mxu0 0
        %1326 = vmatmul.mubr.bf16.gmra.mxu0 %v1288
        %v1327 = vpop.f32.mrf.mxu0
        %v1328 = vadd.f32 0.0, %v1327
        %v1329 = vpop.f32.mrf.mxu0
        %v1330 = vadd.f32 0.0, %v1329
        %v1331 = vpop.f32.mrf.mxu0
        %v1332 = vadd.f32 0.0, %v1331
        %v1333 = vpop.f32.mrf.mxu0
        %v1334 = vadd.f32 0.0, %v1333
        %1335 = vmatprep.mubr.bf16.mxu0 0
        %1336 = vmatmul.mubr.bf16.gmra.mxu0 %v1291
        %v1337 = vpop.f32.mrf.mxu0
        %v1338 = vadd.f32 0.0, %v1337
        %v1339 = vpop.f32.mrf.mxu0
        %v1340 = vadd.f32 0.0, %v1339
        %v1341 = vpop.f32.mrf.mxu0
        %v1342 = vadd.f32 0.0, %v1341
        %v1343 = vpop.f32.mrf.mxu0
        %v1344 = vadd.f32 0.0, %v1343
        %1345 = vdwg.mxu0
        %v1346 = vadd.f32 %v1229, %v1328
        %v1347 = vadd.f32 %v1230, %v1330
        %v1348 = vadd.f32 %v1231, %v1332
        %v1349 = vadd.f32 %v1232, %v1334
        %v1350 = vadd.f32 %v1233, %v1338
        %v1351 = vadd.f32 %v1234, %v1340
        %v1352 = vadd.f32 %v1235, %v1342
        %v1353 = vadd.f32 %v1236, %v1344
        %1354 = vrot.lane.b32.xlu0 %v687, 32
        %v1355 = vpop.permute.xlu0 %1354
        %v1356 = vrot.slane %v1355, 4
        %vm1357 = vcmask 261120
        %v1358 = vsel %vm1357, %v1356, %v1355
        %v1361 = vmul.bf16 %v1034, %v1358
        %v1362 = vmul.bf16 %v1035, %v1356
        %v1363 = vmul.bf16 %v1036, %v1358
        %v1364 = vmul.bf16 %v1037, %v1356
        %s1365 = scalar_lea.vmem %s1, 96
        %v1366 = vld [vmem:[%s1365] sm:$0xf]
        %v1367 = vld [vmem:[%s1365 + $0x4] sm:$0xf]
        %v1368 = vld [vmem:[%s1365 + $0x8] sm:$0xf]
        %v1369 = vld [vmem:[%s1365 + $0xc] sm:$0xf]
        %v1374 = vunpack.c.l.b16 %v1366
        %v1375 = vunpack.c.l.b16 %v1367
        %v1376 = vunpack.c.l.b16 %v1368
        %v1377 = vunpack.c.l.b16 %v1369
        %v1378 = vpack.c.b16 %v1375, %v1374
        %v1379 = vpack.c.b16 %v1377, %v1376
        %v1384 = vunpack.c.l.b16 %v1361
        %v1385 = vunpack.c.h.b16 %v1361
        %v1386 = vunpack.c.l.b16 %v1362
        %v1387 = vunpack.c.l.b16 %v1363
        %v1388 = vunpack.c.h.b16 %v1363
        %v1389 = vunpack.c.l.b16 %v1364
        %v1390 = vpack.c.b16 %v1387, %v1384
        %v1391 = vpack.c.b16 %v1388, %v1385
        %v1392 = vpack.c.b16 %v1389, %v1386
        %1393 = vrot.lane.b32.xlu0 %v1390, 96
        %v1394 = vpop.permute.xlu0 %1393
        %1395 = vrot.lane.b32.xlu0 %v1391, 96
        %v1396 = vpop.permute.xlu0 %1395
        %1397 = vrot.lane.b32.xlu0 %v1392, 96
        %v1398 = vpop.permute.xlu0 %1397
        %vm1399 = vcmask 785408
        %v1400 = vsel %vm1399, %v1394, %v1396
        %v1401 = vsel %vm1399, %v1396, %v1398
        %v1405 = vsel %vm736, %v1378, 0
        %v1408 = vsel %vm736, %v1379, 0
        %1410 = vmatprep.subr.bf16.mxu0 0
        %1411 = vmatpush1.bf16.msra.mxu0 0
        %1412 = vmatprep.subr.bf16.mxu0 0
        %1413 = vmatpush1.bf16.msra.mxu0 0
        %1414 = vmatprep.subr.bf16.mxu0 0
        %1415 = vmatpush1.bf16.msra.mxu0 0
        %1416 = vmatprep.subr.bf16.mxu0 0
        %1417 = vmatpush1.bf16.msra.mxu0 0
        %1418 = vmatprep.subr.bf16.mxu0 0
        %1419 = vmatpush1.bf16.msra.mxu0 0
        %1420 = vmatprep.subr.bf16.mxu0 0
        %1421 = vmatpush1.bf16.msra.mxu0 0
        %1422 = vmatprep.subr.bf16.mxu0 0
        %1423 = vmatpush1.bf16.msra.mxu0 0
        %1424 = vmatprep.subr.bf16.mxu0 %v1401
        %1425 = vmatpush1.bf16.msra.mxu0 %v1400
        %1426 = vmatprep.subr.bf16.mxu0 0
        %1427 = vmatpush2.bf16.msra.mxu0 0
        %1428 = vmatprep.subr.bf16.mxu0 0
        %1429 = vmatpush2.bf16.msra.mxu0 0
        %1430 = vmatprep.subr.bf16.mxu0 0
        %1431 = vmatpush2.bf16.msra.mxu0 0
        %1432 = vmatprep.subr.bf16.mxu0 0
        %1433 = vmatpush2.bf16.msra.mxu0 0
        %1434 = vmatprep.subr.bf16.mxu0 0
        %1435 = vmatpush2.bf16.msra.mxu0 0
        %1436 = vmatprep.subr.bf16.mxu0 0
        %1437 = vmatpush2.bf16.msra.mxu0 0
        %1438 = vmatprep.subr.bf16.mxu0 0
        %1439 = vmatpush2.bf16.msra.mxu0 0
        %1440 = vmatprep.subr.bf16.mxu0 0
        %1441 = vmatpush2.bf16.msra.mxu0 0
        %1442 = vmatprep.mubr.bf16.mxu0 0
        %1443 = vmatmul.mubr.bf16.gmra.mxu0 %v1405
        %v1444 = vpop.f32.mrf.mxu0
        %v1445 = vadd.f32 0.0, %v1444
        %v1446 = vpop.f32.mrf.mxu0
        %v1447 = vadd.f32 0.0, %v1446
        %v1448 = vpop.f32.mrf.mxu0
        %v1449 = vadd.f32 0.0, %v1448
        %v1450 = vpop.f32.mrf.mxu0
        %v1451 = vadd.f32 0.0, %v1450
        %1452 = vmatprep.mubr.bf16.mxu0 0
        %1453 = vmatmul.mubr.bf16.gmra.mxu0 %v1408
        %v1454 = vpop.f32.mrf.mxu0
        %v1455 = vadd.f32 0.0, %v1454
        %v1456 = vpop.f32.mrf.mxu0
        %v1457 = vadd.f32 0.0, %v1456
        %v1458 = vpop.f32.mrf.mxu0
        %v1459 = vadd.f32 0.0, %v1458
        %v1460 = vpop.f32.mrf.mxu0
        %v1461 = vadd.f32 0.0, %v1460
        %1462 = vdwg.mxu0
        %v1463 = vadd.f32 %v1346, %v1445
        %v1464 = vadd.f32 %v1347, %v1447
        %v1465 = vadd.f32 %v1348, %v1449
        %v1466 = vadd.f32 %v1349, %v1451
        %v1467 = vadd.f32 %v1350, %v1455
        %v1468 = vadd.f32 %v1351, %v1457
        %v1469 = vadd.f32 %v1352, %v1459
        %v1470 = vadd.f32 %v1353, %v1461
        %s1471 = scalar_lea.vmem %s1, 112
        %v1472 = vld [vmem:[%s1471] sm:$0xf]
        %v1473 = vld [vmem:[%s1471 + $0x4] sm:$0xf]
        %v1474 = vld [vmem:[%s1471 + $0x8] sm:$0xf]
        %v1475 = vld [vmem:[%s1471 + $0xc] sm:$0xf]
        %v1480 = vunpack.c.l.b16 %v1472
        %v1481 = vunpack.c.l.b16 %v1473
        %v1482 = vunpack.c.l.b16 %v1474
        %v1483 = vunpack.c.l.b16 %v1475
        %v1484 = vpack.c.b16 %v1481, %v1480
        %v1485 = vpack.c.b16 %v1483, %v1482
        %v1490 = vunpack.c.l.b16 %v1034
        %v1491 = vunpack.c.h.b16 %v1034
        %v1492 = vunpack.c.l.b16 %v1035
        %v1493 = vunpack.c.l.b16 %v1036
        %v1494 = vunpack.c.h.b16 %v1036
        %v1495 = vunpack.c.l.b16 %v1037
        %v1496 = vpack.c.b16 %v1493, %v1490
        %v1497 = vpack.c.b16 %v1494, %v1491
        %v1498 = vpack.c.b16 %v1495, %v1492
        %1499 = vrot.lane.b32.xlu0 %v1496, 95
        %v1500 = vpop.permute.xlu0 %1499
        %1501 = vrot.lane.b32.xlu0 %v1497, 95
        %v1502 = vpop.permute.xlu0 %1501
        %1503 = vrot.lane.b32.xlu0 %v1498, 95
        %v1504 = vpop.permute.xlu0 %1503
        %vm1505 = vcmask 777216
        %v1506 = vsel %vm1505, %v1500, %v1502
        %v1507 = vsel %vm1505, %v1502, %v1504
        %v1511 = vsel %vm736, %v1484, 0
        %v1514 = vsel %vm736, %v1485, 0
        %1516 = vmatprep.subr.bf16.mxu0 0
        %1517 = vmatpush1.bf16.msra.mxu0 0
        %1518 = vmatprep.subr.bf16.mxu0 0
        %1519 = vmatpush1.bf16.msra.mxu0 0
        %1520 = vmatprep.subr.bf16.mxu0 0
        %1521 = vmatpush1.bf16.msra.mxu0 0
        %1522 = vmatprep.subr.bf16.mxu0 0
        %1523 = vmatpush1.bf16.msra.mxu0 0
        %1524 = vmatprep.subr.bf16.mxu0 0
        %1525 = vmatpush1.bf16.msra.mxu0 0
        %1526 = vmatprep.subr.bf16.mxu0 0
        %1527 = vmatpush1.bf16.msra.mxu0 0
        %1528 = vmatprep.subr.bf16.mxu0 0
        %1529 = vmatpush1.bf16.msra.mxu0 0
        %1530 = vmatprep.subr.bf16.mxu0 %v1507
        %1531 = vmatpush1.bf16.msra.mxu0 %v1506
        %1532 = vmatprep.subr.bf16.mxu0 0
        %1533 = vmatpush2.bf16.msra.mxu0 0
        %1534 = vmatprep.subr.bf16.mxu0 0
        %1535 = vmatpush2.bf16.msra.mxu0 0
        %1536 = vmatprep.subr.bf16.mxu0 0
        %1537 = vmatpush2.bf16.msra.mxu0 0
        %1538 = vmatprep.subr.bf16.mxu0 0
        %1539 = vmatpush2.bf16.msra.mxu0 0
        %1540 = vmatprep.subr.bf16.mxu0 0
        %1541 = vmatpush2.bf16.msra.mxu0 0
        %1542 = vmatprep.subr.bf16.mxu0 0
        %1543 = vmatpush2.bf16.msra.mxu0 0
        %1544 = vmatprep.subr.bf16.mxu0 0
        %1545 = vmatpush2.bf16.msra.mxu0 0
        %1546 = vmatprep.subr.bf16.mxu0 0
        %1547 = vmatpush2.bf16.msra.mxu0 0
        %1548 = vmatprep.mubr.bf16.mxu0 0
        %1549 = vmatmul.mubr.bf16.gmra.mxu0 %v1511
        %v1550 = vpop.f32.mrf.mxu0
        %v1551 = vadd.f32 0.0, %v1550
        %v1552 = vpop.f32.mrf.mxu0
        %v1553 = vadd.f32 0.0, %v1552
        %v1554 = vpop.f32.mrf.mxu0
        %v1555 = vadd.f32 0.0, %v1554
        %v1556 = vpop.f32.mrf.mxu0
        %v1557 = vadd.f32 0.0, %v1556
        %1558 = vmatprep.mubr.bf16.mxu0 0
        %1559 = vmatmul.mubr.bf16.gmra.mxu0 %v1514
        %v1560 = vpop.f32.mrf.mxu0
        %v1561 = vadd.f32 0.0, %v1560
        %v1562 = vpop.f32.mrf.mxu0
        %v1563 = vadd.f32 0.0, %v1562
        %v1564 = vpop.f32.mrf.mxu0
        %v1565 = vadd.f32 0.0, %v1564
        %v1566 = vpop.f32.mrf.mxu0
        %v1567 = vadd.f32 0.0, %v1566
        %1568 = vdwg.mxu0
        %v1569 = vadd.f32 %v1463, %v1551
        %v1570 = vadd.f32 %v1464, %v1553
        %v1571 = vadd.f32 %v1465, %v1555
        %v1572 = vadd.f32 %v1466, %v1557
        %v1573 = vadd.f32 %v1467, %v1561
        %v1574 = vadd.f32 %v1468, %v1563
        %v1575 = vadd.f32 %v1469, %v1565
        %v1576 = vadd.f32 %v1470, %v1567
        %1577 = vrot.lane.b32.xlu0 %v916, 34
        %v1578 = vpop.permute.xlu0 %1577
        %v1579 = vrot.slane %v1578, 4
        %vm1580 = vcmask 277504
        %v1581 = vsel %vm1580, %v1579, %v1578
        %v1584 = vmul.bf16 %v1034, %v1581
        %v1585 = vmul.bf16 %v1035, %v1579
        %v1586 = vmul.bf16 %v1036, %v1581
        %v1587 = vmul.bf16 %v1037, %v1579
        %s1588 = scalar_lea.vmem %s1, 128
        %v1589 = vld [vmem:[%s1588] sm:$0xf]
        %v1590 = vld [vmem:[%s1588 + $0x4] sm:$0xf]
        %v1591 = vld [vmem:[%s1588 + $0x8] sm:$0xf]
        %v1592 = vld [vmem:[%s1588 + $0xc] sm:$0xf]
        %v1597 = vunpack.c.l.b16 %v1589
        %v1598 = vunpack.c.l.b16 %v1590
        %v1599 = vunpack.c.l.b16 %v1591
        %v1600 = vunpack.c.l.b16 %v1592
        %v1601 = vpack.c.b16 %v1598, %v1597
        %v1602 = vpack.c.b16 %v1600, %v1599
        %v1607 = vunpack.c.l.b16 %v1584
        %v1608 = vunpack.c.h.b16 %v1584
        %v1609 = vunpack.c.l.b16 %v1585
        %v1610 = vunpack.c.l.b16 %v1586
        %v1611 = vunpack.c.h.b16 %v1586
        %v1612 = vunpack.c.l.b16 %v1587
        %v1613 = vpack.c.b16 %v1610, %v1607
        %v1614 = vpack.c.b16 %v1611, %v1608
        %v1615 = vpack.c.b16 %v1612, %v1609
        %1616 = vrot.lane.b32.xlu0 %v1613, 94
        %v1617 = vpop.permute.xlu0 %1616
        %1618 = vrot.lane.b32.xlu0 %v1614, 94
        %v1619 = vpop.permute.xlu0 %1618
        %1620 = vrot.lane.b32.xlu0 %v1615, 94
        %v1621 = vpop.permute.xlu0 %1620
        %vm1622 = vcmask 769024
        %v1623 = vsel %vm1622, %v1617, %v1619
        %v1624 = vsel %vm1622, %v1619, %v1621
        %v1628 = vsel %vm736, %v1601, 0
        %v1631 = vsel %vm736, %v1602, 0
        %1633 = vmatprep.subr.bf16.mxu0 0
        %1634 = vmatpush1.bf16.msra.mxu0 0
        %1635 = vmatprep.subr.bf16.mxu0 0
        %1636 = vmatpush1.bf16.msra.mxu0 0
        %1637 = vmatprep.subr.bf16.mxu0 0
        %1638 = vmatpush1.bf16.msra.mxu0 0
        %1639 = vmatprep.subr.bf16.mxu0 0
        %1640 = vmatpush1.bf16.msra.mxu0 0
        %1641 = vmatprep.subr.bf16.mxu0 0
        %1642 = vmatpush1.bf16.msra.mxu0 0
        %1643 = vmatprep.subr.bf16.mxu0 0
        %1644 = vmatpush1.bf16.msra.mxu0 0
        %1645 = vmatprep.subr.bf16.mxu0 0
        %1646 = vmatpush1.bf16.msra.mxu0 0
        %1647 = vmatprep.subr.bf16.mxu0 %v1624
        %1648 = vmatpush1.bf16.msra.mxu0 %v1623
        %1649 = vmatprep.subr.bf16.mxu0 0
        %1650 = vmatpush2.bf16.msra.mxu0 0
        %1651 = vmatprep.subr.bf16.mxu0 0
        %1652 = vmatpush2.bf16.msra.mxu0 0
        %1653 = vmatprep.subr.bf16.mxu0 0
        %1654 = vmatpush2.bf16.msra.mxu0 0
        %1655 = vmatprep.subr.bf16.mxu0 0
        %1656 = vmatpush2.bf16.msra.mxu0 0
        %1657 = vmatprep.subr.bf16.mxu0 0
        %1658 = vmatpush2.bf16.msra.mxu0 0
        %1659 = vmatprep.subr.bf16.mxu0 0
        %1660 = vmatpush2.bf16.msra.mxu0 0
        %1661 = vmatprep.subr.bf16.mxu0 0
        %1662 = vmatpush2.bf16.msra.mxu0 0
        %1663 = vmatprep.subr.bf16.mxu0 0
        %1664 = vmatpush2.bf16.msra.mxu0 0
        %1665 = vmatprep.mubr.bf16.mxu0 0
        %1666 = vmatmul.mubr.bf16.gmra.mxu0 %v1628
        %v1667 = vpop.f32.mrf.mxu0
        %v1668 = vadd.f32 0.0, %v1667
        %v1669 = vpop.f32.mrf.mxu0
        %v1670 = vadd.f32 0.0, %v1669
        %v1671 = vpop.f32.mrf.mxu0
        %v1672 = vadd.f32 0.0, %v1671
        %v1673 = vpop.f32.mrf.mxu0
        %v1674 = vadd.f32 0.0, %v1673
        %1675 = vmatprep.mubr.bf16.mxu0 0
        %1676 = vmatmul.mubr.bf16.gmra.mxu0 %v1631
        %v1677 = vpop.f32.mrf.mxu0
        %v1678 = vadd.f32 0.0, %v1677
        %v1679 = vpop.f32.mrf.mxu0
        %v1680 = vadd.f32 0.0, %v1679
        %v1681 = vpop.f32.mrf.mxu0
        %v1682 = vadd.f32 0.0, %v1681
        %v1683 = vpop.f32.mrf.mxu0
        %v1684 = vadd.f32 0.0, %v1683
        %1685 = vdwg.mxu0
        %v1686 = vadd.f32 %v1569, %v1668
        %v1687 = vadd.f32 %v1570, %v1670
        %v1688 = vadd.f32 %v1571, %v1672
        %v1689 = vadd.f32 %v1572, %v1674
        %v1690 = vadd.f32 %v1573, %v1678
        %v1691 = vadd.f32 %v1574, %v1680
        %v1692 = vadd.f32 %v1575, %v1682
        %v1693 = vadd.f32 %v1576, %v1684
        %v1694 = vld [vmem:[%s2] sm:$0xff]
        %v1695 = vld [vmem:[%s2 + $0x8] sm:$0xff]
        %v1696 = vld [vmem:[%s2 + $0x10] sm:$0xff]
        %v1697 = vld [vmem:[%s2 + $0x18] sm:$0xff]
        %1699 = vset.pattern.permute.xlu0 0
        %1700 = vperm.xlu0 %1699, %v1694
        %v1701 = vpop.permute.xlu0 %1700
        %1704 = vset.pattern.permute.xlu0 0
        %1705 = vperm.xlu0 %1704, %v1695
        %v1706 = vpop.permute.xlu0 %1705
        %1709 = vset.pattern.permute.xlu0 0
        %1710 = vperm.xlu0 %1709, %v1696
        %v1711 = vpop.permute.xlu0 %1710
        %1714 = vset.pattern.permute.xlu0 0
        %1715 = vperm.xlu0 %1714, %v1697
        %v1716 = vpop.permute.xlu0 %1715
        %v1718 = vmul.f32 %v1686, %v1701
        %v1719 = vmul.f32 %v1687, %v1701
        %v1720 = vmul.f32 %v1688, %v1706
        %v1721 = vmul.f32 %v1689, %v1706
        %v1722 = vmul.f32 %v1690, %v1711
        %v1723 = vmul.f32 %v1691, %v1711
        %v1724 = vmul.f32 %v1692, %v1716
        %v1725 = vmul.f32 %v1693, %v1716
        %v1726 = vld [vmem:[%s3] sm:$0xff]
        %v1727 = vld [vmem:[%s3 + $0x8] sm:$0xff]
        %v1728 = vld [vmem:[%s3 + $0x10] sm:$0xff]
        %v1729 = vld [vmem:[%s3 + $0x18] sm:$0xff]
        %1731 = vset.pattern.permute.xlu0 0
        %1732 = vperm.xlu0 %1731, %v1726
        %v1733 = vpop.permute.xlu0 %1732
        %1736 = vset.pattern.permute.xlu0 0
        %1737 = vperm.xlu0 %1736, %v1727
        %v1738 = vpop.permute.xlu0 %1737
        %1741 = vset.pattern.permute.xlu0 0
        %1742 = vperm.xlu0 %1741, %v1728
        %v1743 = vpop.permute.xlu0 %1742
        %1746 = vset.pattern.permute.xlu0 0
        %1747 = vperm.xlu0 %1746, %v1729
        %v1748 = vpop.permute.xlu0 %1747
        %v1750 = vadd.f32 %v1718, %v1733
        %v1751 = vadd.f32 %v1719, %v1733
        %v1752 = vadd.f32 %v1720, %v1738
        %v1753 = vadd.f32 %v1721, %v1738
        %v1754 = vadd.f32 %v1722, %v1743
        %v1755 = vadd.f32 %v1723, %v1743
        %v1756 = vadd.f32 %v1724, %v1748
        %v1757 = vadd.f32 %v1725, %v1748
        %v1758 = vmax.f32 %v1750, 0.0
        %v1759 = vmax.f32 %v1751, 0.0
        %v1760 = vmax.f32 %v1752, 0.0
        %v1761 = vmax.f32 %v1753, 0.0
        %v1762 = vmax.f32 %v1754, 0.0
        %v1763 = vmax.f32 %v1755, 0.0
        %v1764 = vmax.f32 %v1756, 0.0
        %v1765 = vmax.f32 %v1757, 0.0
        %1766 = vst.msk [vmem:[#allocation3] sm:$0xf] %vm610, 0
        %1767 = vst.msk [vmem:[#allocation3 + $0xc] sm:$0xf] %vm610, 0
        %1768 = vst.msk [vmem:[#allocation3 + $0x18] sm:$0xf] %vm610, 0
        %1769 = vst.msk [vmem:[#allocation3 + $0x24] sm:$0xf] %vm610, 0
        %1770 = vst.msk [vmem:[#allocation3 + $0x8] sm:$0xf] %vm613, 0
        %1771 = vst.msk [vmem:[#allocation3 + $0x14] sm:$0xf] %vm613, 0
        %1772 = vst.msk [vmem:[#allocation3 + $0x20] sm:$0xf] %vm613, 0
        %1773 = vst.msk [vmem:[#allocation3 + $0x2c] sm:$0xf] %vm613, 0
        %v1774 = vpack.c.bf16 %v1760, %v1758
        %v1775 = vpack.c.bf16 %v1761, %v1759
        %v1776 = vpack.c.bf16 %v1764, %v1762
        %v1777 = vpack.c.bf16 %v1765, %v1763
        %v1782 = vunpack.c.l.b16 %v1774
        %v1783 = vunpack.c.l.b16 %v1775
        %v1784 = vunpack.c.h.b16 %v1774
        %v1785 = vunpack.c.h.b16 %v1775
        %v1786 = vunpack.c.l.b16 %v1776
        %v1787 = vunpack.c.l.b16 %v1777
        %v1788 = vunpack.c.h.b16 %v1776
        %v1789 = vunpack.c.h.b16 %v1777
        %v1790 = vpack.c.b16 %v1783, %v1782
        %v1791 = vpack.c.b16 %v1785, %v1784
        %v1792 = vpack.c.b16 %v1787, %v1786
        %v1793 = vpack.c.b16 %v1789, %v1788
        %1794 = vrot.lane.b32.xlu0 %v1790, 17
        %v1795 = vpop.permute.xlu0 %1794
        %1796 = vrot.lane.b32.xlu0 %v1791, 17
        %v1797 = vpop.permute.xlu0 %1796
        %1798 = vrot.lane.b32.xlu0 %v1792, 17
        %v1799 = vpop.permute.xlu0 %1798
        %1800 = vrot.lane.b32.xlu0 %v1793, 17
        %v1801 = vpop.permute.xlu0 %1800
        %v1802 = vrot.slane %v1795, 4
        %v1803 = vrot.slane %v1797, 4
        %v1804 = vrot.slane %v1799, 4
        %v1805 = vrot.slane %v1801, 4
        %v1806 = vsel %vm630, %v1802, %v1795
        %v1807 = vsel %vm630, %v1803, %v1797
        %v1808 = vsel %vm630, %v1804, %v1799
        %v1809 = vsel %vm630, %v1805, %v1801
        %1818 = vst.msk [vmem:[#allocation3] sm:$0xff] %vm639, %v1806
        %1819 = vst.msk [vmem:[#allocation3 + $0x8] sm:$0xf] %vm610, %v1802
        %1820 = vst.msk [vmem:[#allocation3 + $0xc] sm:$0xff] %vm639, %v1807
        %1821 = vst.msk [vmem:[#allocation3 + $0x14] sm:$0xf] %vm610, %v1803
        %1822 = vst.msk [vmem:[#allocation3 + $0x18] sm:$0xff] %vm639, %v1808
        %1823 = vst.msk [vmem:[#allocation3 + $0x20] sm:$0xf] %vm610, %v1804
        %1824 = vst.msk [vmem:[#allocation3 + $0x24] sm:$0xff] %vm639, %v1809
        %1825 = vst.msk [vmem:[#allocation3 + $0x2c] sm:$0xf] %vm610, %v1805
        %v1826 = vld [vmem:[#allocation3] sm:$0xff]
        %v1827 = vld [vmem:[#allocation3 + $0xc] sm:$0xff]
        %v1828 = vld [vmem:[#allocation3 + $0x18] sm:$0xff]
        %v1829 = vld [vmem:[#allocation3 + $0x24] sm:$0xff]
        %v1830 = vmul.bf16 %v1826, %v687
        %v1831 = vmul.bf16 %v1827, %v687
        %v1832 = vmul.bf16 %v1828, %v687
        %v1833 = vmul.bf16 %v1829, %v687
        %v1834 = vld [vmem:[%s4] sm:$0xf]
        %v1835 = vld [vmem:[%s4 + $0x4] sm:$0xf]
        %v1836 = vld [vmem:[%s4 + $0x8] sm:$0xf]
        %v1837 = vld [vmem:[%s4 + $0xc] sm:$0xf]
        %v1838 = vld [vmem:[#allocation3 + $0x8] sm:$0xf]
        %v1839 = vld [vmem:[#allocation3 + $0x14] sm:$0xf]
        %v1840 = vld [vmem:[#allocation3 + $0x20] sm:$0xf]
        %v1841 = vld [vmem:[#allocation3 + $0x2c] sm:$0xf]
        %s1842 = scalar_lea.vmem %s4, 16
        %v1843 = vld [vmem:[%s1842] sm:$0xf]
        %v1844 = vld [vmem:[%s1842 + $0x4] sm:$0xf]
        %v1845 = vld [vmem:[%s1842 + $0x8] sm:$0xf]
        %v1846 = vld [vmem:[%s1842 + $0xc] sm:$0xf]
        %v1851 = vunpack.c.l.b16 %v1843
        %v1852 = vunpack.c.l.b16 %v1844
        %v1853 = vunpack.c.l.b16 %v1845
        %v1854 = vunpack.c.l.b16 %v1846
        %v1855 = vpack.c.b16 %v1852, %v1851
        %v1856 = vpack.c.b16 %v1854, %v1853
        %v1865 = vunpack.c.l.b16 %v1826
        %v1866 = vunpack.c.h.b16 %v1826
        %v1867 = vunpack.c.l.b16 %v1838
        %v1868 = vunpack.c.l.b16 %v1827
        %v1869 = vunpack.c.h.b16 %v1827
        %v1870 = vunpack.c.l.b16 %v1839
        %v1871 = vunpack.c.l.b16 %v1828
        %v1872 = vunpack.c.h.b16 %v1828
        %v1873 = vunpack.c.l.b16 %v1840
        %v1874 = vunpack.c.l.b16 %v1829
        %v1875 = vunpack.c.h.b16 %v1829
        %v1876 = vunpack.c.l.b16 %v1841
        %v1877 = vpack.c.b16 %v1868, %v1865
        %v1878 = vpack.c.b16 %v1869, %v1866
        %v1879 = vpack.c.b16 %v1870, %v1867
        %v1880 = vpack.c.b16 %v1874, %v1871
        %v1881 = vpack.c.b16 %v1875, %v1872
        %v1882 = vpack.c.b16 %v1876, %v1873
        %1883 = vrot.lane.b32.xlu0 %v1877, 127
        %v1884 = vpop.permute.xlu0 %1883
        %1885 = vrot.lane.b32.xlu0 %v1878, 127
        %v1886 = vpop.permute.xlu0 %1885
        %1887 = vrot.lane.b32.xlu0 %v1879, 127
        %v1888 = vpop.permute.xlu0 %1887
        %1889 = vrot.lane.b32.xlu0 %v1880, 127
        %v1890 = vpop.permute.xlu0 %1889
        %1891 = vrot.lane.b32.xlu0 %v1881, 127
        %v1892 = vpop.permute.xlu0 %1891
        %1893 = vrot.lane.b32.xlu0 %v1882, 127
        %v1894 = vpop.permute.xlu0 %1893
        %v1895 = vsel %vm731, %v1884, %v1886
        %v1896 = vsel %vm731, %v1886, %v1888
        %v1897 = vsel %vm731, %v1890, %v1892
        %v1898 = vsel %vm731, %v1892, %v1894
        %vm1903 = vcmask 261120
        %v1905 = vsel %vm1903, %v1855, 0
        %v1908 = vsel %vm1903, %v1856, 0
        %1910 = vmatprep.subr.bf16.mxu0 0
        %1911 = vmatpush1.bf16.msra.mxu0 0
        %1912 = vmatprep.subr.bf16.mxu0 0
        %1913 = vmatpush1.bf16.msra.mxu0 0
        %1914 = vmatprep.subr.bf16.mxu0 0
        %1915 = vmatpush1.bf16.msra.mxu0 0
        %1916 = vmatprep.subr.bf16.mxu0 0
        %1917 = vmatpush1.bf16.msra.mxu0 0
        %1918 = vmatprep.subr.bf16.mxu0 0
        %1919 = vmatpush1.bf16.msra.mxu0 0
        %1920 = vmatprep.subr.bf16.mxu0 0
        %1921 = vmatpush1.bf16.msra.mxu0 0
        %1922 = vmatprep.subr.bf16.mxu0 %v1898
        %1923 = vmatpush1.bf16.msra.mxu0 %v1897
        %1924 = vmatprep.subr.bf16.mxu0 %v1896
        %1925 = vmatpush1.bf16.msra.mxu0 %v1895
        %1926 = vmatprep.subr.bf16.mxu0 0
        %1927 = vmatpush2.bf16.msra.mxu0 0
        %1928 = vmatprep.subr.bf16.mxu0 0
        %1929 = vmatpush2.bf16.msra.mxu0 0
        %1930 = vmatprep.subr.bf16.mxu0 0
        %1931 = vmatpush2.bf16.msra.mxu0 0
        %1932 = vmatprep.subr.bf16.mxu0 0
        %1933 = vmatpush2.bf16.msra.mxu0 0
        %1934 = vmatprep.subr.bf16.mxu0 0
        %1935 = vmatpush2.bf16.msra.mxu0 0
        %1936 = vmatprep.subr.bf16.mxu0 0
        %1937 = vmatpush2.bf16.msra.mxu0 0
        %1938 = vmatprep.subr.bf16.mxu0 0
        %1939 = vmatpush2.bf16.msra.mxu0 0
        %1940 = vmatprep.subr.bf16.mxu0 0
        %1941 = vmatpush2.bf16.msra.mxu0 0
        %1942 = vmatprep.mubr.bf16.mxu0 0
        %1943 = vmatmul.mubr.bf16.gmra.mxu0 %v1905
        %v1944 = vpop.f32.mrf.mxu0
        %v1945 = vadd.f32 0.0, %v1944
        %v1946 = vpop.f32.mrf.mxu0
        %v1947 = vadd.f32 0.0, %v1946
        %v1948 = vpop.f32.mrf.mxu0
        %v1949 = vadd.f32 0.0, %v1948
        %v1950 = vpop.f32.mrf.mxu0
        %v1951 = vadd.f32 0.0, %v1950
        %1952 = vmatprep.mubr.bf16.mxu0 0
        %1953 = vmatmul.mubr.bf16.gmra.mxu0 %v1908
        %v1954 = vpop.f32.mrf.mxu0
        %v1955 = vadd.f32 0.0, %v1954
        %v1956 = vpop.f32.mrf.mxu0
        %v1957 = vadd.f32 0.0, %v1956
        %v1958 = vpop.f32.mrf.mxu0
        %v1959 = vadd.f32 0.0, %v1958
        %v1960 = vpop.f32.mrf.mxu0
        %v1961 = vadd.f32 0.0, %v1960
        %1962 = vdwg.mxu0
        %v1967 = vunpack.c.l.b16 %v1834
        %v1968 = vunpack.c.l.b16 %v1835
        %v1969 = vunpack.c.l.b16 %v1836
        %v1970 = vunpack.c.l.b16 %v1837
        %v1971 = vpack.c.b16 %v1968, %v1967
        %v1972 = vpack.c.b16 %v1970, %v1969
        %v1977 = vunpack.c.l.b16 %v1830
        %v1978 = vunpack.c.h.b16 %v1830
        %v1979 = vunpack.c.l.b16 %v1831
        %v1980 = vunpack.c.h.b16 %v1831
        %v1981 = vunpack.c.l.b16 %v1832
        %v1982 = vunpack.c.h.b16 %v1832
        %v1983 = vunpack.c.l.b16 %v1833
        %v1984 = vunpack.c.h.b16 %v1833
        %v1985 = vpack.c.b16 %v1979, %v1977
        %v1986 = vpack.c.b16 %v1980, %v1978
        %v1987 = vpack.c.b16 %v1983, %v1981
        %v1988 = vpack.c.b16 %v1984, %v1982
        %v1994 = vsel %vm1903, %v1971, 0
        %v1997 = vsel %vm1903, %v1972, 0
        %1999 = vmatprep.subr.bf16.mxu0 0
        %2000 = vmatpush1.bf16.msra.mxu0 0
        %2001 = vmatprep.subr.bf16.mxu0 0
        %2002 = vmatpush1.bf16.msra.mxu0 0
        %2003 = vmatprep.subr.bf16.mxu0 0
        %2004 = vmatpush1.bf16.msra.mxu0 0
        %2005 = vmatprep.subr.bf16.mxu0 0
        %2006 = vmatpush1.bf16.msra.mxu0 0
        %2007 = vmatprep.subr.bf16.mxu0 0
        %2008 = vmatpush1.bf16.msra.mxu0 0
        %2009 = vmatprep.subr.bf16.mxu0 0
        %2010 = vmatpush1.bf16.msra.mxu0 0
        %2011 = vmatprep.subr.bf16.mxu0 %v1988
        %2012 = vmatpush1.bf16.msra.mxu0 %v1987
        %2013 = vmatprep.subr.bf16.mxu0 %v1986
        %2014 = vmatpush1.bf16.msra.mxu0 %v1985
        %2015 = vmatprep.subr.bf16.mxu0 0
        %2016 = vmatpush2.bf16.msra.mxu0 0
        %2017 = vmatprep.subr.bf16.mxu0 0
        %2018 = vmatpush2.bf16.msra.mxu0 0
        %2019 = vmatprep.subr.bf16.mxu0 0
        %2020 = vmatpush2.bf16.msra.mxu0 0
        %2021 = vmatprep.subr.bf16.mxu0 0
        %2022 = vmatpush2.bf16.msra.mxu0 0
        %2023 = vmatprep.subr.bf16.mxu0 0
        %2024 = vmatpush2.bf16.msra.mxu0 0
        %2025 = vmatprep.subr.bf16.mxu0 0
        %2026 = vmatpush2.bf16.msra.mxu0 0
        %2027 = vmatprep.subr.bf16.mxu0 0
        %2028 = vmatpush2.bf16.msra.mxu0 0
        %2029 = vmatprep.subr.bf16.mxu0 0
        %2030 = vmatpush2.bf16.msra.mxu0 0
        %2031 = vmatprep.mubr.bf16.mxu0 0
        %2032 = vmatmul.mubr.bf16.gmra.mxu0 %v1994
        %v2033 = vpop.f32.mrf.mxu0
        %v2034 = vadd.f32 %v1945, %v2033
        %v2035 = vpop.f32.mrf.mxu0
        %v2036 = vadd.f32 %v1947, %v2035
        %v2037 = vpop.f32.mrf.mxu0
        %v2038 = vadd.f32 %v1949, %v2037
        %v2039 = vpop.f32.mrf.mxu0
        %v2040 = vadd.f32 %v1951, %v2039
        %2041 = vmatprep.mubr.bf16.mxu0 0
        %2042 = vmatmul.mubr.bf16.gmra.mxu0 %v1997
        %v2043 = vpop.f32.mrf.mxu0
        %v2044 = vadd.f32 %v1955, %v2043
        %v2045 = vpop.f32.mrf.mxu0
        %v2046 = vadd.f32 %v1957, %v2045
        %v2047 = vpop.f32.mrf.mxu0
        %v2048 = vadd.f32 %v1959, %v2047
        %v2049 = vpop.f32.mrf.mxu0
        %v2050 = vadd.f32 %v1961, %v2049
        %2051 = vdwg.mxu0
        %v2052 = vmul.bf16 %v1826, %v921
        %v2053 = vmul.bf16 %v1838, %v919
        %v2054 = vmul.bf16 %v1827, %v921
        %v2055 = vmul.bf16 %v1839, %v919
        %v2056 = vmul.bf16 %v1828, %v921
        %v2057 = vmul.bf16 %v1840, %v919
        %v2058 = vmul.bf16 %v1829, %v921
        %v2059 = vmul.bf16 %v1841, %v919
        %s2060 = scalar_lea.vmem %s4, 32
        %v2061 = vld [vmem:[%s2060] sm:$0xf]
        %v2062 = vld [vmem:[%s2060 + $0x4] sm:$0xf]
        %v2063 = vld [vmem:[%s2060 + $0x8] sm:$0xf]
        %v2064 = vld [vmem:[%s2060 + $0xc] sm:$0xf]
        %v2069 = vunpack.c.l.b16 %v2061
        %v2070 = vunpack.c.l.b16 %v2062
        %v2071 = vunpack.c.l.b16 %v2063
        %v2072 = vunpack.c.l.b16 %v2064
        %v2073 = vpack.c.b16 %v2070, %v2069
        %v2074 = vpack.c.b16 %v2072, %v2071
        %v2083 = vunpack.c.l.b16 %v2052
        %v2084 = vunpack.c.h.b16 %v2052
        %v2085 = vunpack.c.l.b16 %v2053
        %v2086 = vunpack.c.l.b16 %v2054
        %v2087 = vunpack.c.h.b16 %v2054
        %v2088 = vunpack.c.l.b16 %v2055
        %v2089 = vunpack.c.l.b16 %v2056
        %v2090 = vunpack.c.h.b16 %v2056
        %v2091 = vunpack.c.l.b16 %v2057
        %v2092 = vunpack.c.l.b16 %v2058
        %v2093 = vunpack.c.h.b16 %v2058
        %v2094 = vunpack.c.l.b16 %v2059
        %v2095 = vpack.c.b16 %v2086, %v2083
        %v2096 = vpack.c.b16 %v2087, %v2084
        %v2097 = vpack.c.b16 %v2088, %v2085
        %v2098 = vpack.c.b16 %v2092, %v2089
        %v2099 = vpack.c.b16 %v2093, %v2090
        %v2100 = vpack.c.b16 %v2094, %v2091
        %2101 = vrot.lane.b32.xlu0 %v2095, 126
        %v2102 = vpop.permute.xlu0 %2101
        %2103 = vrot.lane.b32.xlu0 %v2096, 126
        %v2104 = vpop.permute.xlu0 %2103
        %2105 = vrot.lane.b32.xlu0 %v2097, 126
        %v2106 = vpop.permute.xlu0 %2105
        %2107 = vrot.lane.b32.xlu0 %v2098, 126
        %v2108 = vpop.permute.xlu0 %2107
        %2109 = vrot.lane.b32.xlu0 %v2099, 126
        %v2110 = vpop.permute.xlu0 %2109
        %2111 = vrot.lane.b32.xlu0 %v2100, 126
        %v2112 = vpop.permute.xlu0 %2111
        %v2113 = vsel %vm962, %v2102, %v2104
        %v2114 = vsel %vm962, %v2104, %v2106
        %v2115 = vsel %vm962, %v2108, %v2110
        %v2116 = vsel %vm962, %v2110, %v2112
        %v2122 = vsel %vm1903, %v2073, 0
        %v2125 = vsel %vm1903, %v2074, 0
        %2127 = vmatprep.subr.bf16.mxu0 0
        %2128 = vmatpush1.bf16.msra.mxu0 0
        %2129 = vmatprep.subr.bf16.mxu0 0
        %2130 = vmatpush1.bf16.msra.mxu0 0
        %2131 = vmatprep.subr.bf16.mxu0 0
        %2132 = vmatpush1.bf16.msra.mxu0 0
        %2133 = vmatprep.subr.bf16.mxu0 0
        %2134 = vmatpush1.bf16.msra.mxu0 0
        %2135 = vmatprep.subr.bf16.mxu0 0
        %2136 = vmatpush1.bf16.msra.mxu0 0
        %2137 = vmatprep.subr.bf16.mxu0 0
        %2138 = vmatpush1.bf16.msra.mxu0 0
        %2139 = vmatprep.subr.bf16.mxu0 %v2116
        %2140 = vmatpush1.bf16.msra.mxu0 %v2115
        %2141 = vmatprep.subr.bf16.mxu0 %v2114
        %2142 = vmatpush1.bf16.msra.mxu0 %v2113
        %2143 = vmatprep.subr.bf16.mxu0 0
        %2144 = vmatpush2.bf16.msra.mxu0 0
        %2145 = vmatprep.subr.bf16.mxu0 0
        %2146 = vmatpush2.bf16.msra.mxu0 0
        %2147 = vmatprep.subr.bf16.mxu0 0
        %2148 = vmatpush2.bf16.msra.mxu0 0
        %2149 = vmatprep.subr.bf16.mxu0 0
        %2150 = vmatpush2.bf16.msra.mxu0 0
        %2151 = vmatprep.subr.bf16.mxu0 0
        %2152 = vmatpush2.bf16.msra.mxu0 0
        %2153 = vmatprep.subr.bf16.mxu0 0
        %2154 = vmatpush2.bf16.msra.mxu0 0
        %2155 = vmatprep.subr.bf16.mxu0 0
        %2156 = vmatpush2.bf16.msra.mxu0 0
        %2157 = vmatprep.subr.bf16.mxu0 0
        %2158 = vmatpush2.bf16.msra.mxu0 0
        %2159 = vmatprep.mubr.bf16.mxu0 0
        %2160 = vmatmul.mubr.bf16.gmra.mxu0 %v2122
        %v2161 = vpop.f32.mrf.mxu0
        %v2162 = vadd.f32 0.0, %v2161
        %v2163 = vpop.f32.mrf.mxu0
        %v2164 = vadd.f32 0.0, %v2163
        %v2165 = vpop.f32.mrf.mxu0
        %v2166 = vadd.f32 0.0, %v2165
        %v2167 = vpop.f32.mrf.mxu0
        %v2168 = vadd.f32 0.0, %v2167
        %2169 = vmatprep.mubr.bf16.mxu0 0
        %2170 = vmatmul.mubr.bf16.gmra.mxu0 %v2125
        %v2171 = vpop.f32.mrf.mxu0
        %v2172 = vadd.f32 0.0, %v2171
        %v2173 = vpop.f32.mrf.mxu0
        %v2174 = vadd.f32 0.0, %v2173
        %v2175 = vpop.f32.mrf.mxu0
        %v2176 = vadd.f32 0.0, %v2175
        %v2177 = vpop.f32.mrf.mxu0
        %v2178 = vadd.f32 0.0, %v2177
        %2179 = vdwg.mxu0
        %v2180 = vadd.f32 %v2034, %v2162
        %v2181 = vadd.f32 %v2036, %v2164
        %v2182 = vadd.f32 %v2038, %v2166
        %v2183 = vadd.f32 %v2040, %v2168
        %v2184 = vadd.f32 %v2044, %v2172
        %v2185 = vadd.f32 %v2046, %v2174
        %v2186 = vadd.f32 %v2048, %v2176
        %v2187 = vadd.f32 %v2050, %v2178
        %v2188 = vld [vmem:[#allocation3] sm:$0xff]
        %v2189 = vld [vmem:[#allocation3 + $0x8] sm:$0xf]
        %v2190 = vld [vmem:[#allocation3 + $0xc] sm:$0xff]
        %v2191 = vld [vmem:[#allocation3 + $0x14] sm:$0xf]
        %v2192 = vld [vmem:[#allocation3 + $0x18] sm:$0xff]
        %v2193 = vld [vmem:[#allocation3 + $0x20] sm:$0xf]
        %v2194 = vld [vmem:[#allocation3 + $0x24] sm:$0xff]
        %v2195 = vld [vmem:[#allocation3 + $0x2c] sm:$0xf]
        %v2196 = vmul.bf16 %v2188, %v1042
        %v2197 = vmul.bf16 %v2189, %v1040
        %v2198 = vmul.bf16 %v2190, %v1042
        %v2199 = vmul.bf16 %v2191, %v1040
        %v2200 = vmul.bf16 %v2192, %v1042
        %v2201 = vmul.bf16 %v2193, %v1040
        %v2202 = vmul.bf16 %v2194, %v1042
        %v2203 = vmul.bf16 %v2195, %v1040
        %s2204 = scalar_lea.vmem %s4, 48
        %v2205 = vld [vmem:[%s2204] sm:$0xf]
        %v2206 = vld [vmem:[%s2204 + $0x4] sm:$0xf]
        %v2207 = vld [vmem:[%s2204 + $0x8] sm:$0xf]
        %v2208 = vld [vmem:[%s2204 + $0xc] sm:$0xf]
        %v2213 = vunpack.c.l.b16 %v2205
        %v2214 = vunpack.c.l.b16 %v2206
        %v2215 = vunpack.c.l.b16 %v2207
        %v2216 = vunpack.c.l.b16 %v2208
        %v2217 = vpack.c.b16 %v2214, %v2213
        %v2218 = vpack.c.b16 %v2216, %v2215
        %v2227 = vunpack.c.l.b16 %v2196
        %v2228 = vunpack.c.h.b16 %v2196
        %v2229 = vunpack.c.l.b16 %v2197
        %v2230 = vunpack.c.l.b16 %v2198
        %v2231 = vunpack.c.h.b16 %v2198
        %v2232 = vunpack.c.l.b16 %v2199
        %v2233 = vunpack.c.l.b16 %v2200
        %v2234 = vunpack.c.h.b16 %v2200
        %v2235 = vunpack.c.l.b16 %v2201
        %v2236 = vunpack.c.l.b16 %v2202
        %v2237 = vunpack.c.h.b16 %v2202
        %v2238 = vunpack.c.l.b16 %v2203
        %v2239 = vpack.c.b16 %v2230, %v2227
        %v2240 = vpack.c.b16 %v2231, %v2228
        %v2241 = vpack.c.b16 %v2232, %v2229
        %v2242 = vpack.c.b16 %v2236, %v2233
        %v2243 = vpack.c.b16 %v2237, %v2234
        %v2244 = vpack.c.b16 %v2238, %v2235
        %2245 = vrot.lane.b32.xlu0 %v2239, 112
        %v2246 = vpop.permute.xlu0 %2245
        %2247 = vrot.lane.b32.xlu0 %v2240, 112
        %v2248 = vpop.permute.xlu0 %2247
        %2249 = vrot.lane.b32.xlu0 %v2241, 112
        %v2250 = vpop.permute.xlu0 %2249
        %2251 = vrot.lane.b32.xlu0 %v2242, 112
        %v2252 = vpop.permute.xlu0 %2251
        %2253 = vrot.lane.b32.xlu0 %v2243, 112
        %v2254 = vpop.permute.xlu0 %2253
        %2255 = vrot.lane.b32.xlu0 %v2244, 112
        %v2256 = vpop.permute.xlu0 %2255
        %v2257 = vsel %vm1083, %v2246, %v2248
        %v2258 = vsel %vm1083, %v2248, %v2250
        %v2259 = vsel %vm1083, %v2252, %v2254
        %v2260 = vsel %vm1083, %v2254, %v2256
        %v2266 = vsel %vm1903, %v2217, 0
        %v2269 = vsel %vm1903, %v2218, 0
        %2271 = vmatprep.subr.bf16.mxu0 0
        %2272 = vmatpush1.bf16.msra.mxu0 0
        %2273 = vmatprep.subr.bf16.mxu0 0
        %2274 = vmatpush1.bf16.msra.mxu0 0
        %2275 = vmatprep.subr.bf16.mxu0 0
        %2276 = vmatpush1.bf16.msra.mxu0 0
        %2277 = vmatprep.subr.bf16.mxu0 0
        %2278 = vmatpush1.bf16.msra.mxu0 0
        %2279 = vmatprep.subr.bf16.mxu0 0
        %2280 = vmatpush1.bf16.msra.mxu0 0
        %2281 = vmatprep.subr.bf16.mxu0 0
        %2282 = vmatpush1.bf16.msra.mxu0 0
        %2283 = vmatprep.subr.bf16.mxu0 %v2260
        %2284 = vmatpush1.bf16.msra.mxu0 %v2259
        %2285 = vmatprep.subr.bf16.mxu0 %v2258
        %2286 = vmatpush1.bf16.msra.mxu0 %v2257
        %2287 = vmatprep.subr.bf16.mxu0 0
        %2288 = vmatpush2.bf16.msra.mxu0 0
        %2289 = vmatprep.subr.bf16.mxu0 0
        %2290 = vmatpush2.bf16.msra.mxu0 0
        %2291 = vmatprep.subr.bf16.mxu0 0
        %2292 = vmatpush2.bf16.msra.mxu0 0
        %2293 = vmatprep.subr.bf16.mxu0 0
        %2294 = vmatpush2.bf16.msra.mxu0 0
        %2295 = vmatprep.subr.bf16.mxu0 0
        %2296 = vmatpush2.bf16.msra.mxu0 0
        %2297 = vmatprep.subr.bf16.mxu0 0
        %2298 = vmatpush2.bf16.msra.mxu0 0
        %2299 = vmatprep.subr.bf16.mxu0 0
        %2300 = vmatpush2.bf16.msra.mxu0 0
        %2301 = vmatprep.subr.bf16.mxu0 0
        %2302 = vmatpush2.bf16.msra.mxu0 0
        %2303 = vmatprep.mubr.bf16.mxu0 0
        %2304 = vmatmul.mubr.bf16.gmra.mxu0 %v2266
        %v2305 = vpop.f32.mrf.mxu0
        %v2306 = vadd.f32 0.0, %v2305
        %v2307 = vpop.f32.mrf.mxu0
        %v2308 = vadd.f32 0.0, %v2307
        %v2309 = vpop.f32.mrf.mxu0
        %v2310 = vadd.f32 0.0, %v2309
        %v2311 = vpop.f32.mrf.mxu0
        %v2312 = vadd.f32 0.0, %v2311
        %2313 = vmatprep.mubr.bf16.mxu0 0
        %2314 = vmatmul.mubr.bf16.gmra.mxu0 %v2269
        %v2315 = vpop.f32.mrf.mxu0
        %v2316 = vadd.f32 0.0, %v2315
        %v2317 = vpop.f32.mrf.mxu0
        %v2318 = vadd.f32 0.0, %v2317
        %v2319 = vpop.f32.mrf.mxu0
        %v2320 = vadd.f32 0.0, %v2319
        %v2321 = vpop.f32.mrf.mxu0
        %v2322 = vadd.f32 0.0, %v2321
        %2323 = vdwg.mxu0
        %v2324 = vadd.f32 %v2180, %v2306
        %v2325 = vadd.f32 %v2181, %v2308
        %v2326 = vadd.f32 %v2182, %v2310
        %v2327 = vadd.f32 %v2183, %v2312
        %v2328 = vadd.f32 %v2184, %v2316
        %v2329 = vadd.f32 %v2185, %v2318
        %v2330 = vadd.f32 %v2186, %v2320
        %v2331 = vadd.f32 %v2187, %v2322
        %s2332 = scalar_lea.vmem %s4, 64
        %v2333 = vld [vmem:[%s2332] sm:$0xf]
        %v2334 = vld [vmem:[%s2332 + $0x4] sm:$0xf]
        %v2335 = vld [vmem:[%s2332 + $0x8] sm:$0xf]
        %v2336 = vld [vmem:[%s2332 + $0xc] sm:$0xf]
        %v2341 = vunpack.c.l.b16 %v2333
        %v2342 = vunpack.c.l.b16 %v2334
        %v2343 = vunpack.c.l.b16 %v2335
        %v2344 = vunpack.c.l.b16 %v2336
        %v2345 = vpack.c.b16 %v2342, %v2341
        %v2346 = vpack.c.b16 %v2344, %v2343
        %v2348 = vsel %vm1903, %v2345, 0
        %v2351 = vsel %vm1903, %v2346, 0
        %2353 = vmatprep.subr.bf16.mxu0 0
        %2354 = vmatpush1.bf16.msra.mxu0 0
        %2355 = vmatprep.subr.bf16.mxu0 0
        %2356 = vmatpush1.bf16.msra.mxu0 0
        %2357 = vmatprep.subr.bf16.mxu0 0
        %2358 = vmatpush1.bf16.msra.mxu0 0
        %2359 = vmatprep.subr.bf16.mxu0 0
        %2360 = vmatpush1.bf16.msra.mxu0 0
        %2361 = vmatprep.subr.bf16.mxu0 0
        %2362 = vmatpush1.bf16.msra.mxu0 0
        %2363 = vmatprep.subr.bf16.mxu0 0
        %2364 = vmatpush1.bf16.msra.mxu0 0
        %2365 = vmatprep.subr.bf16.mxu0 %v1777
        %2366 = vmatpush1.bf16.msra.mxu0 %v1776
        %2367 = vmatprep.subr.bf16.mxu0 %v1775
        %2368 = vmatpush1.bf16.msra.mxu0 %v1774
        %2369 = vmatprep.subr.bf16.mxu0 0
        %2370 = vmatpush2.bf16.msra.mxu0 0
        %2371 = vmatprep.subr.bf16.mxu0 0
        %2372 = vmatpush2.bf16.msra.mxu0 0
        %2373 = vmatprep.subr.bf16.mxu0 0
        %2374 = vmatpush2.bf16.msra.mxu0 0
        %2375 = vmatprep.subr.bf16.mxu0 0
        %2376 = vmatpush2.bf16.msra.mxu0 0
        %2377 = vmatprep.subr.bf16.mxu0 0
        %2378 = vmatpush2.bf16.msra.mxu0 0
        %2379 = vmatprep.subr.bf16.mxu0 0
        %2380 = vmatpush2.bf16.msra.mxu0 0
        %2381 = vmatprep.subr.bf16.mxu0 0
        %2382 = vmatpush2.bf16.msra.mxu0 0
        %2383 = vmatprep.subr.bf16.mxu0 0
        %2384 = vmatpush2.bf16.msra.mxu0 0
        %2385 = vmatprep.mubr.bf16.mxu0 0
        %2386 = vmatmul.mubr.bf16.gmra.mxu0 %v2348
        %v2387 = vpop.f32.mrf.mxu0
        %v2388 = vadd.f32 0.0, %v2387
        %v2389 = vpop.f32.mrf.mxu0
        %v2390 = vadd.f32 0.0, %v2389
        %v2391 = vpop.f32.mrf.mxu0
        %v2392 = vadd.f32 0.0, %v2391
        %v2393 = vpop.f32.mrf.mxu0
        %v2394 = vadd.f32 0.0, %v2393
        %2395 = vmatprep.mubr.bf16.mxu0 0
        %2396 = vmatmul.mubr.bf16.gmra.mxu0 %v2351
        %v2397 = vpop.f32.mrf.mxu0
        %v2398 = vadd.f32 0.0, %v2397
        %v2399 = vpop.f32.mrf.mxu0
        %v2400 = vadd.f32 0.0, %v2399
        %v2401 = vpop.f32.mrf.mxu0
        %v2402 = vadd.f32 0.0, %v2401
        %v2403 = vpop.f32.mrf.mxu0
        %v2404 = vadd.f32 0.0, %v2403
        %2405 = vdwg.mxu0
        %v2406 = vadd.f32 %v2324, %v2388
        %v2407 = vadd.f32 %v2325, %v2390
        %v2408 = vadd.f32 %v2326, %v2392
        %v2409 = vadd.f32 %v2327, %v2394
        %v2410 = vadd.f32 %v2328, %v2398
        %v2411 = vadd.f32 %v2329, %v2400
        %v2412 = vadd.f32 %v2330, %v2402
        %v2413 = vadd.f32 %v2331, %v2404
        %v2414 = vmul.bf16 %v2188, %v1241
        %v2415 = vmul.bf16 %v2189, %v1239
        %v2416 = vmul.bf16 %v2190, %v1241
        %v2417 = vmul.bf16 %v2191, %v1239
        %v2418 = vmul.bf16 %v2192, %v1241
        %v2419 = vmul.bf16 %v2193, %v1239
        %v2420 = vmul.bf16 %v2194, %v1241
        %v2421 = vmul.bf16 %v2195, %v1239
        %s2422 = scalar_lea.vmem %s4, 80
        %v2423 = vld [vmem:[%s2422] sm:$0xf]
        %v2424 = vld [vmem:[%s2422 + $0x4] sm:$0xf]
        %v2425 = vld [vmem:[%s2422 + $0x8] sm:$0xf]
        %v2426 = vld [vmem:[%s2422 + $0xc] sm:$0xf]
        %v2431 = vunpack.c.l.b16 %v2423
        %v2432 = vunpack.c.l.b16 %v2424
        %v2433 = vunpack.c.l.b16 %v2425
        %v2434 = vunpack.c.l.b16 %v2426
        %v2435 = vpack.c.b16 %v2432, %v2431
        %v2436 = vpack.c.b16 %v2434, %v2433
        %v2445 = vunpack.c.l.b16 %v2414
        %v2446 = vunpack.c.h.b16 %v2414
        %v2447 = vunpack.c.l.b16 %v2415
        %v2448 = vunpack.c.l.b16 %v2416
        %v2449 = vunpack.c.h.b16 %v2416
        %v2450 = vunpack.c.l.b16 %v2417
        %v2451 = vunpack.c.l.b16 %v2418
        %v2452 = vunpack.c.h.b16 %v2418
        %v2453 = vunpack.c.l.b16 %v2419
        %v2454 = vunpack.c.l.b16 %v2420
        %v2455 = vunpack.c.h.b16 %v2420
        %v2456 = vunpack.c.l.b16 %v2421
        %v2457 = vpack.c.b16 %v2448, %v2445
        %v2458 = vpack.c.b16 %v2449, %v2446
        %v2459 = vpack.c.b16 %v2450, %v2447
        %v2460 = vpack.c.b16 %v2454, %v2451
        %v2461 = vpack.c.b16 %v2455, %v2452
        %v2462 = vpack.c.b16 %v2456, %v2453
        %2463 = vrot.lane.b32.xlu0 %v2457, 110
        %v2464 = vpop.permute.xlu0 %2463
        %2465 = vrot.lane.b32.xlu0 %v2458, 110
        %v2466 = vpop.permute.xlu0 %2465
        %2467 = vrot.lane.b32.xlu0 %v2459, 110
        %v2468 = vpop.permute.xlu0 %2467
        %2469 = vrot.lane.b32.xlu0 %v2460, 110
        %v2470 = vpop.permute.xlu0 %2469
        %2471 = vrot.lane.b32.xlu0 %v2461, 110
        %v2472 = vpop.permute.xlu0 %2471
        %2473 = vrot.lane.b32.xlu0 %v2462, 110
        %v2474 = vpop.permute.xlu0 %2473
        %v2475 = vsel %vm1282, %v2464, %v2466
        %v2476 = vsel %vm1282, %v2466, %v2468
        %v2477 = vsel %vm1282, %v2470, %v2472
        %v2478 = vsel %vm1282, %v2472, %v2474
        %v2484 = vsel %vm1903, %v2435, 0
        %v2487 = vsel %vm1903, %v2436, 0
        %2489 = vmatprep.subr.bf16.mxu0 0
        %2490 = vmatpush1.bf16.msra.mxu0 0
        %2491 = vmatprep.subr.bf16.mxu0 0
        %2492 = vmatpush1.bf16.msra.mxu0 0
        %2493 = vmatprep.subr.bf16.mxu0 0
        %2494 = vmatpush1.bf16.msra.mxu0 0
        %2495 = vmatprep.subr.bf16.mxu0 0
        %2496 = vmatpush1.bf16.msra.mxu0 0
        %2497 = vmatprep.subr.bf16.mxu0 0
        %2498 = vmatpush1.bf16.msra.mxu0 0
        %2499 = vmatprep.subr.bf16.mxu0 0
        %2500 = vmatpush1.bf16.msra.mxu0 0
        %2501 = vmatprep.subr.bf16.mxu0 %v2478
        %2502 = vmatpush1.bf16.msra.mxu0 %v2477
        %2503 = vmatprep.subr.bf16.mxu0 %v2476
        %2504 = vmatpush1.bf16.msra.mxu0 %v2475
        %2505 = vmatprep.subr.bf16.mxu0 0
        %2506 = vmatpush2.bf16.msra.mxu0 0
        %2507 = vmatprep.subr.bf16.mxu0 0
        %2508 = vmatpush2.bf16.msra.mxu0 0
        %2509 = vmatprep.subr.bf16.mxu0 0
        %2510 = vmatpush2.bf16.msra.mxu0 0
        %2511 = vmatprep.subr.bf16.mxu0 0
        %2512 = vmatpush2.bf16.msra.mxu0 0
        %2513 = vmatprep.subr.bf16.mxu0 0
        %2514 = vmatpush2.bf16.msra.mxu0 0
        %2515 = vmatprep.subr.bf16.mxu0 0
        %2516 = vmatpush2.bf16.msra.mxu0 0
        %2517 = vmatprep.subr.bf16.mxu0 0
        %2518 = vmatpush2.bf16.msra.mxu0 0
        %2519 = vmatprep.subr.bf16.mxu0 0
        %2520 = vmatpush2.bf16.msra.mxu0 0
        %2521 = vmatprep.mubr.bf16.mxu0 0
        %2522 = vmatmul.mubr.bf16.gmra.mxu0 %v2484
        %v2523 = vpop.f32.mrf.mxu0
        %v2524 = vadd.f32 0.0, %v2523
        %v2525 = vpop.f32.mrf.mxu0
        %v2526 = vadd.f32 0.0, %v2525
        %v2527 = vpop.f32.mrf.mxu0
        %v2528 = vadd.f32 0.0, %v2527
        %v2529 = vpop.f32.mrf.mxu0
        %v2530 = vadd.f32 0.0, %v2529
        %2531 = vmatprep.mubr.bf16.mxu0 0
        %2532 = vmatmul.mubr.bf16.gmra.mxu0 %v2487
        %v2533 = vpop.f32.mrf.mxu0
        %v2534 = vadd.f32 0.0, %v2533
        %v2535 = vpop.f32.mrf.mxu0
        %v2536 = vadd.f32 0.0, %v2535
        %v2537 = vpop.f32.mrf.mxu0
        %v2538 = vadd.f32 0.0, %v2537
        %v2539 = vpop.f32.mrf.mxu0
        %v2540 = vadd.f32 0.0, %v2539
        %2541 = vdwg.mxu0
        %v2542 = vadd.f32 %v2406, %v2524
        %v2543 = vadd.f32 %v2407, %v2526
        %v2544 = vadd.f32 %v2408, %v2528
        %v2545 = vadd.f32 %v2409, %v2530
        %v2546 = vadd.f32 %v2410, %v2534
        %v2547 = vadd.f32 %v2411, %v2536
        %v2548 = vadd.f32 %v2412, %v2538
        %v2549 = vadd.f32 %v2413, %v2540
        %v2550 = vmul.bf16 %v2188, %v1358
        %v2551 = vmul.bf16 %v2189, %v1356
        %v2552 = vmul.bf16 %v2190, %v1358
        %v2553 = vmul.bf16 %v2191, %v1356
        %v2554 = vmul.bf16 %v2192, %v1358
        %v2555 = vmul.bf16 %v2193, %v1356
        %v2556 = vmul.bf16 %v2194, %v1358
        %v2557 = vmul.bf16 %v2195, %v1356
        %s2558 = scalar_lea.vmem %s4, 96
        %v2559 = vld [vmem:[%s2558] sm:$0xf]
        %v2560 = vld [vmem:[%s2558 + $0x4] sm:$0xf]
        %v2561 = vld [vmem:[%s2558 + $0x8] sm:$0xf]
        %v2562 = vld [vmem:[%s2558 + $0xc] sm:$0xf]
        %v2567 = vunpack.c.l.b16 %v2559
        %v2568 = vunpack.c.l.b16 %v2560
        %v2569 = vunpack.c.l.b16 %v2561
        %v2570 = vunpack.c.l.b16 %v2562
        %v2571 = vpack.c.b16 %v2568, %v2567
        %v2572 = vpack.c.b16 %v2570, %v2569
        %v2581 = vunpack.c.l.b16 %v2550
        %v2582 = vunpack.c.h.b16 %v2550
        %v2583 = vunpack.c.l.b16 %v2551
        %v2584 = vunpack.c.l.b16 %v2552
        %v2585 = vunpack.c.h.b16 %v2552
        %v2586 = vunpack.c.l.b16 %v2553
        %v2587 = vunpack.c.l.b16 %v2554
        %v2588 = vunpack.c.h.b16 %v2554
        %v2589 = vunpack.c.l.b16 %v2555
        %v2590 = vunpack.c.l.b16 %v2556
        %v2591 = vunpack.c.h.b16 %v2556
        %v2592 = vunpack.c.l.b16 %v2557
        %v2593 = vpack.c.b16 %v2584, %v2581
        %v2594 = vpack.c.b16 %v2585, %v2582
        %v2595 = vpack.c.b16 %v2586, %v2583
        %v2596 = vpack.c.b16 %v2590, %v2587
        %v2597 = vpack.c.b16 %v2591, %v2588
        %v2598 = vpack.c.b16 %v2592, %v2589
        %2599 = vrot.lane.b32.xlu0 %v2593, 96
        %v2600 = vpop.permute.xlu0 %2599
        %2601 = vrot.lane.b32.xlu0 %v2594, 96
        %v2602 = vpop.permute.xlu0 %2601
        %2603 = vrot.lane.b32.xlu0 %v2595, 96
        %v2604 = vpop.permute.xlu0 %2603
        %2605 = vrot.lane.b32.xlu0 %v2596, 96
        %v2606 = vpop.permute.xlu0 %2605
        %2607 = vrot.lane.b32.xlu0 %v2597, 96
        %v2608 = vpop.permute.xlu0 %2607
        %2609 = vrot.lane.b32.xlu0 %v2598, 96
        %v2610 = vpop.permute.xlu0 %2609
        %v2611 = vsel %vm1399, %v2600, %v2602
        %v2612 = vsel %vm1399, %v2602, %v2604
        %v2613 = vsel %vm1399, %v2606, %v2608
        %v2614 = vsel %vm1399, %v2608, %v2610
        %v2620 = vsel %vm1903, %v2571, 0
        %v2623 = vsel %vm1903, %v2572, 0
        %2625 = vmatprep.subr.bf16.mxu0 0
        %2626 = vmatpush1.bf16.msra.mxu0 0
        %2627 = vmatprep.subr.bf16.mxu0 0
        %2628 = vmatpush1.bf16.msra.mxu0 0
        %2629 = vmatprep.subr.bf16.mxu0 0
        %2630 = vmatpush1.bf16.msra.mxu0 0
        %2631 = vmatprep.subr.bf16.mxu0 0
        %2632 = vmatpush1.bf16.msra.mxu0 0
        %2633 = vmatprep.subr.bf16.mxu0 0
        %2634 = vmatpush1.bf16.msra.mxu0 0
        %2635 = vmatprep.subr.bf16.mxu0 0
        %2636 = vmatpush1.bf16.msra.mxu0 0
        %2637 = vmatprep.subr.bf16.mxu0 %v2614
        %2638 = vmatpush1.bf16.msra.mxu0 %v2613
        %2639 = vmatprep.subr.bf16.mxu0 %v2612
        %2640 = vmatpush1.bf16.msra.mxu0 %v2611
        %2641 = vmatprep.subr.bf16.mxu0 0
        %2642 = vmatpush2.bf16.msra.mxu0 0
        %2643 = vmatprep.subr.bf16.mxu0 0
        %2644 = vmatpush2.bf16.msra.mxu0 0
        %2645 = vmatprep.subr.bf16.mxu0 0
        %2646 = vmatpush2.bf16.msra.mxu0 0
        %2647 = vmatprep.subr.bf16.mxu0 0
        %2648 = vmatpush2.bf16.msra.mxu0 0
        %2649 = vmatprep.subr.bf16.mxu0 0
        %2650 = vmatpush2.bf16.msra.mxu0 0
        %2651 = vmatprep.subr.bf16.mxu0 0
        %2652 = vmatpush2.bf16.msra.mxu0 0
        %2653 = vmatprep.subr.bf16.mxu0 0
        %2654 = vmatpush2.bf16.msra.mxu0 0
        %2655 = vmatprep.subr.bf16.mxu0 0
        %2656 = vmatpush2.bf16.msra.mxu0 0
        %2657 = vmatprep.mubr.bf16.mxu0 0
        %2658 = vmatmul.mubr.bf16.gmra.mxu0 %v2620
        %v2659 = vpop.f32.mrf.mxu0
        %v2660 = vadd.f32 0.0, %v2659
        %v2661 = vpop.f32.mrf.mxu0
        %v2662 = vadd.f32 0.0, %v2661
        %v2663 = vpop.f32.mrf.mxu0
        %v2664 = vadd.f32 0.0, %v2663
        %v2665 = vpop.f32.mrf.mxu0
        %v2666 = vadd.f32 0.0, %v2665
        %2667 = vmatprep.mubr.bf16.mxu0 0
        %2668 = vmatmul.mubr.bf16.gmra.mxu0 %v2623
        %v2669 = vpop.f32.mrf.mxu0
        %v2670 = vadd.f32 0.0, %v2669
        %v2671 = vpop.f32.mrf.mxu0
        %v2672 = vadd.f32 0.0, %v2671
        %v2673 = vpop.f32.mrf.mxu0
        %v2674 = vadd.f32 0.0, %v2673
        %v2675 = vpop.f32.mrf.mxu0
        %v2676 = vadd.f32 0.0, %v2675
        %2677 = vdwg.mxu0
        %v2678 = vadd.f32 %v2542, %v2660
        %v2679 = vadd.f32 %v2543, %v2662
        %v2680 = vadd.f32 %v2544, %v2664
        %v2681 = vadd.f32 %v2545, %v2666
        %v2682 = vadd.f32 %v2546, %v2670
        %v2683 = vadd.f32 %v2547, %v2672
        %v2684 = vadd.f32 %v2548, %v2674
        %v2685 = vadd.f32 %v2549, %v2676
        %s2686 = scalar_lea.vmem %s4, 112
        %v2687 = vld [vmem:[%s2686] sm:$0xf]
        %v2688 = vld [vmem:[%s2686 + $0x4] sm:$0xf]
        %v2689 = vld [vmem:[%s2686 + $0x8] sm:$0xf]
        %v2690 = vld [vmem:[%s2686 + $0xc] sm:$0xf]
        %v2695 = vunpack.c.l.b16 %v2687
        %v2696 = vunpack.c.l.b16 %v2688
        %v2697 = vunpack.c.l.b16 %v2689
        %v2698 = vunpack.c.l.b16 %v2690
        %v2699 = vpack.c.b16 %v2696, %v2695
        %v2700 = vpack.c.b16 %v2698, %v2697
        %v2709 = vunpack.c.l.b16 %v2188
        %v2710 = vunpack.c.h.b16 %v2188
        %v2711 = vunpack.c.l.b16 %v2189
        %v2712 = vunpack.c.l.b16 %v2190
        %v2713 = vunpack.c.h.b16 %v2190
        %v2714 = vunpack.c.l.b16 %v2191
        %v2715 = vunpack.c.l.b16 %v2192
        %v2716 = vunpack.c.h.b16 %v2192
        %v2717 = vunpack.c.l.b16 %v2193
        %v2718 = vunpack.c.l.b16 %v2194
        %v2719 = vunpack.c.h.b16 %v2194
        %v2720 = vunpack.c.l.b16 %v2195
        %v2721 = vpack.c.b16 %v2712, %v2709
        %v2722 = vpack.c.b16 %v2713, %v2710
        %v2723 = vpack.c.b16 %v2714, %v2711
        %v2724 = vpack.c.b16 %v2718, %v2715
        %v2725 = vpack.c.b16 %v2719, %v2716
        %v2726 = vpack.c.b16 %v2720, %v2717
        %2727 = vrot.lane.b32.xlu0 %v2721, 95
        %v2728 = vpop.permute.xlu0 %2727
        %2729 = vrot.lane.b32.xlu0 %v2722, 95
        %v2730 = vpop.permute.xlu0 %2729
        %2731 = vrot.lane.b32.xlu0 %v2723, 95
        %v2732 = vpop.permute.xlu0 %2731
        %2733 = vrot.lane.b32.xlu0 %v2724, 95
        %v2734 = vpop.permute.xlu0 %2733
        %2735 = vrot.lane.b32.xlu0 %v2725, 95
        %v2736 = vpop.permute.xlu0 %2735
        %2737 = vrot.lane.b32.xlu0 %v2726, 95
        %v2738 = vpop.permute.xlu0 %2737
        %v2739 = vsel %vm1505, %v2728, %v2730
        %v2740 = vsel %vm1505, %v2730, %v2732
        %v2741 = vsel %vm1505, %v2734, %v2736
        %v2742 = vsel %vm1505, %v2736, %v2738
        %v2748 = vsel %vm1903, %v2699, 0
        %v2751 = vsel %vm1903, %v2700, 0
        %2753 = vmatprep.subr.bf16.mxu0 0
        %2754 = vmatpush1.bf16.msra.mxu0 0
        %2755 = vmatprep.subr.bf16.mxu0 0
        %2756 = vmatpush1.bf16.msra.mxu0 0
        %2757 = vmatprep.subr.bf16.mxu0 0
        %2758 = vmatpush1.bf16.msra.mxu0 0
        %2759 = vmatprep.subr.bf16.mxu0 0
        %2760 = vmatpush1.bf16.msra.mxu0 0
        %2761 = vmatprep.subr.bf16.mxu0 0
        %2762 = vmatpush1.bf16.msra.mxu0 0
        %2763 = vmatprep.subr.bf16.mxu0 0
        %2764 = vmatpush1.bf16.msra.mxu0 0
        %2765 = vmatprep.subr.bf16.mxu0 %v2742
        %2766 = vmatpush1.bf16.msra.mxu0 %v2741
        %2767 = vmatprep.subr.bf16.mxu0 %v2740
        %2768 = vmatpush1.bf16.msra.mxu0 %v2739
        %2769 = vmatprep.subr.bf16.mxu0 0
        %2770 = vmatpush2.bf16.msra.mxu0 0
        %2771 = vmatprep.subr.bf16.mxu0 0
        %2772 = vmatpush2.bf16.msra.mxu0 0
        %2773 = vmatprep.subr.bf16.mxu0 0
        %2774 = vmatpush2.bf16.msra.mxu0 0
        %2775 = vmatprep.subr.bf16.mxu0 0
        %2776 = vmatpush2.bf16.msra.mxu0 0
        %2777 = vmatprep.subr.bf16.mxu0 0
        %2778 = vmatpush2.bf16.msra.mxu0 0
        %2779 = vmatprep.subr.bf16.mxu0 0
        %2780 = vmatpush2.bf16.msra.mxu0 0
        %2781 = vmatprep.subr.bf16.mxu0 0
        %2782 = vmatpush2.bf16.msra.mxu0 0
        %2783 = vmatprep.subr.bf16.mxu0 0
        %2784 = vmatpush2.bf16.msra.mxu0 0
        %2785 = vmatprep.mubr.bf16.mxu0 0
        %2786 = vmatmul.mubr.bf16.gmra.mxu0 %v2748
        %v2787 = vpop.f32.mrf.mxu0
        %v2788 = vadd.f32 0.0, %v2787
        %v2789 = vpop.f32.mrf.mxu0
        %v2790 = vadd.f32 0.0, %v2789
        %v2791 = vpop.f32.mrf.mxu0
        %v2792 = vadd.f32 0.0, %v2791
        %v2793 = vpop.f32.mrf.mxu0
        %v2794 = vadd.f32 0.0, %v2793
        %2795 = vmatprep.mubr.bf16.mxu0 0
        %2796 = vmatmul.mubr.bf16.gmra.mxu0 %v2751
        %v2797 = vpop.f32.mrf.mxu0
        %v2798 = vadd.f32 0.0, %v2797
        %v2799 = vpop.f32.mrf.mxu0
        %v2800 = vadd.f32 0.0, %v2799
        %v2801 = vpop.f32.mrf.mxu0
        %v2802 = vadd.f32 0.0, %v2801
        %v2803 = vpop.f32.mrf.mxu0
        %v2804 = vadd.f32 0.0, %v2803
        %2805 = vdwg.mxu0
        %v2806 = vadd.f32 %v2678, %v2788
        %v2807 = vadd.f32 %v2679, %v2790
        %v2808 = vadd.f32 %v2680, %v2792
        %v2809 = vadd.f32 %v2681, %v2794
        %v2810 = vadd.f32 %v2682, %v2798
        %v2811 = vadd.f32 %v2683, %v2800
        %v2812 = vadd.f32 %v2684, %v2802
        %v2813 = vadd.f32 %v2685, %v2804
        %v2814 = vmul.bf16 %v2188, %v1581
        %v2815 = vmul.bf16 %v2189, %v1579
        %v2816 = vmul.bf16 %v2190, %v1581
        %v2817 = vmul.bf16 %v2191, %v1579
        %v2818 = vmul.bf16 %v2192, %v1581
        %v2819 = vmul.bf16 %v2193, %v1579
        %v2820 = vmul.bf16 %v2194, %v1581
        %v2821 = vmul.bf16 %v2195, %v1579
        %s2822 = scalar_lea.vmem %s4, 128
        %v2823 = vld [vmem:[%s2822] sm:$0xf]
        %v2824 = vld [vmem:[%s2822 + $0x4] sm:$0xf]
        %v2825 = vld [vmem:[%s2822 + $0x8] sm:$0xf]
        %v2826 = vld [vmem:[%s2822 + $0xc] sm:$0xf]
        %v2831 = vunpack.c.l.b16 %v2823
        %v2832 = vunpack.c.l.b16 %v2824
        %v2833 = vunpack.c.l.b16 %v2825
        %v2834 = vunpack.c.l.b16 %v2826
        %v2835 = vpack.c.b16 %v2832, %v2831
        %v2836 = vpack.c.b16 %v2834, %v2833
        %v2845 = vunpack.c.l.b16 %v2814
        %v2846 = vunpack.c.h.b16 %v2814
        %v2847 = vunpack.c.l.b16 %v2815
        %v2848 = vunpack.c.l.b16 %v2816
        %v2849 = vunpack.c.h.b16 %v2816
        %v2850 = vunpack.c.l.b16 %v2817
        %v2851 = vunpack.c.l.b16 %v2818
        %v2852 = vunpack.c.h.b16 %v2818
        %v2853 = vunpack.c.l.b16 %v2819
        %v2854 = vunpack.c.l.b16 %v2820
        %v2855 = vunpack.c.h.b16 %v2820
        %v2856 = vunpack.c.l.b16 %v2821
        %v2857 = vpack.c.b16 %v2848, %v2845
        %v2858 = vpack.c.b16 %v2849, %v2846
        %v2859 = vpack.c.b16 %v2850, %v2847
        %v2860 = vpack.c.b16 %v2854, %v2851
        %v2861 = vpack.c.b16 %v2855, %v2852
        %v2862 = vpack.c.b16 %v2856, %v2853
        %2863 = vrot.lane.b32.xlu0 %v2857, 94
        %v2864 = vpop.permute.xlu0 %2863
        %2865 = vrot.lane.b32.xlu0 %v2858, 94
        %v2866 = vpop.permute.xlu0 %2865
        %2867 = vrot.lane.b32.xlu0 %v2859, 94
        %v2868 = vpop.permute.xlu0 %2867
        %2869 = vrot.lane.b32.xlu0 %v2860, 94
        %v2870 = vpop.permute.xlu0 %2869
        %2871 = vrot.lane.b32.xlu0 %v2861, 94
        %v2872 = vpop.permute.xlu0 %2871
        %2873 = vrot.lane.b32.xlu0 %v2862, 94
        %v2874 = vpop.permute.xlu0 %2873
        %v2875 = vsel %vm1622, %v2864, %v2866
        %v2876 = vsel %vm1622, %v2866, %v2868
        %v2877 = vsel %vm1622, %v2870, %v2872
        %v2878 = vsel %vm1622, %v2872, %v2874
        %v2884 = vsel %vm1903, %v2835, 0
        %v2887 = vsel %vm1903, %v2836, 0
        %2889 = vmatprep.subr.bf16.mxu0 0
        %2890 = vmatpush1.bf16.msra.mxu0 0
        %2891 = vmatprep.subr.bf16.mxu0 0
        %2892 = vmatpush1.bf16.msra.mxu0 0
        %2893 = vmatprep.subr.bf16.mxu0 0
        %2894 = vmatpush1.bf16.msra.mxu0 0
        %2895 = vmatprep.subr.bf16.mxu0 0
        %2896 = vmatpush1.bf16.msra.mxu0 0
        %2897 = vmatprep.subr.bf16.mxu0 0
        %2898 = vmatpush1.bf16.msra.mxu0 0
        %2899 = vmatprep.subr.bf16.mxu0 0
        %2900 = vmatpush1.bf16.msra.mxu0 0
        %2901 = vmatprep.subr.bf16.mxu0 %v2878
        %2902 = vmatpush1.bf16.msra.mxu0 %v2877
        %2903 = vmatprep.subr.bf16.mxu0 %v2876
        %2904 = vmatpush1.bf16.msra.mxu0 %v2875
        %2905 = vmatprep.subr.bf16.mxu0 0
        %2906 = vmatpush2.bf16.msra.mxu0 0
        %2907 = vmatprep.subr.bf16.mxu0 0
        %2908 = vmatpush2.bf16.msra.mxu0 0
        %2909 = vmatprep.subr.bf16.mxu0 0
        %2910 = vmatpush2.bf16.msra.mxu0 0
        %2911 = vmatprep.subr.bf16.mxu0 0
        %2912 = vmatpush2.bf16.msra.mxu0 0
        %2913 = vmatprep.subr.bf16.mxu0 0
        %2914 = vmatpush2.bf16.msra.mxu0 0
        %2915 = vmatprep.subr.bf16.mxu0 0
        %2916 = vmatpush2.bf16.msra.mxu0 0
        %2917 = vmatprep.subr.bf16.mxu0 0
        %2918 = vmatpush2.bf16.msra.mxu0 0
        %2919 = vmatprep.subr.bf16.mxu0 0
        %2920 = vmatpush2.bf16.msra.mxu0 0
        %2921 = vmatprep.mubr.bf16.mxu0 0
        %2922 = vmatmul.mubr.bf16.gmra.mxu0 %v2884
        %v2923 = vpop.f32.mrf.mxu0
        %v2924 = vadd.f32 0.0, %v2923
        %v2925 = vpop.f32.mrf.mxu0
        %v2926 = vadd.f32 0.0, %v2925
        %v2927 = vpop.f32.mrf.mxu0
        %v2928 = vadd.f32 0.0, %v2927
        %v2929 = vpop.f32.mrf.mxu0
        %v2930 = vadd.f32 0.0, %v2929
        %2931 = vmatprep.mubr.bf16.mxu0 0
        %2932 = vmatmul.mubr.bf16.gmra.mxu0 %v2887
        %v2933 = vpop.f32.mrf.mxu0
        %v2934 = vadd.f32 0.0, %v2933
        %v2935 = vpop.f32.mrf.mxu0
        %v2936 = vadd.f32 0.0, %v2935
        %v2937 = vpop.f32.mrf.mxu0
        %v2938 = vadd.f32 0.0, %v2937
        %v2939 = vpop.f32.mrf.mxu0
        %v2940 = vadd.f32 0.0, %v2939
        %2941 = vdwg.mxu0
        %v2942 = vadd.f32 %v2806, %v2924
        %v2943 = vadd.f32 %v2807, %v2926
        %v2944 = vadd.f32 %v2808, %v2928
        %v2945 = vadd.f32 %v2809, %v2930
        %v2946 = vadd.f32 %v2810, %v2934
        %v2947 = vadd.f32 %v2811, %v2936
        %v2948 = vadd.f32 %v2812, %v2938
        %v2949 = vadd.f32 %v2813, %v2940
        %v2950 = vld [vmem:[%s5] sm:$0xff]
        %v2951 = vld [vmem:[%s5 + $0x8] sm:$0xff]
        %v2952 = vld [vmem:[%s5 + $0x10] sm:$0xff]
        %v2953 = vld [vmem:[%s5 + $0x18] sm:$0xff]
        %2955 = vset.pattern.permute.xlu0 0
        %2956 = vperm.xlu0 %2955, %v2950
        %v2957 = vpop.permute.xlu0 %2956
        %2960 = vset.pattern.permute.xlu0 0
        %2961 = vperm.xlu0 %2960, %v2951
        %v2962 = vpop.permute.xlu0 %2961
        %2965 = vset.pattern.permute.xlu0 0
        %2966 = vperm.xlu0 %2965, %v2952
        %v2967 = vpop.permute.xlu0 %2966
        %2970 = vset.pattern.permute.xlu0 0
        %2971 = vperm.xlu0 %2970, %v2953
        %v2972 = vpop.permute.xlu0 %2971
        %v2974 = vmul.f32 %v2942, %v2957
        %v2975 = vmul.f32 %v2943, %v2957
        %v2976 = vmul.f32 %v2944, %v2962
        %v2977 = vmul.f32 %v2945, %v2962
        %v2978 = vmul.f32 %v2946, %v2967
        %v2979 = vmul.f32 %v2947, %v2967
        %v2980 = vmul.f32 %v2948, %v2972
        %v2981 = vmul.f32 %v2949, %v2972
        %v2982 = vld [vmem:[%s6] sm:$0xff]
        %v2983 = vld [vmem:[%s6 + $0x8] sm:$0xff]
        %v2984 = vld [vmem:[%s6 + $0x10] sm:$0xff]
        %v2985 = vld [vmem:[%s6 + $0x18] sm:$0xff]
        %2987 = vset.pattern.permute.xlu0 0
        %2988 = vperm.xlu0 %2987, %v2982
        %v2989 = vpop.permute.xlu0 %2988
        %2992 = vset.pattern.permute.xlu0 0
        %2993 = vperm.xlu0 %2992, %v2983
        %v2994 = vpop.permute.xlu0 %2993
        %2997 = vset.pattern.permute.xlu0 0
        %2998 = vperm.xlu0 %2997, %v2984
        %v2999 = vpop.permute.xlu0 %2998
        %3002 = vset.pattern.permute.xlu0 0
        %3003 = vperm.xlu0 %3002, %v2985
        %v3004 = vpop.permute.xlu0 %3003
        %v3006 = vadd.f32 %v2974, %v2989
        %v3007 = vadd.f32 %v2975, %v2989
        %v3008 = vadd.f32 %v2976, %v2994
        %v3009 = vadd.f32 %v2977, %v2994
        %v3010 = vadd.f32 %v2978, %v2999
        %v3011 = vadd.f32 %v2979, %v2999
        %v3012 = vadd.f32 %v2980, %v3004
        %v3013 = vadd.f32 %v2981, %v3004
        %v3014 = vxor.u32 %v3006, 2147483648
        %v3015 = vxor.u32 %v3007, 2147483648
        %v3016 = vxor.u32 %v3008, 2147483648
        %v3017 = vxor.u32 %v3009, 2147483648
        %v3018 = vxor.u32 %v3010, 2147483648
        %v3019 = vxor.u32 %v3011, 2147483648
        %v3020 = vxor.u32 %v3012, 2147483648
        %v3021 = vxor.u32 %v3013, 2147483648
        %v3022 = vmul.f32 %v3014, 1.442695
        %v3023 = vpow.pop %v3022
        %v3024 = vmul.f32 %v3015, 1.442695
        %v3025 = vpow.pop %v3024
        %v3026 = vmul.f32 %v3016, 1.442695
        %v3027 = vpow.pop %v3026
        %v3028 = vmul.f32 %v3017, 1.442695
        %v3029 = vpow.pop %v3028
        %v3030 = vmul.f32 %v3018, 1.442695
        %v3031 = vpow.pop %v3030
        %v3032 = vmul.f32 %v3019, 1.442695
        %v3033 = vpow.pop %v3032
        %v3034 = vmul.f32 %v3020, 1.442695
        %v3035 = vpow.pop %v3034
        %v3036 = vmul.f32 %v3021, 1.442695
        %v3037 = vpow.pop %v3036
        %v3038 = vadd.f32 %v3023, 1.0
        %v3039 = vadd.f32 %v3025, 1.0
        %v3040 = vadd.f32 %v3027, 1.0
        %v3041 = vadd.f32 %v3029, 1.0
        %v3042 = vadd.f32 %v3031, 1.0
        %v3043 = vadd.f32 %v3033, 1.0
        %v3044 = vadd.f32 %v3035, 1.0
        %v3045 = vadd.f32 %v3037, 1.0
        %v3046 = vrcp.pop %v3038
        %v3047 = vmul.f32 1.0, %v3046
        %v3048 = vrcp.pop %v3039
        %v3049 = vmul.f32 1.0, %v3048
        %v3050 = vrcp.pop %v3040
        %v3051 = vmul.f32 1.0, %v3050
        %v3052 = vrcp.pop %v3041
        %v3053 = vmul.f32 1.0, %v3052
        %v3054 = vrcp.pop %v3042
        %v3055 = vmul.f32 1.0, %v3054
        %v3056 = vrcp.pop %v3043
        %v3057 = vmul.f32 1.0, %v3056
        %v3058 = vrcp.pop %v3044
        %v3059 = vmul.f32 1.0, %v3058
        %v3060 = vrcp.pop %v3045
        %v3061 = vmul.f32 1.0, %v3060
        %v3062 = vmul.f32 %v3006, %v3047
        %v3063 = vmul.f32 %v3007, %v3049
        %v3064 = vmul.f32 %v3008, %v3051
        %v3065 = vmul.f32 %v3009, %v3053
        %v3066 = vmul.f32 %v3010, %v3055
        %v3067 = vmul.f32 %v3011, %v3057
        %v3068 = vmul.f32 %v3012, %v3059
        %v3069 = vmul.f32 %v3013, %v3061
        %v3070 = vpack.c.bf16 %v3064, %v3062
        %v3071 = vpack.c.bf16 %v3065, %v3063
        %v3072 = vpack.c.bf16 %v3068, %v3066
        %v3073 = vpack.c.bf16 %v3069, %v3067
        %v3078 = vunpack.c.l.b16 %v3070
        %v3079 = vunpack.c.l.b16 %v3071
        %v3080 = vunpack.c.h.b16 %v3070
        %v3081 = vunpack.c.h.b16 %v3071
        %v3082 = vunpack.c.l.b16 %v3072
        %v3083 = vunpack.c.l.b16 %v3073
        %v3084 = vunpack.c.h.b16 %v3072
        %v3085 = vunpack.c.h.b16 %v3073
        %v3086 = vpack.c.b16 %v3079, %v3078
        %v3087 = vpack.c.b16 %v3081, %v3080
        %v3088 = vpack.c.b16 %v3083, %v3082
        %v3089 = vpack.c.b16 %v3085, %v3084
        %3090 = vrot.lane.b32.xlu0 %v3086, 17
        %v3091 = vpop.permute.xlu0 %3090
        %3092 = vrot.lane.b32.xlu0 %v3087, 17
        %v3093 = vpop.permute.xlu0 %3092
        %3094 = vrot.lane.b32.xlu0 %v3088, 17
        %v3095 = vpop.permute.xlu0 %3094
        %3096 = vrot.lane.b32.xlu0 %v3089, 17
        %v3097 = vpop.permute.xlu0 %3096
        %v3098 = vrot.slane %v3091, 4
        %v3099 = vrot.slane %v3093, 4
        %v3100 = vrot.slane %v3095, 4
        %v3101 = vrot.slane %v3097, 4
        %v3102 = vsel %vm630, %v3098, %v3091
        %v3103 = vsel %vm630, %v3099, %v3093
        %v3104 = vsel %vm630, %v3100, %v3095
        %v3105 = vsel %vm630, %v3101, %v3097
        %3114 = vst.msk [vmem:[#allocation3] sm:$0xff] %vm639, %v3102
        %3115 = vst.msk [vmem:[#allocation3 + $0x8] sm:$0xf] %vm610, %v3098
        %3116 = vst.msk [vmem:[#allocation3 + $0xc] sm:$0xff] %vm639, %v3103
        %3117 = vst.msk [vmem:[#allocation3 + $0x14] sm:$0xf] %vm610, %v3099
        %3118 = vst.msk [vmem:[#allocation3 + $0x18] sm:$0xff] %vm639, %v3104
        %3119 = vst.msk [vmem:[#allocation3 + $0x20] sm:$0xf] %vm610, %v3100
        %3120 = vst.msk [vmem:[#allocation3 + $0x24] sm:$0xff] %vm639, %v3105
        %3121 = vst.msk [vmem:[#allocation3 + $0x2c] sm:$0xf] %vm610, %v3101
        %v3122 = vld [vmem:[#allocation3] sm:$0xff]
        %v3123 = vld [vmem:[#allocation3 + $0xc] sm:$0xff]
        %v3124 = vld [vmem:[#allocation3 + $0x18] sm:$0xff]
        %v3125 = vld [vmem:[#allocation3 + $0x24] sm:$0xff]
        %v3126 = vmul.bf16 %v3122, %v687
        %v3127 = vmul.bf16 %v3123, %v687
        %v3128 = vmul.bf16 %v3124, %v687
        %v3129 = vmul.bf16 %v3125, %v687
        %v3130 = vld [vmem:[%s7] sm:$0xf]
        %v3131 = vld [vmem:[%s7 + $0x4] sm:$0xf]
        %v3132 = vld [vmem:[%s7 + $0x8] sm:$0xf]
        %v3133 = vld [vmem:[%s7 + $0xc] sm:$0xf]
        %v3134 = vld [vmem:[#allocation3 + $0x8] sm:$0xf]
        %v3135 = vld [vmem:[#allocation3 + $0x14] sm:$0xf]
        %v3136 = vld [vmem:[#allocation3 + $0x20] sm:$0xf]
        %v3137 = vld [vmem:[#allocation3 + $0x2c] sm:$0xf]
        %s3138 = scalar_lea.vmem %s7, 16
        %v3139 = vld [vmem:[%s3138] sm:$0xf]
        %v3140 = vld [vmem:[%s3138 + $0x4] sm:$0xf]
        %v3141 = vld [vmem:[%s3138 + $0x8] sm:$0xf]
        %v3142 = vld [vmem:[%s3138 + $0xc] sm:$0xf]
        %v3147 = vunpack.c.l.b16 %v3139
        %v3148 = vunpack.c.l.b16 %v3140
        %v3149 = vunpack.c.l.b16 %v3141
        %v3150 = vunpack.c.l.b16 %v3142
        %v3151 = vpack.c.b16 %v3148, %v3147
        %v3152 = vpack.c.b16 %v3150, %v3149
        %v3161 = vunpack.c.l.b16 %v3122
        %v3162 = vunpack.c.h.b16 %v3122
        %v3163 = vunpack.c.l.b16 %v3134
        %v3164 = vunpack.c.l.b16 %v3123
        %v3165 = vunpack.c.h.b16 %v3123
        %v3166 = vunpack.c.l.b16 %v3135
        %v3167 = vunpack.c.l.b16 %v3124
        %v3168 = vunpack.c.h.b16 %v3124
        %v3169 = vunpack.c.l.b16 %v3136
        %v3170 = vunpack.c.l.b16 %v3125
        %v3171 = vunpack.c.h.b16 %v3125
        %v3172 = vunpack.c.l.b16 %v3137
        %v3173 = vpack.c.b16 %v3164, %v3161
        %v3174 = vpack.c.b16 %v3165, %v3162
        %v3175 = vpack.c.b16 %v3166, %v3163
        %v3176 = vpack.c.b16 %v3170, %v3167
        %v3177 = vpack.c.b16 %v3171, %v3168
        %v3178 = vpack.c.b16 %v3172, %v3169
        %3179 = vrot.lane.b32.xlu0 %v3173, 127
        %v3180 = vpop.permute.xlu0 %3179
        %3181 = vrot.lane.b32.xlu0 %v3174, 127
        %v3182 = vpop.permute.xlu0 %3181
        %3183 = vrot.lane.b32.xlu0 %v3175, 127
        %v3184 = vpop.permute.xlu0 %3183
        %3185 = vrot.lane.b32.xlu0 %v3176, 127
        %v3186 = vpop.permute.xlu0 %3185
        %3187 = vrot.lane.b32.xlu0 %v3177, 127
        %v3188 = vpop.permute.xlu0 %3187
        %3189 = vrot.lane.b32.xlu0 %v3178, 127
        %v3190 = vpop.permute.xlu0 %3189
        %v3191 = vsel %vm731, %v3180, %v3182
        %v3192 = vsel %vm731, %v3182, %v3184
        %v3193 = vsel %vm731, %v3186, %v3188
        %v3194 = vsel %vm731, %v3188, %v3190
        %v3200 = vsel %vm1903, %v3151, 0
        %v3203 = vsel %vm1903, %v3152, 0
        %3205 = vmatprep.subr.bf16.mxu0 0
        %3206 = vmatpush1.bf16.msra.mxu0 0
        %3207 = vmatprep.subr.bf16.mxu0 0
        %3208 = vmatpush1.bf16.msra.mxu0 0
        %3209 = vmatprep.subr.bf16.mxu0 0
        %3210 = vmatpush1.bf16.msra.mxu0 0
        %3211 = vmatprep.subr.bf16.mxu0 0
        %3212 = vmatpush1.bf16.msra.mxu0 0
        %3213 = vmatprep.subr.bf16.mxu0 0
        %3214 = vmatpush1.bf16.msra.mxu0 0
        %3215 = vmatprep.subr.bf16.mxu0 0
        %3216 = vmatpush1.bf16.msra.mxu0 0
        %3217 = vmatprep.subr.bf16.mxu0 %v3194
        %3218 = vmatpush1.bf16.msra.mxu0 %v3193
        %3219 = vmatprep.subr.bf16.mxu0 %v3192
        %3220 = vmatpush1.bf16.msra.mxu0 %v3191
        %3221 = vmatprep.subr.bf16.mxu0 0
        %3222 = vmatpush2.bf16.msra.mxu0 0
        %3223 = vmatprep.subr.bf16.mxu0 0
        %3224 = vmatpush2.bf16.msra.mxu0 0
        %3225 = vmatprep.subr.bf16.mxu0 0
        %3226 = vmatpush2.bf16.msra.mxu0 0
        %3227 = vmatprep.subr.bf16.mxu0 0
        %3228 = vmatpush2.bf16.msra.mxu0 0
        %3229 = vmatprep.subr.bf16.mxu0 0
        %3230 = vmatpush2.bf16.msra.mxu0 0
        %3231 = vmatprep.subr.bf16.mxu0 0
        %3232 = vmatpush2.bf16.msra.mxu0 0
        %3233 = vmatprep.subr.bf16.mxu0 0
        %3234 = vmatpush2.bf16.msra.mxu0 0
        %3235 = vmatprep.subr.bf16.mxu0 0
        %3236 = vmatpush2.bf16.msra.mxu0 0
        %3237 = vmatprep.mubr.bf16.mxu0 0
        %3238 = vmatmul.mubr.bf16.gmra.mxu0 %v3200
        %v3239 = vpop.f32.mrf.mxu0
        %v3240 = vadd.f32 0.0, %v3239
        %v3241 = vpop.f32.mrf.mxu0
        %v3242 = vadd.f32 0.0, %v3241
        %v3243 = vpop.f32.mrf.mxu0
        %v3244 = vadd.f32 0.0, %v3243
        %v3245 = vpop.f32.mrf.mxu0
        %v3246 = vadd.f32 0.0, %v3245
        %3247 = vmatprep.mubr.bf16.mxu0 0
        %3248 = vmatmul.mubr.bf16.gmra.mxu0 %v3203
        %v3249 = vpop.f32.mrf.mxu0
        %v3250 = vadd.f32 0.0, %v3249
        %v3251 = vpop.f32.mrf.mxu0
        %v3252 = vadd.f32 0.0, %v3251
        %v3253 = vpop.f32.mrf.mxu0
        %v3254 = vadd.f32 0.0, %v3253
        %v3255 = vpop.f32.mrf.mxu0
        %v3256 = vadd.f32 0.0, %v3255
        %3257 = vdwg.mxu0
        %v3262 = vunpack.c.l.b16 %v3130
        %v3263 = vunpack.c.l.b16 %v3131
        %v3264 = vunpack.c.l.b16 %v3132
        %v3265 = vunpack.c.l.b16 %v3133
        %v3266 = vpack.c.b16 %v3263, %v3262
        %v3267 = vpack.c.b16 %v3265, %v3264
        %v3272 = vunpack.c.l.b16 %v3126
        %v3273 = vunpack.c.h.b16 %v3126
        %v3274 = vunpack.c.l.b16 %v3127
        %v3275 = vunpack.c.h.b16 %v3127
        %v3276 = vunpack.c.l.b16 %v3128
        %v3277 = vunpack.c.h.b16 %v3128
        %v3278 = vunpack.c.l.b16 %v3129
        %v3279 = vunpack.c.h.b16 %v3129
        %v3280 = vpack.c.b16 %v3274, %v3272
        %v3281 = vpack.c.b16 %v3275, %v3273
        %v3282 = vpack.c.b16 %v3278, %v3276
        %v3283 = vpack.c.b16 %v3279, %v3277
        %v3289 = vsel %vm1903, %v3266, 0
        %v3292 = vsel %vm1903, %v3267, 0
        %3294 = vmatprep.subr.bf16.mxu0 0
        %3295 = vmatpush1.bf16.msra.mxu0 0
        %3296 = vmatprep.subr.bf16.mxu0 0
        %3297 = vmatpush1.bf16.msra.mxu0 0
        %3298 = vmatprep.subr.bf16.mxu0 0
        %3299 = vmatpush1.bf16.msra.mxu0 0
        %3300 = vmatprep.subr.bf16.mxu0 0
        %3301 = vmatpush1.bf16.msra.mxu0 0
        %3302 = vmatprep.subr.bf16.mxu0 0
        %3303 = vmatpush1.bf16.msra.mxu0 0
        %3304 = vmatprep.subr.bf16.mxu0 0
        %3305 = vmatpush1.bf16.msra.mxu0 0
        %3306 = vmatprep.subr.bf16.mxu0 %v3283
        %3307 = vmatpush1.bf16.msra.mxu0 %v3282
        %3308 = vmatprep.subr.bf16.mxu0 %v3281
        %3309 = vmatpush1.bf16.msra.mxu0 %v3280
        %3310 = vmatprep.subr.bf16.mxu0 0
        %3311 = vmatpush2.bf16.msra.mxu0 0
        %3312 = vmatprep.subr.bf16.mxu0 0
        %3313 = vmatpush2.bf16.msra.mxu0 0
        %3314 = vmatprep.subr.bf16.mxu0 0
        %3315 = vmatpush2.bf16.msra.mxu0 0
        %3316 = vmatprep.subr.bf16.mxu0 0
        %3317 = vmatpush2.bf16.msra.mxu0 0
        %3318 = vmatprep.subr.bf16.mxu0 0
        %3319 = vmatpush2.bf16.msra.mxu0 0
        %3320 = vmatprep.subr.bf16.mxu0 0
        %3321 = vmatpush2.bf16.msra.mxu0 0
        %3322 = vmatprep.subr.bf16.mxu0 0
        %3323 = vmatpush2.bf16.msra.mxu0 0
        %3324 = vmatprep.subr.bf16.mxu0 0
        %3325 = vmatpush2.bf16.msra.mxu0 0
        %3326 = vmatprep.mubr.bf16.mxu0 0
        %3327 = vmatmul.mubr.bf16.gmra.mxu0 %v3289
        %v3328 = vpop.f32.mrf.mxu0
        %v3329 = vadd.f32 %v3240, %v3328
        %v3330 = vpop.f32.mrf.mxu0
        %v3331 = vadd.f32 %v3242, %v3330
        %v3332 = vpop.f32.mrf.mxu0
        %v3333 = vadd.f32 %v3244, %v3332
        %v3334 = vpop.f32.mrf.mxu0
        %v3335 = vadd.f32 %v3246, %v3334
        %3336 = vmatprep.mubr.bf16.mxu0 0
        %3337 = vmatmul.mubr.bf16.gmra.mxu0 %v3292
        %v3338 = vpop.f32.mrf.mxu0
        %v3339 = vadd.f32 %v3250, %v3338
        %v3340 = vpop.f32.mrf.mxu0
        %v3341 = vadd.f32 %v3252, %v3340
        %v3342 = vpop.f32.mrf.mxu0
        %v3343 = vadd.f32 %v3254, %v3342
        %v3344 = vpop.f32.mrf.mxu0
        %v3345 = vadd.f32 %v3256, %v3344
        %3346 = vdwg.mxu0
        %v3347 = vmul.bf16 %v3122, %v921
        %v3348 = vmul.bf16 %v3134, %v919
        %v3349 = vmul.bf16 %v3123, %v921
        %v3350 = vmul.bf16 %v3135, %v919
        %v3351 = vmul.bf16 %v3124, %v921
        %v3352 = vmul.bf16 %v3136, %v919
        %v3353 = vmul.bf16 %v3125, %v921
        %v3354 = vmul.bf16 %v3137, %v919
        %s3355 = scalar_lea.vmem %s7, 32
        %v3356 = vld [vmem:[%s3355] sm:$0xf]
        %v3357 = vld [vmem:[%s3355 + $0x4] sm:$0xf]
        %v3358 = vld [vmem:[%s3355 + $0x8] sm:$0xf]
        %v3359 = vld [vmem:[%s3355 + $0xc] sm:$0xf]
        %v3364 = vunpack.c.l.b16 %v3356
        %v3365 = vunpack.c.l.b16 %v3357
        %v3366 = vunpack.c.l.b16 %v3358
        %v3367 = vunpack.c.l.b16 %v3359
        %v3368 = vpack.c.b16 %v3365, %v3364
        %v3369 = vpack.c.b16 %v3367, %v3366
        %v3378 = vunpack.c.l.b16 %v3347
        %v3379 = vunpack.c.h.b16 %v3347
        %v3380 = vunpack.c.l.b16 %v3348
        %v3381 = vunpack.c.l.b16 %v3349
        %v3382 = vunpack.c.h.b16 %v3349
        %v3383 = vunpack.c.l.b16 %v3350
        %v3384 = vunpack.c.l.b16 %v3351
        %v3385 = vunpack.c.h.b16 %v3351
        %v3386 = vunpack.c.l.b16 %v3352
        %v3387 = vunpack.c.l.b16 %v3353
        %v3388 = vunpack.c.h.b16 %v3353
        %v3389 = vunpack.c.l.b16 %v3354
        %v3390 = vpack.c.b16 %v3381, %v3378
        %v3391 = vpack.c.b16 %v3382, %v3379
        %v3392 = vpack.c.b16 %v3383, %v3380
        %v3393 = vpack.c.b16 %v3387, %v3384
        %v3394 = vpack.c.b16 %v3388, %v3385
        %v3395 = vpack.c.b16 %v3389, %v3386
        %3396 = vrot.lane.b32.xlu0 %v3390, 126
        %v3397 = vpop.permute.xlu0 %3396
        %3398 = vrot.lane.b32.xlu0 %v3391, 126
        %v3399 = vpop.permute.xlu0 %3398
        %3400 = vrot.lane.b32.xlu0 %v3392, 126
        %v3401 = vpop.permute.xlu0 %3400
        %3402 = vrot.lane.b32.xlu0 %v3393, 126
        %v3403 = vpop.permute.xlu0 %3402
        %3404 = vrot.lane.b32.xlu0 %v3394, 126
        %v3405 = vpop.permute.xlu0 %3404
        %3406 = vrot.lane.b32.xlu0 %v3395, 126
        %v3407 = vpop.permute.xlu0 %3406
        %v3408 = vsel %vm962, %v3397, %v3399
        %v3409 = vsel %vm962, %v3399, %v3401
        %v3410 = vsel %vm962, %v3403, %v3405
        %v3411 = vsel %vm962, %v3405, %v3407
        %v3417 = vsel %vm1903, %v3368, 0
        %v3420 = vsel %vm1903, %v3369, 0
        %3422 = vmatprep.subr.bf16.mxu0 0
        %3423 = vmatpush1.bf16.msra.mxu0 0
        %3424 = vmatprep.subr.bf16.mxu0 0
        %3425 = vmatpush1.bf16.msra.mxu0 0
        %3426 = vmatprep.subr.bf16.mxu0 0
        %3427 = vmatpush1.bf16.msra.mxu0 0
        %3428 = vmatprep.subr.bf16.mxu0 0
        %3429 = vmatpush1.bf16.msra.mxu0 0
        %3430 = vmatprep.subr.bf16.mxu0 0
        %3431 = vmatpush1.bf16.msra.mxu0 0
        %3432 = vmatprep.subr.bf16.mxu0 0
        %3433 = vmatpush1.bf16.msra.mxu0 0
        %3434 = vmatprep.subr.bf16.mxu0 %v3411
        %3435 = vmatpush1.bf16.msra.mxu0 %v3410
        %3436 = vmatprep.subr.bf16.mxu0 %v3409
        %3437 = vmatpush1.bf16.msra.mxu0 %v3408
        %3438 = vmatprep.subr.bf16.mxu0 0
        %3439 = vmatpush2.bf16.msra.mxu0 0
        %3440 = vmatprep.subr.bf16.mxu0 0
        %3441 = vmatpush2.bf16.msra.mxu0 0
        %3442 = vmatprep.subr.bf16.mxu0 0
        %3443 = vmatpush2.bf16.msra.mxu0 0
        %3444 = vmatprep.subr.bf16.mxu0 0
        %3445 = vmatpush2.bf16.msra.mxu0 0
        %3446 = vmatprep.subr.bf16.mxu0 0
        %3447 = vmatpush2.bf16.msra.mxu0 0
        %3448 = vmatprep.subr.bf16.mxu0 0
        %3449 = vmatpush2.bf16.msra.mxu0 0
        %3450 = vmatprep.subr.bf16.mxu0 0
        %3451 = vmatpush2.bf16.msra.mxu0 0
        %3452 = vmatprep.subr.bf16.mxu0 0
        %3453 = vmatpush2.bf16.msra.mxu0 0
        %3454 = vmatprep.mubr.bf16.mxu0 0
        %3455 = vmatmul.mubr.bf16.gmra.mxu0 %v3417
        %v3456 = vpop.f32.mrf.mxu0
        %v3457 = vadd.f32 0.0, %v3456
        %v3458 = vpop.f32.mrf.mxu0
        %v3459 = vadd.f32 0.0, %v3458
        %v3460 = vpop.f32.mrf.mxu0
        %v3461 = vadd.f32 0.0, %v3460
        %v3462 = vpop.f32.mrf.mxu0
        %v3463 = vadd.f32 0.0, %v3462
        %3464 = vmatprep.mubr.bf16.mxu0 0
        %3465 = vmatmul.mubr.bf16.gmra.mxu0 %v3420
        %v3466 = vpop.f32.mrf.mxu0
        %v3467 = vadd.f32 0.0, %v3466
        %v3468 = vpop.f32.mrf.mxu0
        %v3469 = vadd.f32 0.0, %v3468
        %v3470 = vpop.f32.mrf.mxu0
        %v3471 = vadd.f32 0.0, %v3470
        %v3472 = vpop.f32.mrf.mxu0
        %v3473 = vadd.f32 0.0, %v3472
        %3474 = vdwg.mxu0
        %v3475 = vadd.f32 %v3329, %v3457
        %v3476 = vadd.f32 %v3331, %v3459
        %v3477 = vadd.f32 %v3333, %v3461
        %v3478 = vadd.f32 %v3335, %v3463
        %v3479 = vadd.f32 %v3339, %v3467
        %v3480 = vadd.f32 %v3341, %v3469
        %v3481 = vadd.f32 %v3343, %v3471
        %v3482 = vadd.f32 %v3345, %v3473
        %v3483 = vmul.bf16 %v3122, %v1042
        %v3484 = vmul.bf16 %v3134, %v1040
        %v3485 = vmul.bf16 %v3123, %v1042
        %v3486 = vmul.bf16 %v3135, %v1040
        %v3487 = vmul.bf16 %v3124, %v1042
        %v3488 = vmul.bf16 %v3136, %v1040
        %v3489 = vmul.bf16 %v3125, %v1042
        %v3490 = vmul.bf16 %v3137, %v1040
        %s3491 = scalar_lea.vmem %s7, 48
        %v3492 = vld [vmem:[%s3491] sm:$0xf]
        %v3493 = vld [vmem:[%s3491 + $0x4] sm:$0xf]
        %v3494 = vld [vmem:[%s3491 + $0x8] sm:$0xf]
        %v3495 = vld [vmem:[%s3491 + $0xc] sm:$0xf]
        %v3500 = vunpack.c.l.b16 %v3492
        %v3501 = vunpack.c.l.b16 %v3493
        %v3502 = vunpack.c.l.b16 %v3494
        %v3503 = vunpack.c.l.b16 %v3495
        %v3504 = vpack.c.b16 %v3501, %v3500
        %v3505 = vpack.c.b16 %v3503, %v3502
        %v3514 = vunpack.c.l.b16 %v3483
        %v3515 = vunpack.c.h.b16 %v3483
        %v3516 = vunpack.c.l.b16 %v3484
        %v3517 = vunpack.c.l.b16 %v3485
        %v3518 = vunpack.c.h.b16 %v3485
        %v3519 = vunpack.c.l.b16 %v3486
        %v3520 = vunpack.c.l.b16 %v3487
        %v3521 = vunpack.c.h.b16 %v3487
        %v3522 = vunpack.c.l.b16 %v3488
        %v3523 = vunpack.c.l.b16 %v3489
        %v3524 = vunpack.c.h.b16 %v3489
        %v3525 = vunpack.c.l.b16 %v3490
        %v3526 = vpack.c.b16 %v3517, %v3514
        %v3527 = vpack.c.b16 %v3518, %v3515
        %v3528 = vpack.c.b16 %v3519, %v3516
        %v3529 = vpack.c.b16 %v3523, %v3520
        %v3530 = vpack.c.b16 %v3524, %v3521
        %v3531 = vpack.c.b16 %v3525, %v3522
        %3532 = vrot.lane.b32.xlu0 %v3526, 112
        %v3533 = vpop.permute.xlu0 %3532
        %3534 = vrot.lane.b32.xlu0 %v3527, 112
        %v3535 = vpop.permute.xlu0 %3534
        %3536 = vrot.lane.b32.xlu0 %v3528, 112
        %v3537 = vpop.permute.xlu0 %3536
        %3538 = vrot.lane.b32.xlu0 %v3529, 112
        %v3539 = vpop.permute.xlu0 %3538
        %3540 = vrot.lane.b32.xlu0 %v3530, 112
        %v3541 = vpop.permute.xlu0 %3540
        %3542 = vrot.lane.b32.xlu0 %v3531, 112
        %v3543 = vpop.permute.xlu0 %3542
        %v3544 = vsel %vm1083, %v3533, %v3535
        %v3545 = vsel %vm1083, %v3535, %v3537
        %v3546 = vsel %vm1083, %v3539, %v3541
        %v3547 = vsel %vm1083, %v3541, %v3543
        %v3553 = vsel %vm1903, %v3504, 0
        %v3556 = vsel %vm1903, %v3505, 0
        %3558 = vmatprep.subr.bf16.mxu0 0
        %3559 = vmatpush1.bf16.msra.mxu0 0
        %3560 = vmatprep.subr.bf16.mxu0 0
        %3561 = vmatpush1.bf16.msra.mxu0 0
        %3562 = vmatprep.subr.bf16.mxu0 0
        %3563 = vmatpush1.bf16.msra.mxu0 0
        %3564 = vmatprep.subr.bf16.mxu0 0
        %3565 = vmatpush1.bf16.msra.mxu0 0
        %3566 = vmatprep.subr.bf16.mxu0 0
        %3567 = vmatpush1.bf16.msra.mxu0 0
        %3568 = vmatprep.subr.bf16.mxu0 0
        %3569 = vmatpush1.bf16.msra.mxu0 0
        %3570 = vmatprep.subr.bf16.mxu0 %v3547
        %3571 = vmatpush1.bf16.msra.mxu0 %v3546
        %3572 = vmatprep.subr.bf16.mxu0 %v3545
        %3573 = vmatpush1.bf16.msra.mxu0 %v3544
        %3574 = vmatprep.subr.bf16.mxu0 0
        %3575 = vmatpush2.bf16.msra.mxu0 0
        %3576 = vmatprep.subr.bf16.mxu0 0
        %3577 = vmatpush2.bf16.msra.mxu0 0
        %3578 = vmatprep.subr.bf16.mxu0 0
        %3579 = vmatpush2.bf16.msra.mxu0 0
        %3580 = vmatprep.subr.bf16.mxu0 0
        %3581 = vmatpush2.bf16.msra.mxu0 0
        %3582 = vmatprep.subr.bf16.mxu0 0
        %3583 = vmatpush2.bf16.msra.mxu0 0
        %3584 = vmatprep.subr.bf16.mxu0 0
        %3585 = vmatpush2.bf16.msra.mxu0 0
        %3586 = vmatprep.subr.bf16.mxu0 0
        %3587 = vmatpush2.bf16.msra.mxu0 0
        %3588 = vmatprep.subr.bf16.mxu0 0
        %3589 = vmatpush2.bf16.msra.mxu0 0
        %3590 = vmatprep.mubr.bf16.mxu0 0
        %3591 = vmatmul.mubr.bf16.gmra.mxu0 %v3553
        %v3592 = vpop.f32.mrf.mxu0
        %v3593 = vadd.f32 0.0, %v3592
        %v3594 = vpop.f32.mrf.mxu0
        %v3595 = vadd.f32 0.0, %v3594
        %v3596 = vpop.f32.mrf.mxu0
        %v3597 = vadd.f32 0.0, %v3596
        %v3598 = vpop.f32.mrf.mxu0
        %v3599 = vadd.f32 0.0, %v3598
        %3600 = vmatprep.mubr.bf16.mxu0 0
        %3601 = vmatmul.mubr.bf16.gmra.mxu0 %v3556
        %v3602 = vpop.f32.mrf.mxu0
        %v3603 = vadd.f32 0.0, %v3602
        %v3604 = vpop.f32.mrf.mxu0
        %v3605 = vadd.f32 0.0, %v3604
        %v3606 = vpop.f32.mrf.mxu0
        %v3607 = vadd.f32 0.0, %v3606
        %v3608 = vpop.f32.mrf.mxu0
        %v3609 = vadd.f32 0.0, %v3608
        %3610 = vdwg.mxu0
        %v3611 = vadd.f32 %v3475, %v3593
        %v3612 = vadd.f32 %v3476, %v3595
        %v3613 = vadd.f32 %v3477, %v3597
        %v3614 = vadd.f32 %v3478, %v3599
        %v3615 = vadd.f32 %v3479, %v3603
        %v3616 = vadd.f32 %v3480, %v3605
        %v3617 = vadd.f32 %v3481, %v3607
        %v3618 = vadd.f32 %v3482, %v3609
        %s3619 = scalar_lea.vmem %s7, 64
        %v3620 = vld [vmem:[%s3619] sm:$0xf]
        %v3621 = vld [vmem:[%s3619 + $0x4] sm:$0xf]
        %v3622 = vld [vmem:[%s3619 + $0x8] sm:$0xf]
        %v3623 = vld [vmem:[%s3619 + $0xc] sm:$0xf]
        %v3628 = vunpack.c.l.b16 %v3620
        %v3629 = vunpack.c.l.b16 %v3621
        %v3630 = vunpack.c.l.b16 %v3622
        %v3631 = vunpack.c.l.b16 %v3623
        %v3632 = vpack.c.b16 %v3629, %v3628
        %v3633 = vpack.c.b16 %v3631, %v3630
        %v3635 = vsel %vm1903, %v3632, 0
        %v3638 = vsel %vm1903, %v3633, 0
        %3640 = vmatprep.subr.bf16.mxu0 0
        %3641 = vmatpush1.bf16.msra.mxu0 0
        %3642 = vmatprep.subr.bf16.mxu0 0
        %3643 = vmatpush1.bf16.msra.mxu0 0
        %3644 = vmatprep.subr.bf16.mxu0 0
        %3645 = vmatpush1.bf16.msra.mxu0 0
        %3646 = vmatprep.subr.bf16.mxu0 0
        %3647 = vmatpush1.bf16.msra.mxu0 0
        %3648 = vmatprep.subr.bf16.mxu0 0
        %3649 = vmatpush1.bf16.msra.mxu0 0
        %3650 = vmatprep.subr.bf16.mxu0 0
        %3651 = vmatpush1.bf16.msra.mxu0 0
        %3652 = vmatprep.subr.bf16.mxu0 %v3073
        %3653 = vmatpush1.bf16.msra.mxu0 %v3072
        %3654 = vmatprep.subr.bf16.mxu0 %v3071
        %3655 = vmatpush1.bf16.msra.mxu0 %v3070
        %3656 = vmatprep.subr.bf16.mxu0 0
        %3657 = vmatpush2.bf16.msra.mxu0 0
        %3658 = vmatprep.subr.bf16.mxu0 0
        %3659 = vmatpush2.bf16.msra.mxu0 0
        %3660 = vmatprep.subr.bf16.mxu0 0
        %3661 = vmatpush2.bf16.msra.mxu0 0
        %3662 = vmatprep.subr.bf16.mxu0 0
        %3663 = vmatpush2.bf16.msra.mxu0 0
        %3664 = vmatprep.subr.bf16.mxu0 0
        %3665 = vmatpush2.bf16.msra.mxu0 0
        %3666 = vmatprep.subr.bf16.mxu0 0
        %3667 = vmatpush2.bf16.msra.mxu0 0
        %3668 = vmatprep.subr.bf16.mxu0 0
        %3669 = vmatpush2.bf16.msra.mxu0 0
        %3670 = vmatprep.subr.bf16.mxu0 0
        %3671 = vmatpush2.bf16.msra.mxu0 0
        %3672 = vmatprep.mubr.bf16.mxu0 0
        %3673 = vmatmul.mubr.bf16.gmra.mxu0 %v3635
        %v3674 = vpop.f32.mrf.mxu0
        %v3675 = vadd.f32 0.0, %v3674
        %v3676 = vpop.f32.mrf.mxu0
        %v3677 = vadd.f32 0.0, %v3676
        %v3678 = vpop.f32.mrf.mxu0
        %v3679 = vadd.f32 0.0, %v3678
        %v3680 = vpop.f32.mrf.mxu0
        %v3681 = vadd.f32 0.0, %v3680
        %3682 = vmatprep.mubr.bf16.mxu0 0
        %3683 = vmatmul.mubr.bf16.gmra.mxu0 %v3638
        %v3684 = vpop.f32.mrf.mxu0
        %v3685 = vadd.f32 0.0, %v3684
        %v3686 = vpop.f32.mrf.mxu0
        %v3687 = vadd.f32 0.0, %v3686
        %v3688 = vpop.f32.mrf.mxu0
        %v3689 = vadd.f32 0.0, %v3688
        %v3690 = vpop.f32.mrf.mxu0
        %v3691 = vadd.f32 0.0, %v3690
        %3692 = vdwg.mxu0
        %v3693 = vadd.f32 %v3611, %v3675
        %v3694 = vadd.f32 %v3612, %v3677
        %v3695 = vadd.f32 %v3613, %v3679
        %v3696 = vadd.f32 %v3614, %v3681
        %v3697 = vadd.f32 %v3615, %v3685
        %v3698 = vadd.f32 %v3616, %v3687
        %v3699 = vadd.f32 %v3617, %v3689
        %v3700 = vadd.f32 %v3618, %v3691
        %v3701 = vmul.bf16 %v3122, %v1241
        %v3702 = vmul.bf16 %v3134, %v1239
        %v3703 = vmul.bf16 %v3123, %v1241
        %v3704 = vmul.bf16 %v3135, %v1239
        %v3705 = vmul.bf16 %v3124, %v1241
        %v3706 = vmul.bf16 %v3136, %v1239
        %v3707 = vmul.bf16 %v3125, %v1241
        %v3708 = vmul.bf16 %v3137, %v1239
        %s3709 = scalar_lea.vmem %s7, 80
        %v3710 = vld [vmem:[%s3709] sm:$0xf]
        %v3711 = vld [vmem:[%s3709 + $0x4] sm:$0xf]
        %v3712 = vld [vmem:[%s3709 + $0x8] sm:$0xf]
        %v3713 = vld [vmem:[%s3709 + $0xc] sm:$0xf]
        %v3718 = vunpack.c.l.b16 %v3710
        %v3719 = vunpack.c.l.b16 %v3711
        %v3720 = vunpack.c.l.b16 %v3712
        %v3721 = vunpack.c.l.b16 %v3713
        %v3722 = vpack.c.b16 %v3719, %v3718
        %v3723 = vpack.c.b16 %v3721, %v3720
        %v3732 = vunpack.c.l.b16 %v3701
        %v3733 = vunpack.c.h.b16 %v3701
        %v3734 = vunpack.c.l.b16 %v3702
        %v3735 = vunpack.c.l.b16 %v3703
        %v3736 = vunpack.c.h.b16 %v3703
        %v3737 = vunpack.c.l.b16 %v3704
        %v3738 = vunpack.c.l.b16 %v3705
        %v3739 = vunpack.c.h.b16 %v3705
        %v3740 = vunpack.c.l.b16 %v3706
        %v3741 = vunpack.c.l.b16 %v3707
        %v3742 = vunpack.c.h.b16 %v3707
        %v3743 = vunpack.c.l.b16 %v3708
        %v3744 = vpack.c.b16 %v3735, %v3732
        %v3745 = vpack.c.b16 %v3736, %v3733
        %v3746 = vpack.c.b16 %v3737, %v3734
        %v3747 = vpack.c.b16 %v3741, %v3738
        %v3748 = vpack.c.b16 %v3742, %v3739
        %v3749 = vpack.c.b16 %v3743, %v3740
        %3750 = vrot.lane.b32.xlu0 %v3744, 110
        %v3751 = vpop.permute.xlu0 %3750
        %3752 = vrot.lane.b32.xlu0 %v3745, 110
        %v3753 = vpop.permute.xlu0 %3752
        %3754 = vrot.lane.b32.xlu0 %v3746, 110
        %v3755 = vpop.permute.xlu0 %3754
        %3756 = vrot.lane.b32.xlu0 %v3747, 110
        %v3757 = vpop.permute.xlu0 %3756
        %3758 = vrot.lane.b32.xlu0 %v3748, 110
        %v3759 = vpop.permute.xlu0 %3758
        %3760 = vrot.lane.b32.xlu0 %v3749, 110
        %v3761 = vpop.permute.xlu0 %3760
        %v3762 = vsel %vm1282, %v3751, %v3753
        %v3763 = vsel %vm1282, %v3753, %v3755
        %v3764 = vsel %vm1282, %v3757, %v3759
        %v3765 = vsel %vm1282, %v3759, %v3761
        %v3771 = vsel %vm1903, %v3722, 0
        %v3774 = vsel %vm1903, %v3723, 0
        %3776 = vmatprep.subr.bf16.mxu0 0
        %3777 = vmatpush1.bf16.msra.mxu0 0
        %3778 = vmatprep.subr.bf16.mxu0 0
        %3779 = vmatpush1.bf16.msra.mxu0 0
        %3780 = vmatprep.subr.bf16.mxu0 0
        %3781 = vmatpush1.bf16.msra.mxu0 0
        %3782 = vmatprep.subr.bf16.mxu0 0
        %3783 = vmatpush1.bf16.msra.mxu0 0
        %3784 = vmatprep.subr.bf16.mxu0 0
        %3785 = vmatpush1.bf16.msra.mxu0 0
        %3786 = vmatprep.subr.bf16.mxu0 0
        %3787 = vmatpush1.bf16.msra.mxu0 0
        %3788 = vmatprep.subr.bf16.mxu0 %v3765
        %3789 = vmatpush1.bf16.msra.mxu0 %v3764
        %3790 = vmatprep.subr.bf16.mxu0 %v3763
        %3791 = vmatpush1.bf16.msra.mxu0 %v3762
        %3792 = vmatprep.subr.bf16.mxu0 0
        %3793 = vmatpush2.bf16.msra.mxu0 0
        %3794 = vmatprep.subr.bf16.mxu0 0
        %3795 = vmatpush2.bf16.msra.mxu0 0
        %3796 = vmatprep.subr.bf16.mxu0 0
        %3797 = vmatpush2.bf16.msra.mxu0 0
        %3798 = vmatprep.subr.bf16.mxu0 0
        %3799 = vmatpush2.bf16.msra.mxu0 0
        %3800 = vmatprep.subr.bf16.mxu0 0
        %3801 = vmatpush2.bf16.msra.mxu0 0
        %3802 = vmatprep.subr.bf16.mxu0 0
        %3803 = vmatpush2.bf16.msra.mxu0 0
        %3804 = vmatprep.subr.bf16.mxu0 0
        %3805 = vmatpush2.bf16.msra.mxu0 0
        %3806 = vmatprep.subr.bf16.mxu0 0
        %3807 = vmatpush2.bf16.msra.mxu0 0
        %3808 = vmatprep.mubr.bf16.mxu0 0
        %3809 = vmatmul.mubr.bf16.gmra.mxu0 %v3771
        %v3810 = vpop.f32.mrf.mxu0
        %v3811 = vadd.f32 0.0, %v3810
        %v3812 = vpop.f32.mrf.mxu0
        %v3813 = vadd.f32 0.0, %v3812
        %v3814 = vpop.f32.mrf.mxu0
        %v3815 = vadd.f32 0.0, %v3814
        %v3816 = vpop.f32.mrf.mxu0
        %v3817 = vadd.f32 0.0, %v3816
        %3818 = vmatprep.mubr.bf16.mxu0 0
        %3819 = vmatmul.mubr.bf16.gmra.mxu0 %v3774
        %v3820 = vpop.f32.mrf.mxu0
        %v3821 = vadd.f32 0.0, %v3820
        %v3822 = vpop.f32.mrf.mxu0
        %v3823 = vadd.f32 0.0, %v3822
        %v3824 = vpop.f32.mrf.mxu0
        %v3825 = vadd.f32 0.0, %v3824
        %v3826 = vpop.f32.mrf.mxu0
        %v3827 = vadd.f32 0.0, %v3826
        %3828 = vdwg.mxu0
        %v3829 = vadd.f32 %v3693, %v3811
        %v3830 = vadd.f32 %v3694, %v3813
        %v3831 = vadd.f32 %v3695, %v3815
        %v3832 = vadd.f32 %v3696, %v3817
        %v3833 = vadd.f32 %v3697, %v3821
        %v3834 = vadd.f32 %v3698, %v3823
        %v3835 = vadd.f32 %v3699, %v3825
        %v3836 = vadd.f32 %v3700, %v3827
        %v3837 = vmul.bf16 %v3122, %v1358
        %v3838 = vmul.bf16 %v3134, %v1356
        %v3839 = vmul.bf16 %v3123, %v1358
        %v3840 = vmul.bf16 %v3135, %v1356
        %v3841 = vmul.bf16 %v3124, %v1358
        %v3842 = vmul.bf16 %v3136, %v1356
        %v3843 = vmul.bf16 %v3125, %v1358
        %v3844 = vmul.bf16 %v3137, %v1356
        %s3845 = scalar_lea.vmem %s7, 96
        %v3846 = vld [vmem:[%s3845] sm:$0xf]
        %v3847 = vld [vmem:[%s3845 + $0x4] sm:$0xf]
        %v3848 = vld [vmem:[%s3845 + $0x8] sm:$0xf]
        %v3849 = vld [vmem:[%s3845 + $0xc] sm:$0xf]
        %v3854 = vunpack.c.l.b16 %v3846
        %v3855 = vunpack.c.l.b16 %v3847
        %v3856 = vunpack.c.l.b16 %v3848
        %v3857 = vunpack.c.l.b16 %v3849
        %v3858 = vpack.c.b16 %v3855, %v3854
        %v3859 = vpack.c.b16 %v3857, %v3856
        %v3868 = vunpack.c.l.b16 %v3837
        %v3869 = vunpack.c.h.b16 %v3837
        %v3870 = vunpack.c.l.b16 %v3838
        %v3871 = vunpack.c.l.b16 %v3839
        %v3872 = vunpack.c.h.b16 %v3839
        %v3873 = vunpack.c.l.b16 %v3840
        %v3874 = vunpack.c.l.b16 %v3841
        %v3875 = vunpack.c.h.b16 %v3841
        %v3876 = vunpack.c.l.b16 %v3842
        %v3877 = vunpack.c.l.b16 %v3843
        %v3878 = vunpack.c.h.b16 %v3843
        %v3879 = vunpack.c.l.b16 %v3844
        %v3880 = vpack.c.b16 %v3871, %v3868
        %v3881 = vpack.c.b16 %v3872, %v3869
        %v3882 = vpack.c.b16 %v3873, %v3870
        %v3883 = vpack.c.b16 %v3877, %v3874
        %v3884 = vpack.c.b16 %v3878, %v3875
        %v3885 = vpack.c.b16 %v3879, %v3876
        %3886 = vrot.lane.b32.xlu0 %v3880, 96
        %v3887 = vpop.permute.xlu0 %3886
        %3888 = vrot.lane.b32.xlu0 %v3881, 96
        %v3889 = vpop.permute.xlu0 %3888
        %3890 = vrot.lane.b32.xlu0 %v3882, 96
        %v3891 = vpop.permute.xlu0 %3890
        %3892 = vrot.lane.b32.xlu0 %v3883, 96
        %v3893 = vpop.permute.xlu0 %3892
        %3894 = vrot.lane.b32.xlu0 %v3884, 96
        %v3895 = vpop.permute.xlu0 %3894
        %3896 = vrot.lane.b32.xlu0 %v3885, 96
        %v3897 = vpop.permute.xlu0 %3896
        %v3898 = vsel %vm1399, %v3887, %v3889
        %v3899 = vsel %vm1399, %v3889, %v3891
        %v3900 = vsel %vm1399, %v3893, %v3895
        %v3901 = vsel %vm1399, %v3895, %v3897
        %v3907 = vsel %vm1903, %v3858, 0
        %v3910 = vsel %vm1903, %v3859, 0
        %3912 = vmatprep.subr.bf16.mxu0 0
        %3913 = vmatpush1.bf16.msra.mxu0 0
        %3914 = vmatprep.subr.bf16.mxu0 0
        %3915 = vmatpush1.bf16.msra.mxu0 0
        %3916 = vmatprep.subr.bf16.mxu0 0
        %3917 = vmatpush1.bf16.msra.mxu0 0
        %3918 = vmatprep.subr.bf16.mxu0 0
        %3919 = vmatpush1.bf16.msra.mxu0 0
        %3920 = vmatprep.subr.bf16.mxu0 0
        %3921 = vmatpush1.bf16.msra.mxu0 0
        %3922 = vmatprep.subr.bf16.mxu0 0
        %3923 = vmatpush1.bf16.msra.mxu0 0
        %3924 = vmatprep.subr.bf16.mxu0 %v3901
        %3925 = vmatpush1.bf16.msra.mxu0 %v3900
        %3926 = vmatprep.subr.bf16.mxu0 %v3899
        %3927 = vmatpush1.bf16.msra.mxu0 %v3898
        %3928 = vmatprep.subr.bf16.mxu0 0
        %3929 = vmatpush2.bf16.msra.mxu0 0
        %3930 = vmatprep.subr.bf16.mxu0 0
        %3931 = vmatpush2.bf16.msra.mxu0 0
        %3932 = vmatprep.subr.bf16.mxu0 0
        %3933 = vmatpush2.bf16.msra.mxu0 0
        %3934 = vmatprep.subr.bf16.mxu0 0
        %3935 = vmatpush2.bf16.msra.mxu0 0
        %3936 = vmatprep.subr.bf16.mxu0 0
        %3937 = vmatpush2.bf16.msra.mxu0 0
        %3938 = vmatprep.subr.bf16.mxu0 0
        %3939 = vmatpush2.bf16.msra.mxu0 0
        %3940 = vmatprep.subr.bf16.mxu0 0
        %3941 = vmatpush2.bf16.msra.mxu0 0
        %3942 = vmatprep.subr.bf16.mxu0 0
        %3943 = vmatpush2.bf16.msra.mxu0 0
        %3944 = vmatprep.mubr.bf16.mxu0 0
        %3945 = vmatmul.mubr.bf16.gmra.mxu0 %v3907
        %v3946 = vpop.f32.mrf.mxu0
        %v3947 = vadd.f32 0.0, %v3946
        %v3948 = vpop.f32.mrf.mxu0
        %v3949 = vadd.f32 0.0, %v3948
        %v3950 = vpop.f32.mrf.mxu0
        %v3951 = vadd.f32 0.0, %v3950
        %v3952 = vpop.f32.mrf.mxu0
        %v3953 = vadd.f32 0.0, %v3952
        %3954 = vmatprep.mubr.bf16.mxu0 0
        %3955 = vmatmul.mubr.bf16.gmra.mxu0 %v3910
        %v3956 = vpop.f32.mrf.mxu0
        %v3957 = vadd.f32 0.0, %v3956
        %v3958 = vpop.f32.mrf.mxu0
        %v3959 = vadd.f32 0.0, %v3958
        %v3960 = vpop.f32.mrf.mxu0
        %v3961 = vadd.f32 0.0, %v3960
        %v3962 = vpop.f32.mrf.mxu0
        %v3963 = vadd.f32 0.0, %v3962
        %3964 = vdwg.mxu0
        %v3965 = vadd.f32 %v3829, %v3947
        %v3966 = vadd.f32 %v3830, %v3949
        %v3967 = vadd.f32 %v3831, %v3951
        %v3968 = vadd.f32 %v3832, %v3953
        %v3969 = vadd.f32 %v3833, %v3957
        %v3970 = vadd.f32 %v3834, %v3959
        %v3971 = vadd.f32 %v3835, %v3961
        %v3972 = vadd.f32 %v3836, %v3963
        %s3973 = scalar_lea.vmem %s7, 112
        %v3974 = vld [vmem:[%s3973] sm:$0xf]
        %v3975 = vld [vmem:[%s3973 + $0x4] sm:$0xf]
        %v3976 = vld [vmem:[%s3973 + $0x8] sm:$0xf]
        %v3977 = vld [vmem:[%s3973 + $0xc] sm:$0xf]
        %v3982 = vunpack.c.l.b16 %v3974
        %v3983 = vunpack.c.l.b16 %v3975
        %v3984 = vunpack.c.l.b16 %v3976
        %v3985 = vunpack.c.l.b16 %v3977
        %v3986 = vpack.c.b16 %v3983, %v3982
        %v3987 = vpack.c.b16 %v3985, %v3984
        %3988 = vrot.lane.b32.xlu0 %v3173, 95
        %v3989 = vpop.permute.xlu0 %3988
        %3990 = vrot.lane.b32.xlu0 %v3174, 95
        %v3991 = vpop.permute.xlu0 %3990
        %3992 = vrot.lane.b32.xlu0 %v3175, 95
        %v3993 = vpop.permute.xlu0 %3992
        %3994 = vrot.lane.b32.xlu0 %v3176, 95
        %v3995 = vpop.permute.xlu0 %3994
        %3996 = vrot.lane.b32.xlu0 %v3177, 95
        %v3997 = vpop.permute.xlu0 %3996
        %3998 = vrot.lane.b32.xlu0 %v3178, 95
        %v3999 = vpop.permute.xlu0 %3998
        %v4000 = vsel %vm1505, %v3989, %v3991
        %v4001 = vsel %vm1505, %v3991, %v3993
        %v4002 = vsel %vm1505, %v3995, %v3997
        %v4003 = vsel %vm1505, %v3997, %v3999
        %v4009 = vsel %vm1903, %v3986, 0
        %v4012 = vsel %vm1903, %v3987, 0
        %4014 = vmatprep.subr.bf16.mxu0 0
        %4015 = vmatpush1.bf16.msra.mxu0 0
        %4016 = vmatprep.subr.bf16.mxu0 0
        %4017 = vmatpush1.bf16.msra.mxu0 0
        %4018 = vmatprep.subr.bf16.mxu0 0
        %4019 = vmatpush1.bf16.msra.mxu0 0
        %4020 = vmatprep.subr.bf16.mxu0 0
        %4021 = vmatpush1.bf16.msra.mxu0 0
        %4022 = vmatprep.subr.bf16.mxu0 0
        %4023 = vmatpush1.bf16.msra.mxu0 0
        %4024 = vmatprep.subr.bf16.mxu0 0
        %4025 = vmatpush1.bf16.msra.mxu0 0
        %4026 = vmatprep.subr.bf16.mxu0 %v4003
        %4027 = vmatpush1.bf16.msra.mxu0 %v4002
        %4028 = vmatprep.subr.bf16.mxu0 %v4001
        %4029 = vmatpush1.bf16.msra.mxu0 %v4000
        %4030 = vmatprep.subr.bf16.mxu0 0
        %4031 = vmatpush2.bf16.msra.mxu0 0
        %4032 = vmatprep.subr.bf16.mxu0 0
        %4033 = vmatpush2.bf16.msra.mxu0 0
        %4034 = vmatprep.subr.bf16.mxu0 0
        %4035 = vmatpush2.bf16.msra.mxu0 0
        %4036 = vmatprep.subr.bf16.mxu0 0
        %4037 = vmatpush2.bf16.msra.mxu0 0
        %4038 = vmatprep.subr.bf16.mxu0 0
        %4039 = vmatpush2.bf16.msra.mxu0 0
        %4040 = vmatprep.subr.bf16.mxu0 0
        %4041 = vmatpush2.bf16.msra.mxu0 0
        %4042 = vmatprep.subr.bf16.mxu0 0
        %4043 = vmatpush2.bf16.msra.mxu0 0
        %4044 = vmatprep.subr.bf16.mxu0 0
        %4045 = vmatpush2.bf16.msra.mxu0 0
        %4046 = vmatprep.mubr.bf16.mxu0 0
        %4047 = vmatmul.mubr.bf16.gmra.mxu0 %v4009
        %v4048 = vpop.f32.mrf.mxu0
        %v4049 = vadd.f32 0.0, %v4048
        %v4050 = vpop.f32.mrf.mxu0
        %v4051 = vadd.f32 0.0, %v4050
        %v4052 = vpop.f32.mrf.mxu0
        %v4053 = vadd.f32 0.0, %v4052
        %v4054 = vpop.f32.mrf.mxu0
        %v4055 = vadd.f32 0.0, %v4054
        %4056 = vmatprep.mubr.bf16.mxu0 0
        %4057 = vmatmul.mubr.bf16.gmra.mxu0 %v4012
        %v4058 = vpop.f32.mrf.mxu0
        %v4059 = vadd.f32 0.0, %v4058
        %v4060 = vpop.f32.mrf.mxu0
        %v4061 = vadd.f32 0.0, %v4060
        %v4062 = vpop.f32.mrf.mxu0
        %v4063 = vadd.f32 0.0, %v4062
        %v4064 = vpop.f32.mrf.mxu0
        %v4065 = vadd.f32 0.0, %v4064
        %4066 = vdwg.mxu0
        %v4067 = vadd.f32 %v3965, %v4049
        %v4068 = vadd.f32 %v3966, %v4051
        %v4069 = vadd.f32 %v3967, %v4053
        %v4070 = vadd.f32 %v3968, %v4055
        %v4071 = vadd.f32 %v3969, %v4059
        %v4072 = vadd.f32 %v3970, %v4061
        %v4073 = vadd.f32 %v3971, %v4063
        %v4074 = vadd.f32 %v3972, %v4065
        %v4075 = vmul.bf16 %v3122, %v1581
        %v4076 = vmul.bf16 %v3134, %v1579
        %v4077 = vmul.bf16 %v3123, %v1581
        %v4078 = vmul.bf16 %v3135, %v1579
        %v4079 = vmul.bf16 %v3124, %v1581
        %v4080 = vmul.bf16 %v3136, %v1579
        %v4081 = vmul.bf16 %v3125, %v1581
        %v4082 = vmul.bf16 %v3137, %v1579
        %s4083 = scalar_lea.vmem %s7, 128
        %v4084 = vld [vmem:[%s4083] sm:$0xf]
        %v4085 = vld [vmem:[%s4083 + $0x4] sm:$0xf]
        %v4086 = vld [vmem:[%s4083 + $0x8] sm:$0xf]
        %v4087 = vld [vmem:[%s4083 + $0xc] sm:$0xf]
        %v4092 = vunpack.c.l.b16 %v4084
        %v4093 = vunpack.c.l.b16 %v4085
        %v4094 = vunpack.c.l.b16 %v4086
        %v4095 = vunpack.c.l.b16 %v4087
        %v4096 = vpack.c.b16 %v4093, %v4092
        %v4097 = vpack.c.b16 %v4095, %v4094
        %v4106 = vunpack.c.l.b16 %v4075
        %v4107 = vunpack.c.h.b16 %v4075
        %v4108 = vunpack.c.l.b16 %v4076
        %v4109 = vunpack.c.l.b16 %v4077
        %v4110 = vunpack.c.h.b16 %v4077
        %v4111 = vunpack.c.l.b16 %v4078
        %v4112 = vunpack.c.l.b16 %v4079
        %v4113 = vunpack.c.h.b16 %v4079
        %v4114 = vunpack.c.l.b16 %v4080
        %v4115 = vunpack.c.l.b16 %v4081
        %v4116 = vunpack.c.h.b16 %v4081
        %v4117 = vunpack.c.l.b16 %v4082
        %v4118 = vpack.c.b16 %v4109, %v4106
        %v4119 = vpack.c.b16 %v4110, %v4107
        %v4120 = vpack.c.b16 %v4111, %v4108
        %v4121 = vpack.c.b16 %v4115, %v4112
        %v4122 = vpack.c.b16 %v4116, %v4113
        %v4123 = vpack.c.b16 %v4117, %v4114
        %4124 = vrot.lane.b32.xlu0 %v4118, 94
        %v4125 = vpop.permute.xlu0 %4124
        %4126 = vrot.lane.b32.xlu0 %v4119, 94
        %v4127 = vpop.permute.xlu0 %4126
        %4128 = vrot.lane.b32.xlu0 %v4120, 94
        %v4129 = vpop.permute.xlu0 %4128
        %4130 = vrot.lane.b32.xlu0 %v4121, 94
        %v4131 = vpop.permute.xlu0 %4130
        %4132 = vrot.lane.b32.xlu0 %v4122, 94
        %v4133 = vpop.permute.xlu0 %4132
        %4134 = vrot.lane.b32.xlu0 %v4123, 94
        %v4135 = vpop.permute.xlu0 %4134
        %v4136 = vsel %vm1622, %v4125, %v4127
        %v4137 = vsel %vm1622, %v4127, %v4129
        %v4138 = vsel %vm1622, %v4131, %v4133
        %v4139 = vsel %vm1622, %v4133, %v4135
        %v4145 = vsel %vm1903, %v4096, 0
        %v4148 = vsel %vm1903, %v4097, 0
        %4150 = vmatprep.subr.bf16.mxu0 0
        %4151 = vmatpush1.bf16.msra.mxu0 0
        %4152 = vmatprep.subr.bf16.mxu0 0
        %4153 = vmatpush1.bf16.msra.mxu0 0
        %4154 = vmatprep.subr.bf16.mxu0 0
        %4155 = vmatpush1.bf16.msra.mxu0 0
        %4156 = vmatprep.subr.bf16.mxu0 0
        %4157 = vmatpush1.bf16.msra.mxu0 0
        %4158 = vmatprep.subr.bf16.mxu0 0
        %4159 = vmatpush1.bf16.msra.mxu0 0
        %4160 = vmatprep.subr.bf16.mxu0 0
        %4161 = vmatpush1.bf16.msra.mxu0 0
        %4162 = vmatprep.subr.bf16.mxu0 %v4139
        %4163 = vmatpush1.bf16.msra.mxu0 %v4138
        %4164 = vmatprep.subr.bf16.mxu0 %v4137
        %4165 = vmatpush1.bf16.msra.mxu0 %v4136
        %4166 = vmatprep.subr.bf16.mxu0 0
        %4167 = vmatpush2.bf16.msra.mxu0 0
        %4168 = vmatprep.subr.bf16.mxu0 0
        %4169 = vmatpush2.bf16.msra.mxu0 0
        %4170 = vmatprep.subr.bf16.mxu0 0
        %4171 = vmatpush2.bf16.msra.mxu0 0
        %4172 = vmatprep.subr.bf16.mxu0 0
        %4173 = vmatpush2.bf16.msra.mxu0 0
        %4174 = vmatprep.subr.bf16.mxu0 0
        %4175 = vmatpush2.bf16.msra.mxu0 0
        %4176 = vmatprep.subr.bf16.mxu0 0
        %4177 = vmatpush2.bf16.msra.mxu0 0
        %4178 = vmatprep.subr.bf16.mxu0 0
        %4179 = vmatpush2.bf16.msra.mxu0 0
        %4180 = vmatprep.subr.bf16.mxu0 0
        %4181 = vmatpush2.bf16.msra.mxu0 0
        %4182 = vmatprep.mubr.bf16.mxu0 0
        %4183 = vmatmul.mubr.bf16.gmra.mxu0 %v4145
        %v4184 = vpop.f32.mrf.mxu0
        %v4185 = vadd.f32 0.0, %v4184
        %v4186 = vpop.f32.mrf.mxu0
        %v4187 = vadd.f32 0.0, %v4186
        %v4188 = vpop.f32.mrf.mxu0
        %v4189 = vadd.f32 0.0, %v4188
        %v4190 = vpop.f32.mrf.mxu0
        %v4191 = vadd.f32 0.0, %v4190
        %4192 = vmatprep.mubr.bf16.mxu0 0
        %4193 = vmatmul.mubr.bf16.gmra.mxu0 %v4148
        %v4194 = vpop.f32.mrf.mxu0
        %v4195 = vadd.f32 0.0, %v4194
        %v4196 = vpop.f32.mrf.mxu0
        %v4197 = vadd.f32 0.0, %v4196
        %v4198 = vpop.f32.mrf.mxu0
        %v4199 = vadd.f32 0.0, %v4198
        %v4200 = vpop.f32.mrf.mxu0
        %v4201 = vadd.f32 0.0, %v4200
        %4202 = vdwg.mxu0
        %v4203 = vadd.f32 %v4067, %v4185
        %v4204 = vadd.f32 %v4068, %v4187
        %v4205 = vadd.f32 %v4069, %v4189
        %v4206 = vadd.f32 %v4070, %v4191
        %v4207 = vadd.f32 %v4071, %v4195
        %v4208 = vadd.f32 %v4072, %v4197
        %v4209 = vadd.f32 %v4073, %v4199
        %v4210 = vadd.f32 %v4074, %v4201
        %v4211 = vld [vmem:[%s8] sm:$0xff]
        %v4212 = vld [vmem:[%s8 + $0x8] sm:$0xff]
        %v4213 = vld [vmem:[%s8 + $0x10] sm:$0xff]
        %v4214 = vld [vmem:[%s8 + $0x18] sm:$0xff]
        %4216 = vset.pattern.permute.xlu0 0
        %4217 = vperm.xlu0 %4216, %v4211
        %v4218 = vpop.permute.xlu0 %4217
        %4221 = vset.pattern.permute.xlu0 0
        %4222 = vperm.xlu0 %4221, %v4212
        %v4223 = vpop.permute.xlu0 %4222
        %4226 = vset.pattern.permute.xlu0 0
        %4227 = vperm.xlu0 %4226, %v4213
        %v4228 = vpop.permute.xlu0 %4227
        %4231 = vset.pattern.permute.xlu0 0
        %4232 = vperm.xlu0 %4231, %v4214
        %v4233 = vpop.permute.xlu0 %4232
        %v4235 = vmul.f32 %v4203, %v4218
        %v4236 = vmul.f32 %v4204, %v4218
        %v4237 = vmul.f32 %v4205, %v4223
        %v4238 = vmul.f32 %v4206, %v4223
        %v4239 = vmul.f32 %v4207, %v4228
        %v4240 = vmul.f32 %v4208, %v4228
        %v4241 = vmul.f32 %v4209, %v4233
        %v4242 = vmul.f32 %v4210, %v4233
        %v4243 = vld [vmem:[%s9] sm:$0xff]
        %v4244 = vld [vmem:[%s9 + $0x8] sm:$0xff]
        %v4245 = vld [vmem:[%s9 + $0x10] sm:$0xff]
        %v4246 = vld [vmem:[%s9 + $0x18] sm:$0xff]
        %4248 = vset.pattern.permute.xlu0 0
        %4249 = vperm.xlu0 %4248, %v4243
        %v4250 = vpop.permute.xlu0 %4249
        %4253 = vset.pattern.permute.xlu0 0
        %4254 = vperm.xlu0 %4253, %v4244
        %v4255 = vpop.permute.xlu0 %4254
        %4258 = vset.pattern.permute.xlu0 0
        %4259 = vperm.xlu0 %4258, %v4245
        %v4260 = vpop.permute.xlu0 %4259
        %4263 = vset.pattern.permute.xlu0 0
        %4264 = vperm.xlu0 %4263, %v4246
        %v4265 = vpop.permute.xlu0 %4264
        %v4267 = vadd.f32 %v4235, %v4250
        %v4268 = vadd.f32 %v4236, %v4250
        %v4269 = vadd.f32 %v4237, %v4255
        %v4270 = vadd.f32 %v4238, %v4255
        %v4271 = vadd.f32 %v4239, %v4260
        %v4272 = vadd.f32 %v4240, %v4260
        %v4273 = vadd.f32 %v4241, %v4265
        %v4274 = vadd.f32 %v4242, %v4265
        %v4275 = vadd.f32 %v4267, %v4268
        %4276 = vadd.xlane.f32.xlu0 %v4275
        %v4277 = vpop.xlane.xlu0 %4276
        %v4278 = vadd.f32 %v4269, %v4270
        %4279 = vadd.xlane.f32.xlu0 %v4278
        %v4280 = vpop.xlane.xlu0 %4279
        %v4281 = vadd.f32 %v4271, %v4272
        %4282 = vadd.xlane.f32.xlu0 %v4281
        %v4283 = vpop.xlane.xlu0 %4282
        %v4284 = vadd.f32 %v4273, %v4274
        %4285 = vadd.xlane.f32.xlu0 %v4284
        %v4286 = vpop.xlane.xlu0 %4285
        %v4287 = vmul.f32 %v4277, 0.00390625
        %v4288 = vmul.f32 %v4280, 0.00390625
        %v4289 = vmul.f32 %v4283, 0.00390625
        %v4290 = vmul.f32 %v4286, 0.00390625
        %v4291 = vld [vmem:[%s16] sm:$0xff]
        %v4292 = vld [vmem:[%s16 + $0x8] sm:$0xff]
        %v4293 = vld [vmem:[%s16 + $0x10] sm:$0xff]
        %v4294 = vld [vmem:[%s16 + $0x18] sm:$0xff]
        %v4295 = vld [vmem:[%s16 + $0x20] sm:$0xff]
        %v4296 = vld [vmem:[%s16 + $0x28] sm:$0xff]
        %v4297 = vld [vmem:[%s16 + $0x30] sm:$0xff]
        %v4298 = vld [vmem:[%s16 + $0x38] sm:$0xff]
        %v4299 = vmul.f32 %v4267, %v4291
        %v4300 = vmul.f32 %v4268, %v4292
        %v4301 = vmul.f32 %v4269, %v4293
        %v4302 = vmul.f32 %v4270, %v4294
        %v4303 = vmul.f32 %v4271, %v4295
        %v4304 = vmul.f32 %v4272, %v4296
        %v4305 = vmul.f32 %v4273, %v4297
        %v4306 = vmul.f32 %v4274, %v4298
        %v4307 = vadd.f32 %v4299, %v4300
        %4308 = vadd.xlane.f32.xlu0 %v4307
        %v4309 = vpop.xlane.xlu0 %4308
        %v4310 = vadd.f32 %v4301, %v4302
        %4311 = vadd.xlane.f32.xlu0 %v4310
        %v4312 = vpop.xlane.xlu0 %4311
        %v4313 = vadd.f32 %v4303, %v4304
        %4314 = vadd.xlane.f32.xlu0 %v4313
        %v4315 = vpop.xlane.xlu0 %4314
        %v4316 = vadd.f32 %v4305, %v4306
        %4317 = vadd.xlane.f32.xlu0 %v4316
        %v4318 = vpop.xlane.xlu0 %4317
        %v4319 = vld [vmem:[%s12] sm:$0xff]
        %v4320 = vld [vmem:[%s12 + $0x8] sm:$0xff]
        %v4321 = vld [vmem:[%s12 + $0x10] sm:$0xff]
        %v4322 = vld [vmem:[%s12 + $0x18] sm:$0xff]
        %v4323 = vmul.f32 %v4287, %v4319
        %v4324 = vmul.f32 %v4288, %v4320
        %v4325 = vmul.f32 %v4289, %v4321
        %v4326 = vmul.f32 %v4290, %v4322
        %vm4327 = vcmask 15360
        %v4328 = vsel %vm4327, %v4323, 0.0
        %v4329 = vsel %vm4327, %v4324, 0.0
        %v4330 = vadd.f32 %v4328, %v4329
        %v4331 = vsel %vm4327, %v4325, 0.0
        %v4332 = vadd.f32 %v4330, %v4331
        %v4333 = vsel %vm4327, %v4326, 0.0
        %v4334 = vadd.f32 %v4332, %v4333
        %v4335 = vrot.slane %v4334, 4
        %v4336 = vadd.f32 %v4334, %v4335
        %v4337 = vrot.slane %v4336, 2
        %v4338 = vadd.f32 %v4336, %v4337
        %v4339 = vrot.slane %v4338, 1
        %v4340 = vadd.f32 %v4338, %v4339
        %v4341 = vmax.f32 %v4340, 0.0
        %v4342 = vld [vmem:[%s13] sm:$0xff]
        %v4343 = vld [vmem:[%s13 + $0x8] sm:$0xff]
        %v4344 = vld [vmem:[%s13 + $0x10] sm:$0xff]
        %v4345 = vld [vmem:[%s13 + $0x18] sm:$0xff]
        %v4346 = vmul.f32 %v4342, %v4341
        %v4347 = vmul.f32 %v4343, %v4341
        %v4348 = vmul.f32 %v4344, %v4341
        %v4349 = vmul.f32 %v4345, %v4341
        %v4350 = vsel %vm4327, %v4346, 0.0
        %4351 = vadd.xlane.f32.xlu0 %v4350
        %v4352 = vpop.xlane.xlu0 %4351
        %v4353 = vsel %vm4327, %v4347, 0.0
        %4354 = vadd.xlane.f32.xlu0 %v4353
        %v4355 = vpop.xlane.xlu0 %4354
        %v4356 = vsel %vm4327, %v4348, 0.0
        %4357 = vadd.xlane.f32.xlu0 %v4356
        %v4358 = vpop.xlane.xlu0 %4357
        %v4359 = vsel %vm4327, %v4349, 0.0
        %4360 = vadd.xlane.f32.xlu0 %v4359
        %v4361 = vpop.xlane.xlu0 %4360
        %v4362 = vxor.u32 %v4352, 2147483648
        %v4363 = vxor.u32 %v4355, 2147483648
        %v4364 = vxor.u32 %v4358, 2147483648
        %v4365 = vxor.u32 %v4361, 2147483648
        %v4366 = vmul.f32 %v4362, 1.442695
        %v4367 = vpow.pop %v4366
        %v4368 = vmul.f32 %v4363, 1.442695
        %v4369 = vpow.pop %v4368
        %v4370 = vmul.f32 %v4364, 1.442695
        %v4371 = vpow.pop %v4370
        %v4372 = vmul.f32 %v4365, 1.442695
        %v4373 = vpow.pop %v4372
        %v4374 = vadd.f32 %v4367, 1.0
        %v4375 = vadd.f32 %v4369, 1.0
        %v4376 = vadd.f32 %v4371, 1.0
        %v4377 = vadd.f32 %v4373, 1.0
        %v4378 = vrcp.pop %v4374
        %v4379 = vmul.f32 1.0, %v4378
        %v4380 = vrcp.pop %v4375
        %v4381 = vmul.f32 1.0, %v4380
        %v4382 = vrcp.pop %v4376
        %v4383 = vmul.f32 1.0, %v4382
        %v4384 = vrcp.pop %v4377
        %v4385 = vmul.f32 1.0, %v4384
        %v4386 = vmul.f32 %v4309, %v4379
        %v4387 = vmul.f32 %v4312, %v4381
        %v4388 = vmul.f32 %v4315, %v4383
        %v4389 = vmul.f32 %v4318, %v4385
        %v4390 = vld [vmem:[%s14] sm:$0xff]
        %v4391 = vld [vmem:[%s14 + $0x8] sm:$0xff]
        %v4392 = vld [vmem:[%s14 + $0x10] sm:$0xff]
        %v4393 = vld [vmem:[%s14 + $0x18] sm:$0xff]
        %v4394 = vmul.f32 %v4386, %v4390
        %v4395 = vmul.f32 %v4387, %v4391
        %v4396 = vmul.f32 %v4388, %v4392
        %v4397 = vmul.f32 %v4389, %v4393
        %v4398 = vsel %vm4327, %v4394, 0.0
        %v4399 = vsel %vm4327, %v4395, 0.0
        %v4400 = vadd.f32 %v4398, %v4399
        %v4401 = vsel %vm4327, %v4396, 0.0
        %v4402 = vadd.f32 %v4400, %v4401
        %v4403 = vsel %vm4327, %v4397, 0.0
        %v4404 = vadd.f32 %v4402, %v4403
        %v4405 = vrot.slane %v4404, 4
        %v4406 = vadd.f32 %v4404, %v4405
        %v4407 = vrot.slane %v4406, 2
        %v4408 = vadd.f32 %v4406, %v4407
        %v4409 = vrot.slane %v4408, 1
        %v4410 = vadd.f32 %v4408, %v4409
        %v4411 = vmax.f32 %v4410, 0.0
        %v4412 = vld [vmem:[%s15] sm:$0xff]
        %v4413 = vld [vmem:[%s15 + $0x8] sm:$0xff]
        %v4414 = vld [vmem:[%s15 + $0x10] sm:$0xff]
        %v4415 = vld [vmem:[%s15 + $0x18] sm:$0xff]
        %v4416 = vmul.f32 %v4412, %v4411
        %v4417 = vmul.f32 %v4413, %v4411
        %v4418 = vmul.f32 %v4414, %v4411
        %v4419 = vmul.f32 %v4415, %v4411
        %v4420 = vsel %vm4327, %v4416, 0.0
        %4421 = vadd.xlane.f32.xlu0 %v4420
        %v4422 = vpop.xlane.xlu0 %4421
        %v4423 = vsel %vm4327, %v4417, 0.0
        %4424 = vadd.xlane.f32.xlu0 %v4423
        %v4425 = vpop.xlane.xlu0 %4424
        %v4426 = vsel %vm4327, %v4418, 0.0
        %4427 = vadd.xlane.f32.xlu0 %v4426
        %v4428 = vpop.xlane.xlu0 %4427
        %v4429 = vsel %vm4327, %v4419, 0.0
        %4430 = vadd.xlane.f32.xlu0 %v4429
        %v4431 = vpop.xlane.xlu0 %4430
        %v4432 = vxor.u32 %v4422, 2147483648
        %v4433 = vxor.u32 %v4425, 2147483648
        %v4434 = vxor.u32 %v4428, 2147483648
        %v4435 = vxor.u32 %v4431, 2147483648
        %v4436 = vmul.f32 %v4432, 1.442695
        %v4437 = vpow.pop %v4436
        %v4438 = vmul.f32 %v4433, 1.442695
        %v4439 = vpow.pop %v4438
        %v4440 = vmul.f32 %v4434, 1.442695
        %v4441 = vpow.pop %v4440
        %v4442 = vmul.f32 %v4435, 1.442695
        %v4443 = vpow.pop %v4442
        %v4444 = vadd.f32 %v4437, 1.0
        %v4445 = vadd.f32 %v4439, 1.0
        %v4446 = vadd.f32 %v4441, 1.0
        %v4447 = vadd.f32 %v4443, 1.0
        %v4448 = vrcp.pop %v4444
        %v4449 = vmul.f32 1.0, %v4448
        %v4450 = vrcp.pop %v4445
        %v4451 = vmul.f32 1.0, %v4450
        %v4452 = vrcp.pop %v4446
        %v4453 = vmul.f32 1.0, %v4452
        %v4454 = vrcp.pop %v4447
        %v4455 = vmul.f32 1.0, %v4454
        %v4456 = vmul.f32 %v4379, %v4449
        %v4457 = vmul.f32 %v4381, %v4451
        %v4458 = vmul.f32 %v4383, %v4453
        %v4459 = vmul.f32 %v4385, %v4455
        %v4460 = vmul.f32 %v4267, %v4456
        %v4461 = vmul.f32 %v4268, %v4456
        %v4462 = vmul.f32 %v4269, %v4457
        %v4463 = vmul.f32 %v4270, %v4457
        %v4464 = vmul.f32 %v4271, %v4458
        %v4465 = vmul.f32 %v4272, %v4458
        %v4466 = vmul.f32 %v4273, %v4459
        %v4467 = vmul.f32 %v4274, %v4459
        %v4468 = vld [vmem:[%s17] sm:$0xff]
        %v4469 = vld [vmem:[%s17 + $0x8] sm:$0xff]
        %v4470 = vld [vmem:[%s17 + $0x10] sm:$0xff]
        %v4471 = vld [vmem:[%s17 + $0x18] sm:$0xff]
        %4473 = vset.pattern.permute.xlu0 0
        %4474 = vperm.xlu0 %4473, %v4468
        %v4475 = vpop.permute.xlu0 %4474
        %4478 = vset.pattern.permute.xlu0 0
        %4479 = vperm.xlu0 %4478, %v4469
        %v4480 = vpop.permute.xlu0 %4479
        %4483 = vset.pattern.permute.xlu0 0
        %4484 = vperm.xlu0 %4483, %v4470
        %v4485 = vpop.permute.xlu0 %4484
        %4488 = vset.pattern.permute.xlu0 0
        %4489 = vperm.xlu0 %4488, %v4471
        %v4490 = vpop.permute.xlu0 %4489
        %v4492 = vlaneseq
        %v4493 = vshrl.u32 %v4492, 7
        %v4494 = vsub.s32 0, %v4493
        %v4495 = vrot.slane %v604, %v4494
        %v4496 = vlaneseq
        %v4497 = vshrl.u32 %v4496, 7
        %v4498 = vsub.s32 0, %v4497
        %v4499 = vrot.slane %v605, %v4498
        %v4500 = vmul.f32 %v4475, %v4495
        %v4501 = vmul.f32 %v4475, %v4499
        %v4502 = vmul.f32 %v4480, %v4495
        %v4503 = vmul.f32 %v4480, %v4499
        %v4504 = vmul.f32 %v4485, %v4495
        %v4505 = vmul.f32 %v4485, %v4499
        %v4506 = vmul.f32 %v4490, %v4495
        %v4507 = vmul.f32 %v4490, %v4499
        %v4508 = vadd.f32 %v4500, 0.0
        %v4509 = vadd.f32 %v4501, 0.0
        %v4510 = vadd.f32 %v4502, 0.0
        %v4511 = vadd.f32 %v4503, 0.0
        %v4512 = vadd.f32 %v4504, 0.0
        %v4513 = vadd.f32 %v4505, 0.0
        %v4514 = vadd.f32 %v4506, 0.0
        %v4515 = vadd.f32 %v4507, 0.0
        %4516 = vset.pattern.permute.xlu0 1
        %4517 = vperm.xlu0 %4516, %v4468
        %v4518 = vpop.permute.xlu0 %4517
        %4520 = vset.pattern.permute.xlu0 1
        %4521 = vperm.xlu0 %4520, %v4469
        %v4522 = vpop.permute.xlu0 %4521
        %4524 = vset.pattern.permute.xlu0 1
        %4525 = vperm.xlu0 %4524, %v4470
        %v4526 = vpop.permute.xlu0 %4525
        %4528 = vset.pattern.permute.xlu0 1
        %4529 = vperm.xlu0 %4528, %v4471
        %v4530 = vpop.permute.xlu0 %4529
        %v4532 = vlaneseq
        %v4533 = vshrl.u32 %v4532, 7
        %v4534 = vsub.s32 1, %v4533
        %v4535 = vrot.slane %v604, %v4534
        %v4536 = vlaneseq
        %v4537 = vshrl.u32 %v4536, 7
        %v4538 = vsub.s32 1, %v4537
        %v4539 = vrot.slane %v605, %v4538
        %v4540 = vmul.f32 %v4518, %v4535
        %v4541 = vmul.f32 %v4518, %v4539
        %v4542 = vmul.f32 %v4522, %v4535
        %v4543 = vmul.f32 %v4522, %v4539
        %v4544 = vmul.f32 %v4526, %v4535
        %v4545 = vmul.f32 %v4526, %v4539
        %v4546 = vmul.f32 %v4530, %v4535
        %v4547 = vmul.f32 %v4530, %v4539
        %v4548 = vadd.f32 %v4508, %v4540
        %v4549 = vadd.f32 %v4509, %v4541
        %v4550 = vadd.f32 %v4510, %v4542
        %v4551 = vadd.f32 %v4511, %v4543
        %v4552 = vadd.f32 %v4512, %v4544
        %v4553 = vadd.f32 %v4513, %v4545
        %v4554 = vadd.f32 %v4514, %v4546
        %v4555 = vadd.f32 %v4515, %v4547
        %4556 = vset.pattern.permute.xlu0 2
        %4557 = vperm.xlu0 %4556, %v4468
        %v4558 = vpop.permute.xlu0 %4557
        %4560 = vset.pattern.permute.xlu0 2
        %4561 = vperm.xlu0 %4560, %v4469
        %v4562 = vpop.permute.xlu0 %4561
        %4564 = vset.pattern.permute.xlu0 2
        %4565 = vperm.xlu0 %4564, %v4470
        %v4566 = vpop.permute.xlu0 %4565
        %4568 = vset.pattern.permute.xlu0 2
        %4569 = vperm.xlu0 %4568, %v4471
        %v4570 = vpop.permute.xlu0 %4569
        %v4572 = vlaneseq
        %v4573 = vshrl.u32 %v4572, 7
        %v4574 = vsub.s32 2, %v4573
        %v4575 = vrot.slane %v604, %v4574
        %v4576 = vlaneseq
        %v4577 = vshrl.u32 %v4576, 7
        %v4578 = vsub.s32 2, %v4577
        %v4579 = vrot.slane %v605, %v4578
        %v4580 = vmul.f32 %v4558, %v4575
        %v4581 = vmul.f32 %v4558, %v4579
        %v4582 = vmul.f32 %v4562, %v4575
        %v4583 = vmul.f32 %v4562, %v4579
        %v4584 = vmul.f32 %v4566, %v4575
        %v4585 = vmul.f32 %v4566, %v4579
        %v4586 = vmul.f32 %v4570, %v4575
        %v4587 = vmul.f32 %v4570, %v4579
        %v4588 = vadd.f32 %v4548, %v4580
        %v4589 = vadd.f32 %v4549, %v4581
        %v4590 = vadd.f32 %v4550, %v4582
        %v4591 = vadd.f32 %v4551, %v4583
        %v4592 = vadd.f32 %v4552, %v4584
        %v4593 = vadd.f32 %v4553, %v4585
        %v4594 = vadd.f32 %v4554, %v4586
        %v4595 = vadd.f32 %v4555, %v4587
        %4596 = vset.pattern.permute.xlu0 3
        %4597 = vperm.xlu0 %4596, %v4468
        %v4598 = vpop.permute.xlu0 %4597
        %4600 = vset.pattern.permute.xlu0 3
        %4601 = vperm.xlu0 %4600, %v4469
        %v4602 = vpop.permute.xlu0 %4601
        %4604 = vset.pattern.permute.xlu0 3
        %4605 = vperm.xlu0 %4604, %v4470
        %v4606 = vpop.permute.xlu0 %4605
        %4608 = vset.pattern.permute.xlu0 3
        %4609 = vperm.xlu0 %4608, %v4471
        %v4610 = vpop.permute.xlu0 %4609
        %v4612 = vlaneseq
        %v4613 = vshrl.u32 %v4612, 7
        %v4614 = vsub.s32 3, %v4613
        %v4615 = vrot.slane %v604, %v4614
        %v4616 = vlaneseq
        %v4617 = vshrl.u32 %v4616, 7
        %v4618 = vsub.s32 3, %v4617
        %v4619 = vrot.slane %v605, %v4618
        %v4620 = vmul.f32 %v4598, %v4615
        %v4621 = vmul.f32 %v4598, %v4619
        %v4622 = vmul.f32 %v4602, %v4615
        %v4623 = vmul.f32 %v4602, %v4619
        %v4624 = vmul.f32 %v4606, %v4615
        %v4625 = vmul.f32 %v4606, %v4619
        %v4626 = vmul.f32 %v4610, %v4615
        %v4627 = vmul.f32 %v4610, %v4619
        %v4628 = vadd.f32 %v4588, %v4620
        %v4629 = vadd.f32 %v4589, %v4621
        %v4630 = vadd.f32 %v4590, %v4622
        %v4631 = vadd.f32 %v4591, %v4623
        %v4632 = vadd.f32 %v4592, %v4624
        %v4633 = vadd.f32 %v4593, %v4625
        %v4634 = vadd.f32 %v4594, %v4626
        %v4635 = vadd.f32 %v4595, %v4627
        %4636 = vset.pattern.permute.xlu0 4
        %4637 = vperm.xlu0 %4636, %v4468
        %v4638 = vpop.permute.xlu0 %4637
        %4640 = vset.pattern.permute.xlu0 4
        %4641 = vperm.xlu0 %4640, %v4469
        %v4642 = vpop.permute.xlu0 %4641
        %4644 = vset.pattern.permute.xlu0 4
        %4645 = vperm.xlu0 %4644, %v4470
        %v4646 = vpop.permute.xlu0 %4645
        %4648 = vset.pattern.permute.xlu0 4
        %4649 = vperm.xlu0 %4648, %v4471
        %v4650 = vpop.permute.xlu0 %4649
        %v4652 = vlaneseq
        %v4653 = vshrl.u32 %v4652, 7
        %v4654 = vsub.s32 4, %v4653
        %v4655 = vrot.slane %v604, %v4654
        %v4656 = vlaneseq
        %v4657 = vshrl.u32 %v4656, 7
        %v4658 = vsub.s32 4, %v4657
        %v4659 = vrot.slane %v605, %v4658
        %v4660 = vmul.f32 %v4638, %v4655
        %v4661 = vmul.f32 %v4638, %v4659
        %v4662 = vmul.f32 %v4642, %v4655
        %v4663 = vmul.f32 %v4642, %v4659
        %v4664 = vmul.f32 %v4646, %v4655
        %v4665 = vmul.f32 %v4646, %v4659
        %v4666 = vmul.f32 %v4650, %v4655
        %v4667 = vmul.f32 %v4650, %v4659
        %v4668 = vadd.f32 %v4628, %v4660
        %v4669 = vadd.f32 %v4629, %v4661
        %v4670 = vadd.f32 %v4630, %v4662
        %v4671 = vadd.f32 %v4631, %v4663
        %v4672 = vadd.f32 %v4632, %v4664
        %v4673 = vadd.f32 %v4633, %v4665
        %v4674 = vadd.f32 %v4634, %v4666
        %v4675 = vadd.f32 %v4635, %v4667
        %4676 = vset.pattern.permute.xlu0 5
        %4677 = vperm.xlu0 %4676, %v4468
        %v4678 = vpop.permute.xlu0 %4677
        %4680 = vset.pattern.permute.xlu0 5
        %4681 = vperm.xlu0 %4680, %v4469
        %v4682 = vpop.permute.xlu0 %4681
        %4684 = vset.pattern.permute.xlu0 5
        %4685 = vperm.xlu0 %4684, %v4470
        %v4686 = vpop.permute.xlu0 %4685
        %4688 = vset.pattern.permute.xlu0 5
        %4689 = vperm.xlu0 %4688, %v4471
        %v4690 = vpop.permute.xlu0 %4689
        %v4692 = vlaneseq
        %v4693 = vshrl.u32 %v4692, 7
        %v4694 = vsub.s32 5, %v4693
        %v4695 = vrot.slane %v604, %v4694
        %v4696 = vlaneseq
        %v4697 = vshrl.u32 %v4696, 7
        %v4698 = vsub.s32 5, %v4697
        %v4699 = vrot.slane %v605, %v4698
        %v4700 = vmul.f32 %v4678, %v4695
        %v4701 = vmul.f32 %v4678, %v4699
        %v4702 = vmul.f32 %v4682, %v4695
        %v4703 = vmul.f32 %v4682, %v4699
        %v4704 = vmul.f32 %v4686, %v4695
        %v4705 = vmul.f32 %v4686, %v4699
        %v4706 = vmul.f32 %v4690, %v4695
        %v4707 = vmul.f32 %v4690, %v4699
        %v4708 = vadd.f32 %v4668, %v4700
        %v4709 = vadd.f32 %v4669, %v4701
        %v4710 = vadd.f32 %v4670, %v4702
        %v4711 = vadd.f32 %v4671, %v4703
        %v4712 = vadd.f32 %v4672, %v4704
        %v4713 = vadd.f32 %v4673, %v4705
        %v4714 = vadd.f32 %v4674, %v4706
        %v4715 = vadd.f32 %v4675, %v4707
        %4716 = vset.pattern.permute.xlu0 6
        %4717 = vperm.xlu0 %4716, %v4468
        %v4718 = vpop.permute.xlu0 %4717
        %4720 = vset.pattern.permute.xlu0 6
        %4721 = vperm.xlu0 %4720, %v4469
        %v4722 = vpop.permute.xlu0 %4721
        %4724 = vset.pattern.permute.xlu0 6
        %4725 = vperm.xlu0 %4724, %v4470
        %v4726 = vpop.permute.xlu0 %4725
        %4728 = vset.pattern.permute.xlu0 6
        %4729 = vperm.xlu0 %4728, %v4471
        %v4730 = vpop.permute.xlu0 %4729
        %v4732 = vlaneseq
        %v4733 = vshrl.u32 %v4732, 7
        %v4734 = vsub.s32 6, %v4733
        %v4735 = vrot.slane %v604, %v4734
        %v4736 = vlaneseq
        %v4737 = vshrl.u32 %v4736, 7
        %v4738 = vsub.s32 6, %v4737
        %v4739 = vrot.slane %v605, %v4738
        %v4740 = vmul.f32 %v4718, %v4735
        %v4741 = vmul.f32 %v4718, %v4739
        %v4742 = vmul.f32 %v4722, %v4735
        %v4743 = vmul.f32 %v4722, %v4739
        %v4744 = vmul.f32 %v4726, %v4735
        %v4745 = vmul.f32 %v4726, %v4739
        %v4746 = vmul.f32 %v4730, %v4735
        %v4747 = vmul.f32 %v4730, %v4739
        %v4748 = vadd.f32 %v4708, %v4740
        %v4749 = vadd.f32 %v4709, %v4741
        %v4750 = vadd.f32 %v4710, %v4742
        %v4751 = vadd.f32 %v4711, %v4743
        %v4752 = vadd.f32 %v4712, %v4744
        %v4753 = vadd.f32 %v4713, %v4745
        %v4754 = vadd.f32 %v4714, %v4746
        %v4755 = vadd.f32 %v4715, %v4747
        %4756 = vset.pattern.permute.xlu0 7
        %4757 = vperm.xlu0 %4756, %v4468
        %v4758 = vpop.permute.xlu0 %4757
        %4760 = vset.pattern.permute.xlu0 7
        %4761 = vperm.xlu0 %4760, %v4469
        %v4762 = vpop.permute.xlu0 %4761
        %4764 = vset.pattern.permute.xlu0 7
        %4765 = vperm.xlu0 %4764, %v4470
        %v4766 = vpop.permute.xlu0 %4765
        %4768 = vset.pattern.permute.xlu0 7
        %4769 = vperm.xlu0 %4768, %v4471
        %v4770 = vpop.permute.xlu0 %4769
        %v4772 = vlaneseq
        %v4773 = vshrl.u32 %v4772, 7
        %v4774 = vsub.s32 7, %v4773
        %v4775 = vrot.slane %v604, %v4774
        %v4776 = vlaneseq
        %v4777 = vshrl.u32 %v4776, 7
        %v4778 = vsub.s32 7, %v4777
        %v4779 = vrot.slane %v605, %v4778
        %v4780 = vmul.f32 %v4758, %v4775
        %v4781 = vmul.f32 %v4758, %v4779
        %v4782 = vmul.f32 %v4762, %v4775
        %v4783 = vmul.f32 %v4762, %v4779
        %v4784 = vmul.f32 %v4766, %v4775
        %v4785 = vmul.f32 %v4766, %v4779
        %v4786 = vmul.f32 %v4770, %v4775
        %v4787 = vmul.f32 %v4770, %v4779
        %v4788 = vadd.f32 %v4748, %v4780
        %v4789 = vadd.f32 %v4749, %v4781
        %v4790 = vadd.f32 %v4750, %v4782
        %v4791 = vadd.f32 %v4751, %v4783
        %v4792 = vadd.f32 %v4752, %v4784
        %v4793 = vadd.f32 %v4753, %v4785
        %v4794 = vadd.f32 %v4754, %v4786
        %v4795 = vadd.f32 %v4755, %v4787
        %4796 = vset.pattern.permute.xlu0 8
        %4797 = vperm.xlu0 %4796, %v4468
        %v4798 = vpop.permute.xlu0 %4797
        %4800 = vset.pattern.permute.xlu0 8
        %4801 = vperm.xlu0 %4800, %v4469
        %v4802 = vpop.permute.xlu0 %4801
        %4804 = vset.pattern.permute.xlu0 8
        %4805 = vperm.xlu0 %4804, %v4470
        %v4806 = vpop.permute.xlu0 %4805
        %4808 = vset.pattern.permute.xlu0 8
        %4809 = vperm.xlu0 %4808, %v4471
        %v4810 = vpop.permute.xlu0 %4809
        %v4812 = vlaneseq
        %v4813 = vshrl.u32 %v4812, 7
        %v4814 = vsub.s32 0, %v4813
        %v4815 = vrot.slane %v606, %v4814
        %v4816 = vlaneseq
        %v4817 = vshrl.u32 %v4816, 7
        %v4818 = vsub.s32 0, %v4817
        %v4819 = vrot.slane %v607, %v4818
        %v4820 = vmul.f32 %v4798, %v4815
        %v4821 = vmul.f32 %v4798, %v4819
        %v4822 = vmul.f32 %v4802, %v4815
        %v4823 = vmul.f32 %v4802, %v4819
        %v4824 = vmul.f32 %v4806, %v4815
        %v4825 = vmul.f32 %v4806, %v4819
        %v4826 = vmul.f32 %v4810, %v4815
        %v4827 = vmul.f32 %v4810, %v4819
        %v4828 = vadd.f32 %v4788, %v4820
        %v4829 = vadd.f32 %v4789, %v4821
        %v4830 = vadd.f32 %v4790, %v4822
        %v4831 = vadd.f32 %v4791, %v4823
        %v4832 = vadd.f32 %v4792, %v4824
        %v4833 = vadd.f32 %v4793, %v4825
        %v4834 = vadd.f32 %v4794, %v4826
        %v4835 = vadd.f32 %v4795, %v4827
        %4836 = vset.pattern.permute.xlu0 9
        %4837 = vperm.xlu0 %4836, %v4468
        %v4838 = vpop.permute.xlu0 %4837
        %4840 = vset.pattern.permute.xlu0 9
        %4841 = vperm.xlu0 %4840, %v4469
        %v4842 = vpop.permute.xlu0 %4841
        %4844 = vset.pattern.permute.xlu0 9
        %4845 = vperm.xlu0 %4844, %v4470
        %v4846 = vpop.permute.xlu0 %4845
        %4848 = vset.pattern.permute.xlu0 9
        %4849 = vperm.xlu0 %4848, %v4471
        %v4850 = vpop.permute.xlu0 %4849
        %v4852 = vlaneseq
        %v4853 = vshrl.u32 %v4852, 7
        %v4854 = vsub.s32 1, %v4853
        %v4855 = vrot.slane %v606, %v4854
        %v4856 = vlaneseq
        %v4857 = vshrl.u32 %v4856, 7
        %v4858 = vsub.s32 1, %v4857
        %v4859 = vrot.slane %v607, %v4858
        %v4860 = vmul.f32 %v4838, %v4855
        %v4861 = vmul.f32 %v4838, %v4859
        %v4862 = vmul.f32 %v4842, %v4855
        %v4863 = vmul.f32 %v4842, %v4859
        %v4864 = vmul.f32 %v4846, %v4855
        %v4865 = vmul.f32 %v4846, %v4859
        %v4866 = vmul.f32 %v4850, %v4855
        %v4867 = vmul.f32 %v4850, %v4859
        %v4868 = vadd.f32 %v4828, %v4860
        %v4869 = vadd.f32 %v4829, %v4861
        %v4870 = vadd.f32 %v4830, %v4862
        %v4871 = vadd.f32 %v4831, %v4863
        %v4872 = vadd.f32 %v4832, %v4864
        %v4873 = vadd.f32 %v4833, %v4865
        %v4874 = vadd.f32 %v4834, %v4866
        %v4875 = vadd.f32 %v4835, %v4867
        %4876 = vset.pattern.permute.xlu0 10
        %4877 = vperm.xlu0 %4876, %v4468
        %v4878 = vpop.permute.xlu0 %4877
        %4880 = vset.pattern.permute.xlu0 10
        %4881 = vperm.xlu0 %4880, %v4469
        %v4882 = vpop.permute.xlu0 %4881
        %4884 = vset.pattern.permute.xlu0 10
        %4885 = vperm.xlu0 %4884, %v4470
        %v4886 = vpop.permute.xlu0 %4885
        %4888 = vset.pattern.permute.xlu0 10
        %4889 = vperm.xlu0 %4888, %v4471
        %v4890 = vpop.permute.xlu0 %4889
        %v4892 = vlaneseq
        %v4893 = vshrl.u32 %v4892, 7
        %v4894 = vsub.s32 2, %v4893
        %v4895 = vrot.slane %v606, %v4894
        %v4896 = vlaneseq
        %v4897 = vshrl.u32 %v4896, 7
        %v4898 = vsub.s32 2, %v4897
        %v4899 = vrot.slane %v607, %v4898
        %v4900 = vmul.f32 %v4878, %v4895
        %v4901 = vmul.f32 %v4878, %v4899
        %v4902 = vmul.f32 %v4882, %v4895
        %v4903 = vmul.f32 %v4882, %v4899
        %v4904 = vmul.f32 %v4886, %v4895
        %v4905 = vmul.f32 %v4886, %v4899
        %v4906 = vmul.f32 %v4890, %v4895
        %v4907 = vmul.f32 %v4890, %v4899
        %v4908 = vadd.f32 %v4868, %v4900
        %v4909 = vadd.f32 %v4869, %v4901
        %v4910 = vadd.f32 %v4870, %v4902
        %v4911 = vadd.f32 %v4871, %v4903
        %v4912 = vadd.f32 %v4872, %v4904
        %v4913 = vadd.f32 %v4873, %v4905
        %v4914 = vadd.f32 %v4874, %v4906
        %v4915 = vadd.f32 %v4875, %v4907
        %4916 = vset.pattern.permute.xlu0 11
        %4917 = vperm.xlu0 %4916, %v4468
        %v4918 = vpop.permute.xlu0 %4917
        %4920 = vset.pattern.permute.xlu0 11
        %4921 = vperm.xlu0 %4920, %v4469
        %v4922 = vpop.permute.xlu0 %4921
        %4924 = vset.pattern.permute.xlu0 11
        %4925 = vperm.xlu0 %4924, %v4470
        %v4926 = vpop.permute.xlu0 %4925
        %4928 = vset.pattern.permute.xlu0 11
        %4929 = vperm.xlu0 %4928, %v4471
        %v4930 = vpop.permute.xlu0 %4929
        %v4932 = vlaneseq
        %v4933 = vshrl.u32 %v4932, 7
        %v4934 = vsub.s32 3, %v4933
        %v4935 = vrot.slane %v606, %v4934
        %v4936 = vlaneseq
        %v4937 = vshrl.u32 %v4936, 7
        %v4938 = vsub.s32 3, %v4937
        %v4939 = vrot.slane %v607, %v4938
        %v4940 = vmul.f32 %v4918, %v4935
        %v4941 = vmul.f32 %v4918, %v4939
        %v4942 = vmul.f32 %v4922, %v4935
        %v4943 = vmul.f32 %v4922, %v4939
        %v4944 = vmul.f32 %v4926, %v4935
        %v4945 = vmul.f32 %v4926, %v4939
        %v4946 = vmul.f32 %v4930, %v4935
        %v4947 = vmul.f32 %v4930, %v4939
        %v4948 = vadd.f32 %v4908, %v4940
        %v4949 = vadd.f32 %v4909, %v4941
        %v4950 = vadd.f32 %v4910, %v4942
        %v4951 = vadd.f32 %v4911, %v4943
        %v4952 = vadd.f32 %v4912, %v4944
        %v4953 = vadd.f32 %v4913, %v4945
        %v4954 = vadd.f32 %v4914, %v4946
        %v4955 = vadd.f32 %v4915, %v4947
        %4956 = vset.pattern.permute.xlu0 12
        %4957 = vperm.xlu0 %4956, %v4468
        %v4958 = vpop.permute.xlu0 %4957
        %4960 = vset.pattern.permute.xlu0 12
        %4961 = vperm.xlu0 %4960, %v4469
        %v4962 = vpop.permute.xlu0 %4961
        %4964 = vset.pattern.permute.xlu0 12
        %4965 = vperm.xlu0 %4964, %v4470
        %v4966 = vpop.permute.xlu0 %4965
        %4968 = vset.pattern.permute.xlu0 12
        %4969 = vperm.xlu0 %4968, %v4471
        %v4970 = vpop.permute.xlu0 %4969
        %v4972 = vlaneseq
        %v4973 = vshrl.u32 %v4972, 7
        %v4974 = vsub.s32 4, %v4973
        %v4975 = vrot.slane %v606, %v4974
        %v4976 = vlaneseq
        %v4977 = vshrl.u32 %v4976, 7
        %v4978 = vsub.s32 4, %v4977
        %v4979 = vrot.slane %v607, %v4978
        %v4980 = vmul.f32 %v4958, %v4975
        %v4981 = vmul.f32 %v4958, %v4979
        %v4982 = vmul.f32 %v4962, %v4975
        %v4983 = vmul.f32 %v4962, %v4979
        %v4984 = vmul.f32 %v4966, %v4975
        %v4985 = vmul.f32 %v4966, %v4979
        %v4986 = vmul.f32 %v4970, %v4975
        %v4987 = vmul.f32 %v4970, %v4979
        %v4988 = vadd.f32 %v4948, %v4980
        %v4989 = vadd.f32 %v4949, %v4981
        %v4990 = vadd.f32 %v4950, %v4982
        %v4991 = vadd.f32 %v4951, %v4983
        %v4992 = vadd.f32 %v4952, %v4984
        %v4993 = vadd.f32 %v4953, %v4985
        %v4994 = vadd.f32 %v4954, %v4986
        %v4995 = vadd.f32 %v4955, %v4987
        %4996 = vset.pattern.permute.xlu0 13
        %4997 = vperm.xlu0 %4996, %v4468
        %v4998 = vpop.permute.xlu0 %4997
        %5000 = vset.pattern.permute.xlu0 13
        %5001 = vperm.xlu0 %5000, %v4469
        %v5002 = vpop.permute.xlu0 %5001
        %5004 = vset.pattern.permute.xlu0 13
        %5005 = vperm.xlu0 %5004, %v4470
        %v5006 = vpop.permute.xlu0 %5005
        %5008 = vset.pattern.permute.xlu0 13
        %5009 = vperm.xlu0 %5008, %v4471
        %v5010 = vpop.permute.xlu0 %5009
        %v5012 = vlaneseq
        %v5013 = vshrl.u32 %v5012, 7
        %v5014 = vsub.s32 5, %v5013
        %v5015 = vrot.slane %v606, %v5014
        %v5016 = vlaneseq
        %v5017 = vshrl.u32 %v5016, 7
        %v5018 = vsub.s32 5, %v5017
        %v5019 = vrot.slane %v607, %v5018
        %v5020 = vmul.f32 %v4998, %v5015
        %v5021 = vmul.f32 %v4998, %v5019
        %v5022 = vmul.f32 %v5002, %v5015
        %v5023 = vmul.f32 %v5002, %v5019
        %v5024 = vmul.f32 %v5006, %v5015
        %v5025 = vmul.f32 %v5006, %v5019
        %v5026 = vmul.f32 %v5010, %v5015
        %v5027 = vmul.f32 %v5010, %v5019
        %v5028 = vadd.f32 %v4988, %v5020
        %v5029 = vadd.f32 %v4989, %v5021
        %v5030 = vadd.f32 %v4990, %v5022
        %v5031 = vadd.f32 %v4991, %v5023
        %v5032 = vadd.f32 %v4992, %v5024
        %v5033 = vadd.f32 %v4993, %v5025
        %v5034 = vadd.f32 %v4994, %v5026
        %v5035 = vadd.f32 %v4995, %v5027
        %5036 = vset.pattern.permute.xlu0 14
        %5037 = vperm.xlu0 %5036, %v4468
        %v5038 = vpop.permute.xlu0 %5037
        %5040 = vset.pattern.permute.xlu0 14
        %5041 = vperm.xlu0 %5040, %v4469
        %v5042 = vpop.permute.xlu0 %5041
        %5044 = vset.pattern.permute.xlu0 14
        %5045 = vperm.xlu0 %5044, %v4470
        %v5046 = vpop.permute.xlu0 %5045
        %5048 = vset.pattern.permute.xlu0 14
        %5049 = vperm.xlu0 %5048, %v4471
        %v5050 = vpop.permute.xlu0 %5049
        %v5052 = vlaneseq
        %v5053 = vshrl.u32 %v5052, 7
        %v5054 = vsub.s32 6, %v5053
        %v5055 = vrot.slane %v606, %v5054
        %v5056 = vlaneseq
        %v5057 = vshrl.u32 %v5056, 7
        %v5058 = vsub.s32 6, %v5057
        %v5059 = vrot.slane %v607, %v5058
        %v5060 = vmul.f32 %v5038, %v5055
        %v5061 = vmul.f32 %v5038, %v5059
        %v5062 = vmul.f32 %v5042, %v5055
        %v5063 = vmul.f32 %v5042, %v5059
        %v5064 = vmul.f32 %v5046, %v5055
        %v5065 = vmul.f32 %v5046, %v5059
        %v5066 = vmul.f32 %v5050, %v5055
        %v5067 = vmul.f32 %v5050, %v5059
        %v5068 = vadd.f32 %v5028, %v5060
        %v5069 = vadd.f32 %v5029, %v5061
        %v5070 = vadd.f32 %v5030, %v5062
        %v5071 = vadd.f32 %v5031, %v5063
        %v5072 = vadd.f32 %v5032, %v5064
        %v5073 = vadd.f32 %v5033, %v5065
        %v5074 = vadd.f32 %v5034, %v5066
        %v5075 = vadd.f32 %v5035, %v5067
        %5076 = vset.pattern.permute.xlu0 15
        %5077 = vperm.xlu0 %5076, %v4468
        %v5078 = vpop.permute.xlu0 %5077
        %5080 = vset.pattern.permute.xlu0 15
        %5081 = vperm.xlu0 %5080, %v4469
        %v5082 = vpop.permute.xlu0 %5081
        %5084 = vset.pattern.permute.xlu0 15
        %5085 = vperm.xlu0 %5084, %v4470
        %v5086 = vpop.permute.xlu0 %5085
        %5088 = vset.pattern.permute.xlu0 15
        %5089 = vperm.xlu0 %5088, %v4471
        %v5090 = vpop.permute.xlu0 %5089
        %v5092 = vlaneseq
        %v5093 = vshrl.u32 %v5092, 7
        %v5094 = vsub.s32 7, %v5093
        %v5095 = vrot.slane %v606, %v5094
        %v5096 = vlaneseq
        %v5097 = vshrl.u32 %v5096, 7
        %v5098 = vsub.s32 7, %v5097
        %v5099 = vrot.slane %v607, %v5098
        %v5100 = vmul.f32 %v5078, %v5095
        %v5101 = vmul.f32 %v5078, %v5099
        %v5102 = vmul.f32 %v5082, %v5095
        %v5103 = vmul.f32 %v5082, %v5099
        %v5104 = vmul.f32 %v5086, %v5095
        %v5105 = vmul.f32 %v5086, %v5099
        %v5106 = vmul.f32 %v5090, %v5095
        %v5107 = vmul.f32 %v5090, %v5099
        %v5108 = vadd.f32 %v5068, %v5100
        %v5109 = vadd.f32 %v5069, %v5101
        %v5110 = vadd.f32 %v5070, %v5102
        %v5111 = vadd.f32 %v5071, %v5103
        %v5112 = vadd.f32 %v5072, %v5104
        %v5113 = vadd.f32 %v5073, %v5105
        %v5114 = vadd.f32 %v5074, %v5106
        %v5115 = vadd.f32 %v5075, %v5107
        %v5116 = vld [vmem:[%s18] sm:$0xff]
        %v5117 = vld [vmem:[%s18 + $0x8] sm:$0xff]
        %v5118 = vld [vmem:[%s18 + $0x10] sm:$0xff]
        %v5119 = vld [vmem:[%s18 + $0x18] sm:$0xff]
        %5121 = vset.pattern.permute.xlu0 0
        %5122 = vperm.xlu0 %5121, %v5116
        %v5123 = vpop.permute.xlu0 %5122
        %5126 = vset.pattern.permute.xlu0 0
        %5127 = vperm.xlu0 %5126, %v5117
        %v5128 = vpop.permute.xlu0 %5127
        %5131 = vset.pattern.permute.xlu0 0
        %5132 = vperm.xlu0 %5131, %v5118
        %v5133 = vpop.permute.xlu0 %5132
        %5136 = vset.pattern.permute.xlu0 0
        %5137 = vperm.xlu0 %5136, %v5119
        %v5138 = vpop.permute.xlu0 %5137
        %v5140 = vadd.f32 %v5108, %v5123
        %v5141 = vadd.f32 %v5109, %v5123
        %v5142 = vadd.f32 %v5110, %v5128
        %v5143 = vadd.f32 %v5111, %v5128
        %v5144 = vadd.f32 %v5112, %v5133
        %v5145 = vadd.f32 %v5113, %v5133
        %v5146 = vadd.f32 %v5114, %v5138
        %v5147 = vadd.f32 %v5115, %v5138
        %v5148 = vadd.f32 %v4460, %v5140
        %v5149 = vadd.f32 %v4461, %v5141
        %v5150 = vadd.f32 %v4462, %v5142
        %v5151 = vadd.f32 %v4463, %v5143
        %v5152 = vadd.f32 %v4464, %v5144
        %v5153 = vadd.f32 %v4465, %v5145
        %v5154 = vadd.f32 %v4466, %v5146
        %v5155 = vadd.f32 %v4467, %v5147
        %v5156 = vadd.f32 %v5148, %v5149
        %5157 = vadd.xlane.f32.xlu0 %v5156
        %v5158 = vpop.xlane.xlu0 %5157
        %v5159 = vadd.f32 %v5150, %v5151
        %5160 = vadd.xlane.f32.xlu0 %v5159
        %v5161 = vpop.xlane.xlu0 %5160
        %v5162 = vadd.f32 %v5152, %v5153
        %5163 = vadd.xlane.f32.xlu0 %v5162
        %v5164 = vpop.xlane.xlu0 %5163
        %v5165 = vadd.f32 %v5154, %v5155
        %5166 = vadd.xlane.f32.xlu0 %v5165
        %v5167 = vpop.xlane.xlu0 %5166
        %v5168 = vmul.f32 %v5158, 0.00390625
        %v5169 = vmul.f32 %v5161, 0.00390625
        %v5170 = vmul.f32 %v5164, 0.00390625
        %v5171 = vmul.f32 %v5167, 0.00390625
        %v5172 = vsub.f32 %v5148, %v5168
        %v5173 = vsub.f32 %v5149, %v5168
        %v5174 = vsub.f32 %v5150, %v5169
        %v5175 = vsub.f32 %v5151, %v5169
        %v5176 = vsub.f32 %v5152, %v5170
        %v5177 = vsub.f32 %v5153, %v5170
        %v5178 = vsub.f32 %v5154, %v5171
        %v5179 = vsub.f32 %v5155, %v5171
        %v5180 = vmul.f32 %v5172, %v5172
        %v5181 = vmul.f32 %v5173, %v5173
        %v5182 = vmul.f32 %v5174, %v5174
        %v5183 = vmul.f32 %v5175, %v5175
        %v5184 = vmul.f32 %v5176, %v5176
        %v5185 = vmul.f32 %v5177, %v5177
        %v5186 = vmul.f32 %v5178, %v5178
        %v5187 = vmul.f32 %v5179, %v5179
        %v5188 = vadd.f32 %v5180, %v5181
        %5189 = vadd.xlane.f32.xlu0 %v5188
        %v5190 = vpop.xlane.xlu0 %5189
        %v5191 = vadd.f32 %v5182, %v5183
        %5192 = vadd.xlane.f32.xlu0 %v5191
        %v5193 = vpop.xlane.xlu0 %5192
        %v5194 = vadd.f32 %v5184, %v5185
        %5195 = vadd.xlane.f32.xlu0 %v5194
        %v5196 = vpop.xlane.xlu0 %5195
        %v5197 = vadd.f32 %v5186, %v5187
        %5198 = vadd.xlane.f32.xlu0 %v5197
        %v5199 = vpop.xlane.xlu0 %5198
        %v5200 = vmul.f32 %v5190, 0.00390625
        %v5201 = vmul.f32 %v5193, 0.00390625
        %v5202 = vmul.f32 %v5196, 0.00390625
        %v5203 = vmul.f32 %v5199, 0.00390625
        %v5204 = vadd.f32 %v5200, 1e-05
        %v5205 = vadd.f32 %v5201, 1e-05
        %v5206 = vadd.f32 %v5202, 1e-05
        %v5207 = vadd.f32 %v5203, 1e-05
        %v5208 = vrsqrt.pop %v5204
        %v5209 = vrsqrt.pop %v5205
        %v5210 = vrsqrt.pop %v5206
        %v5211 = vrsqrt.pop %v5207
        %v5212 = vmul.f32 %v5172, %v5208
        %v5213 = vmul.f32 %v5173, %v5208
        %v5214 = vmul.f32 %v5174, %v5209
        %v5215 = vmul.f32 %v5175, %v5209
        %v5216 = vmul.f32 %v5176, %v5210
        %v5217 = vmul.f32 %v5177, %v5210
        %v5218 = vmul.f32 %v5178, %v5211
        %v5219 = vmul.f32 %v5179, %v5211
        %v5220 = vmax.f32 %v5212, 0.0
        %v5221 = vmax.f32 %v5213, 0.0
        %v5222 = vmax.f32 %v5214, 0.0
        %v5223 = vmax.f32 %v5215, 0.0
        %v5224 = vmax.f32 %v5216, 0.0
        %v5225 = vmax.f32 %v5217, 0.0
        %v5226 = vmax.f32 %v5218, 0.0
        %v5227 = vmax.f32 %v5219, 0.0
        %5228 = vst [vmem:[%s595] sm:$0xff] %v5220
        %5229 = vst [vmem:[%s595 + $0x8] sm:$0xff] %v5221
        %5230 = vst [vmem:[%s595 + $0x10] sm:$0xff] %v5222
        %5231 = vst [vmem:[%s595 + $0x18] sm:$0xff] %v5223
        %5232 = vst [vmem:[%s595 + $0x20] sm:$0xff] %v5224
        %5233 = vst [vmem:[%s595 + $0x28] sm:$0xff] %v5225
        %5234 = vst [vmem:[%s595 + $0x30] sm:$0xff] %v5226
        %5235 = vst [vmem:[%s595 + $0x38] sm:$0xff] %v5227
        %s5236 = sand.u32 %s445, 1
        %s5237 = scalar_lea.sflag [#allocation5], %s5236
        %s5238 = sand.u32 %s445, 1
        %s5239 = smul.addr %s5238, 64
        %s5240 = scalar_lea.vmem [#allocation4], %s5239
        // Predicated region
        $region97: #{tpu_custom_call.1} parent=95 // pred_check
          %p5241 = pneg %p455
        $region98: #{tpu_custom_call.1} parent=95 // pred_check_branch
          %5243 = sbr.rel (%p5241) target = $region100
        $region99: #{tpu_custom_call.1} parent=95 // pred_region
          %s5245 = ssub.s32 1024, 1024
          %5246 = vsyncadd %s5237, %s5245
          %s5247 = smul.addr %s33, 8
          %s5248 = smul.addr %s5247, 128
          %s5249 = scalar_lea.hbm %s19, %s5248
          %s5250 = sshll.u32 %s5240, 4
          %s5251 = int_to_ptr.vmem [resolvable:$true] %s5250
          %5256 = dma.vmem_to_hbm [thread:$0]  %s5251, 1024, %s5249, %s5237, 256, 256, 16
        $region100: #{tpu_custom_call.1} parent=95 // pred_fallthru
          _
      $region96: #{tpu_custom_call.1} parent=5 // pred_fallthru
        _
      %p5257 = scmp.le.s32.totalorder 2, %s28
      // Predicated region
      $region101: #{tpu_custom_call.1} parent=5 // pred_check
        %p5258 = pneg %p5257
      $region102: #{tpu_custom_call.1} parent=5 // pred_check_branch
        %5260 = sbr.rel (%p5258) target = $region104
      $region103: #{tpu_custom_call.1} parent=5 // pred_region
        %s5261 = ssub.s32 %s28, 2
        // Predicated region
        $region105: #{tpu_custom_call.1} parent=103 // pred_check
          %p5262 = pneg %p461
        $region106: #{tpu_custom_call.1} parent=103 // pred_check_branch
          %5264 = sbr.rel (%p5262) target = $region108
        $region107: #{tpu_custom_call.1} parent=103 // pred_region
          %s5265 = sand.u32 %s446, 1
          %s5266 = scalar_lea.sflag [#allocation5], %s5265
          %s5267 = sand.u32 %s446, 1
          %s5268 = smul.addr %s5267, 64
          %s5269 = scalar_lea.vmem [#allocation4], %s5268
          %5270 = dma.done %s5266, 1024
        $region108: #{tpu_custom_call.1} parent=103 // pred_fallthru
          _
      $region104: #{tpu_custom_call.1} parent=5 // pred_fallthru
        _
    $region6: #{tpu_custom_call.1} parent=1 // loop_footer
      %s32 = sadd.s32 1, %s28
    $region7: #{tpu_custom_call.1} parent=1 // loop_footer_branch
      %27 = sbr.rel target = $region3
    $region8: #{tpu_custom_call.1} parent=1 // loop_exit
      _
    %5271 = vsyncpa [#allocation5], 1
    %s5272 = scalar_lea.sflag [#allocation5], 1
    %5273 = vsyncpa %s5272, 1

</llo_original>
